<compile_context>
chip_gen: v5e
topology: v5e:2x2
jax: 0.10.0
libtpu: 0.0.40
codegen_flags: <defaults>
</compile_context>

<pallas_src>
import functools
import math

import jax
import jax.numpy as jnp
from jax.experimental import pallas as pl
from jax.experimental.pallas import tpu as pltpu


# ----------------------------------------------------------------------------
# helpers
# ----------------------------------------------------------------------------

_TM, _TN, _TK = 512, 1024, 2048          # linear-kernel tile targets (bf16)
_ATTN_TQ = 256                           # flash-attention query tile
_ATTN_TS = 256                           # flash-attention key tile
_VMEM_LIMIT = 48 * 1024 * 1024           # fits v5e/v6e (128 MiB) and v7x (64 MiB)


def _round_up(x, m):
    return ((x + m - 1) // m) * m


def _gelu_tanh(x):
    # tanh-approx GELU (erf lowering on Mosaic not guaranteed; GPTBlock not in
    # the reference source, so the activation choice is ours).
    c = math.sqrt(2.0 / math.pi)
    return 0.5 * x * (1.0 + jnp.tanh(c * (x + 0.044715 * x * x * x)))


# ----------------------------------------------------------------------------
# Pallas kernels
# ----------------------------------------------------------------------------

def _linear_kernel(*refs, activation, has_residual, has_ln, eps):
    # grid = (M/tm, N/tn, K/tk); output block resident across the K axis.
    # ref order: x, w, b, [ln_g, ln_b], [res], o, acc
    x_ref, w_ref, b_ref = refs[0], refs[1], refs[2]
    idx = 3
    if has_ln:
        g_ref, bln_ref = refs[3], refs[4]
        idx = 5
    else:
        g_ref = bln_ref = None
    if has_residual:
        res_ref = refs[idx]
        idx += 1
    else:
        res_ref = None
    o_ref, acc_ref = refs[idx], refs[idx + 1]

    k = pl.program_id(2)

    @pl.when(k == 0)
    def _():
        acc_ref[...] = jnp.zeros_like(acc_ref)

    x = x_ref[...]
    if has_ln:
        # fused LayerNorm prologue (valid because the whole K row is in-tile).
        xf = x.astype(jnp.float32)
        mean = jnp.mean(xf, axis=-1, keepdims=True)
        var = jnp.mean(jnp.square(xf - mean), axis=-1, keepdims=True)
        xf = (xf - mean) * jax.lax.rsqrt(var + eps)
        x = (xf * g_ref[...] + bln_ref[...]).astype(jnp.bfloat16)

    acc_ref[...] += jnp.dot(x, w_ref[...], preferred_element_type=jnp.float32)

    @pl.when(k == pl.num_programs(2) - 1)
    def _():
        r = acc_ref[...] + b_ref[...]                 # bias (f32)
        if activation == "gelu":
            r = _gelu_tanh(r)                         # fused GELU epilogue
        if has_residual:
            r = r + res_ref[...].astype(jnp.float32)  # fused residual add
        o_ref[...] = r.astype(o_ref.dtype)


def _layernorm_kernel(x_ref, g_ref, b_ref, o_ref, *, eps):
    # fallback standalone LN (only used when K does not fit a single tile).
    x = x_ref[...].astype(jnp.float32)
    mean = jnp.mean(x, axis=-1, keepdims=True)
    var = jnp.mean(jnp.square(x - mean), axis=-1, keepdims=True)
    y = (x - mean) * jax.lax.rsqrt(var + eps)
    o_ref[...] = (y * g_ref[...] + b_ref[...]).astype(o_ref.dtype)


def _rope_rotate(x_bf16, cos, sin, perm):
    # rotate_half via a tiny (d,d) signed-permutation matmul (MXU); avoids
    # lane-dim concat/roll lowering and stays fused in the attention kernel.
    xf = x_bf16.astype(jnp.float32)
    rot = jnp.dot(x_bf16, perm, preferred_element_type=jnp.float32)
    return (xf * cos + rot * sin).astype(jnp.bfloat16)


def _mha_kernel(lens_ref, *refs, scale, causal, has_rope):
    # grid = (B, H, T/tq, S/tks); S axis is the online-softmax reduction axis.
    if has_rope:
        (q_ref, k_ref, v_ref, cos_q_ref, sin_q_ref, cos_k_ref, sin_k_ref,
         p_ref, o_ref, m_sc, l_sc, acc_sc) = refs
    else:
        q_ref, k_ref, v_ref, o_ref, m_sc, l_sc, acc_sc = refs
        cos_q_ref = sin_q_ref = cos_k_ref = sin_k_ref = p_ref = None

    b = pl.program_id(0)
    ti = pl.program_id(2)
    si = pl.program_id(3)
    tq = q_ref.shape[0]
    tks = k_ref.shape[0]

    @pl.when(si == 0)
    def _():
        m_sc[...] = jnp.full(m_sc.shape, -1e30, m_sc.dtype)
        l_sc[...] = jnp.zeros(l_sc.shape, l_sc.dtype)
        acc_sc[...] = jnp.zeros(acc_sc.shape, acc_sc.dtype)

    length = lens_ref[b]                 # scalar from SMEM (prefetched)
    q_start = ti * tq
    k_start = si * tks

    needed = k_start < length            # skip fully length-masked key blocks
    if causal:
        needed = jnp.logical_and(needed, k_start <= q_start + tq - 1)

    @pl.when(needed)
    def _():
        if has_rope:
            q = _rope_rotate(q_ref[...], cos_q_ref[...], sin_q_ref[...], p_ref[...])
            k = _rope_rotate(k_ref[...], cos_k_ref[...], sin_k_ref[...], p_ref[...])
        else:
            q = q_ref[...]
            k = k_ref[...]
        # scores: contract head_dim directly (no K transpose).
        s = jax.lax.dot_general(q, k, (((1,), (1,)), ((), ())),
                                preferred_element_type=jnp.float32) * scale
        col = k_start + jax.lax.broadcasted_iota(jnp.int32, (tq, tks), 1)
        valid = col < length
        if causal:
            row = q_start + jax.lax.broadcasted_iota(jnp.int32, (tq, tks), 0)
            valid = jnp.logical_and(valid, col <= row)
        s = jnp.where(valid, s, -1e30)

        m_prev = m_sc[...]
        m_new = jnp.maximum(m_prev, jnp.max(s, axis=-1, keepdims=True))
        alpha = jnp.exp(m_prev - m_new)
        p = jnp.exp(s - m_new)
        p = jnp.where(valid, p, 0.0)     # fully-masked blocks contribute zero
        l_sc[...] = alpha * l_sc[...] + jnp.sum(p, axis=-1, keepdims=True)
        acc_sc[...] = alpha * acc_sc[...] + jnp.dot(
            p.astype(v_ref.dtype), v_ref[...], preferred_element_type=jnp.float32)
        m_sc[...] = m_new

    @pl.when(si == pl.num_programs(3) - 1)
    def _():
        l = jnp.maximum(l_sc[...], 1e-30)
        o_ref[...] = (acc_sc[...] * pl.reciprocal(l, approx=True)).astype(o_ref.dtype)


# ----------------------------------------------------------------------------
# Pallas wrappers
# ----------------------------------------------------------------------------

def _choose_tiles(M, N, K):
    tm = M if M <= _TM else _TM
    tn = N if N <= _TN else _TN
    tk = K if K <= _TK else _TK
    return tm, tn, tk, _round_up(M, tm), _round_up(N, tn), _round_up(K, tk)


def _pad2(a, rows, cols):
    pr, pc = rows - a.shape[0], cols - a.shape[1]
    if pr or pc:
        a = jnp.pad(a, ((0, pr), (0, pc)))
    return a


def pallas_layernorm(x, g, b, eps=1e-5, out_dtype=jnp.bfloat16):
    lead = x.shape[:-1]
    D = x.shape[-1]
    M = int(math.prod(lead)) if lead else 1
    tm = M if M <= _TM else _TM
    Mp = _round_up(M, tm)
    x2 = x.reshape(M, D).astype(jnp.bfloat16)
    if Mp != M:
        x2 = jnp.pad(x2, ((0, Mp - M), (0, 0)))
    out = pl.pallas_call(
        functools.partial(_layernorm_kernel, eps=eps),
        out_shape=jax.ShapeDtypeStruct((Mp, D), out_dtype),
        grid=(Mp // tm,),
        in_specs=[pl.BlockSpec((tm, D), lambda i: (i, 0)),
                  pl.BlockSpec((1, D), lambda i: (0, 0)),
                  pl.BlockSpec((1, D), lambda i: (0, 0))],
        out_specs=pl.BlockSpec((tm, D), lambda i: (i, 0)),
        compiler_params=pltpu.CompilerParams(
            dimension_semantics=("parallel",)),
    )(x2, g.astype(jnp.float32).reshape(1, D),
      b.astype(jnp.float32).reshape(1, D))
    return out[:M].reshape(*lead, D)


def pallas_linear(x, w, b, *, ln=None, residual=None, activation=None,
                  out_dtype=jnp.bfloat16, eps=1e-5):
    """y = act(LN?(x) @ w + b) [+ residual] — tiled bf16 matmul, f32 accum."""
    lead = x.shape[:-1]
    K = x.shape[-1]
    N = w.shape[-1]
    M = int(math.prod(lead)) if lead else 1
    tm, tn, tk, Mp, Np, Kp = _choose_tiles(M, N, K)

    # LN can be fused only when the full K row sits in one tile (no K padding).
    fuse_ln = ln is not None and tk == K and Kp == K
    if ln is not None and not fuse_ln:
        x = pallas_layernorm(x, ln[0], ln[1], eps=eps)

    # weights/biases are created bf16/f32 at init; with aligned dims the
    # casts/pads below are no-ops under jit.
    xp = _pad2(x.reshape(M, K).astype(jnp.bfloat16), Mp, Kp)
    wp = _pad2(w.astype(jnp.bfloat16), Kp, Np)
    bp = _pad2(b.astype(jnp.float32).reshape(1, N), 1, Np)

    inputs = [xp, wp, bp]
    in_specs = [
        pl.BlockSpec((tm, tk), lambda i, j, k: (i, k)),
        pl.BlockSpec((tk, tn), lambda i, j, k: (k, j)),
        pl.BlockSpec((1, tn), lambda i, j, k: (0, j)),
    ]
    if fuse_ln:
        inputs += [ln[0].astype(jnp.float32).reshape(1, K),
                   ln[1].astype(jnp.float32).reshape(1, K)]
        in_specs += [pl.BlockSpec((1, tk), lambda i, j, k: (0, k)),
                     pl.BlockSpec((1, tk), lambda i, j, k: (0, k))]
    if residual is not None:
        rp = _pad2(residual.reshape(M, N).astype(jnp.bfloat16), Mp, Np)
        inputs.append(rp)
        in_specs.append(pl.BlockSpec((tm, tn), lambda i, j, k: (i, j)))

    kernel = functools.partial(_linear_kernel, activation=activation,
                               has_residual=residual is not None,
                               has_ln=fuse_ln, eps=eps)
    out = pl.pallas_call(
        kernel,
        out_shape=jax.ShapeDtypeStruct((Mp, Np), out_dtype),
        grid_spec=pltpu.PrefetchScalarGridSpec(
            num_scalar_prefetch=0,
            grid=(Mp // tm, Np // tn, Kp // tk),
            in_specs=in_specs,
            out_specs=pl.BlockSpec((tm, tn), lambda i, j, k: (i, j)),
            scratch_shapes=[pltpu.VMEM((tm, tn), jnp.float32)]),
        compiler_params=pltpu.CompilerParams(
            dimension_semantics=("parallel", "parallel", "arbitrary"),
            vmem_limit_bytes=_VMEM_LIMIT),
    )(*inputs)
    return out[:M, :N].reshape(*lead, N)


def _attn_tile(n, target):
    if n <= target:
        return n, n
    return target, _round_up(n, target)


def _rope_perm_matrix(d):
    half = d // 2
    i = jnp.arange(d)[:, None]
    j = jnp.arange(d)[None, :]
    neg = (i == j + half).astype(jnp.float32)   # out[:, j<half]  = -x[:, j+half]
    pos = (i + half == j).astype(jnp.float32)   # out[:, j>=half] =  x[:, j-half]
    return (pos - neg).astype(jnp.bfloat16)


def pallas_mha(q_arr, kv_arr, lengths, *, n_heads, q_off, k_off, v_off,
               causal, cos=None, sin=None):
    """Flash-tiled multi-head attention.

    q_arr : (B, Hq_total, T, d) bf16 — query heads at [q_off, q_off + H)
    kv_arr: (B, Hk_total, S, d) bf16 — key heads at [k_off, ...), values at [v_off, ...)
    lengths: (B,) int32 valid (prefix) key length per batch element.
    cos/sin: (T, d) f32 rotary tables applied to q and k (self-attn only).
    """
    B, _, T, d = q_arr.shape
    S = kv_arr.shape[2]
    H = n_heads
    has_rope = cos is not None

    tq, Tp = _attn_tile(T, _ATTN_TQ)
    tks, Sp = _attn_tile(S, _ATTN_TS)
    if Tp != T:
        q_arr = jnp.pad(q_arr, ((0, 0), (0, 0), (0, Tp - T), (0, 0)))
    if Sp != S:
        kv_arr = jnp.pad(kv_arr, ((0, 0), (0, 0), (0, Sp - S), (0, 0)))

    inputs = [q_arr, kv_arr, kv_arr]
    in_specs = [
        pl.BlockSpec((None, None, tq, d),
                     lambda b, h, ti, si, lens: (b, q_off + h, ti, 0)),
        pl.BlockSpec((None, None, tks, d),
                     lambda b, h, ti, si, lens: (b, k_off + h, si, 0)),
        pl.BlockSpec((None, None, tks, d),
                     lambda b, h, ti, si, lens: (b, v_off + h, si, 0)),
    ]
    if has_rope:
        # self-attention only (T == S), so one padded table serves q and k.
        cosp = cos.astype(jnp.float32)
        sinp = sin.astype(jnp.float32)
        if Tp != cosp.shape[0]:
            cosp = jnp.pad(cosp, ((0, Tp - cosp.shape[0]), (0, 0)))
            sinp = jnp.pad(sinp, ((0, Tp - sinp.shape[0]), (0, 0)))
        inputs += [cosp, sinp, cosp, sinp, _rope_perm_matrix(d)]
        in_specs += [
            pl.BlockSpec((tq, d), lambda b, h, ti, si, lens: (ti, 0)),
            pl.BlockSpec((tq, d), lambda b, h, ti, si, lens: (ti, 0)),
            pl.BlockSpec((tks, d), lambda b, h, ti, si, lens: (si, 0)),
            pl.BlockSpec((tks, d), lambda b, h, ti, si, lens: (si, 0)),
            pl.BlockSpec((d, d), lambda b, h, ti, si, lens: (0, 0)),
        ]

    kernel = functools.partial(_mha_kernel, scale=1.0 / math.sqrt(d),
                               causal=causal, has_rope=has_rope)
    out = pl.pallas_call(
        kernel,
        out_shape=jax.ShapeDtypeStruct((B, H, Tp, d), jnp.bfloat16),
        grid_spec=pltpu.PrefetchScalarGridSpec(
            num_scalar_prefetch=1,
            grid=(B, H, Tp // tq, Sp // tks),
            in_specs=in_specs,
            out_specs=pl.BlockSpec((None, None, tq, d),
                                   lambda b, h, ti, si, lens: (b, h, ti, 0)),
            scratch_shapes=[pltpu.VMEM((tq, 1), jnp.float32),
                            pltpu.VMEM((tq, 1), jnp.float32),
                            pltpu.VMEM((tq, d), jnp.float32)]),
        compiler_params=pltpu.CompilerParams(
            dimension_semantics=("parallel", "parallel", "parallel", "arbitrary"),
            vmem_limit_bytes=_VMEM_LIMIT),
    )(lengths.astype(jnp.int32), *inputs)
    if Tp != T:
        out = out[:, :, :T, :]
    return out


# ----------------------------------------------------------------------------
# Glue (RoPE tables, parameter init, block wiring)
# ----------------------------------------------------------------------------

def rope_cos_sin(seq_len, dim, base=10000.0):
    inv_freq = 1.0 / (base ** (jnp.arange(0, dim, 2, dtype=jnp.float32) / dim))
    t = jnp.arange(seq_len, dtype=jnp.float32)
    freqs = jnp.outer(t, inv_freq)                      # (T, dim/2)
    emb = jnp.concatenate([freqs, freqs], axis=-1)      # (T, dim)
    return jnp.cos(emb), jnp.sin(emb)


def _linear_init(key, fan_in, fan_out):
    w = 0.02 * jax.random.normal(key, (fan_in, fan_out), dtype=jnp.float32)
    return w.astype(jnp.bfloat16)        # weights live in bf16 (MXU-native)


def init_gpt_params(key, n_tokens, n_blocks, model_dim):
    D = model_dim
    params = {}
    key, k_emb = jax.random.split(key)
    params["embedding"] = (0.02 * jax.random.normal(
        k_emb, (n_tokens, D), dtype=jnp.float32)).astype(jnp.bfloat16)
    blocks = []
    for _ in range(n_blocks):
        key, *ks = jax.random.split(key, 9)
        blk = {
            "ln1_g": jnp.ones((D,), jnp.float32), "ln1_b": jnp.zeros((D,), jnp.float32),
            "w_qkv": _linear_init(ks[0], D, 3 * D), "b_qkv": jnp.zeros((3 * D,), jnp.float32),
            "wo": _linear_init(ks[1], D, D), "bo": jnp.zeros((D,), jnp.float32),
            "ln2_g": jnp.ones((D,), jnp.float32), "ln2_b": jnp.zeros((D,), jnp.float32),
            "cwq": _linear_init(ks[2], D, D), "cbq": jnp.zeros((D,), jnp.float32),
            "cw_kv": _linear_init(ks[3], D, 2 * D), "cb_kv": jnp.zeros((2 * D,), jnp.float32),
            "cwo": _linear_init(ks[4], D, D), "cbo": jnp.zeros((D,), jnp.float32),
            "ln3_g": jnp.ones((D,), jnp.float32), "ln3_b": jnp.zeros((D,), jnp.float32),
            "w1": _linear_init(ks[5], D, 4 * D), "b1": jnp.zeros((4 * D,), jnp.float32),
            "w2": _linear_init(ks[6], 4 * D, D), "b2": jnp.zeros((D,), jnp.float32),
        }
        blocks.append(blk)
    params["blocks"] = blocks
    return params


def gpt_block(x, p, hidden_state, cos, sin, self_lens, cross_lens, n_heads):
    B, T, D = x.shape
    H = n_heads
    d = D // H
    S = hidden_state.shape[1]

    # --- self-attention: LN fused into the QKV matmul, RoPE + masks in-kernel
    qkv = pallas_linear(x, p["w_qkv"], p["b_qkv"],
                        ln=(p["ln1_g"], p["ln1_b"]))              # (B, T, 3D)
    qkv = qkv.reshape(B, T, 3 * H, d).transpose(0, 2, 1, 3)        # (B, 3H, T, d)
    attn = pallas_mha(qkv, qkv, self_lens, n_heads=H,
                      q_off=0, k_off=H, v_off=2 * H,
                      causal=True, cos=cos, sin=sin)               # (B, H, T, d)
    attn = attn.transpose(0, 2, 1, 3).reshape(B, T, D)
    x = pallas_linear(attn, p["wo"], p["bo"], residual=x)

    # --- cross-attention to encoder hidden_state (fused K/V projection) ------
    q = pallas_linear(x, p["cwq"], p["cbq"], ln=(p["ln2_g"], p["ln2_b"]))
    kv = pallas_linear(hidden_state, p["cw_kv"], p["cb_kv"])       # (B, S, 2D)
    qh = q.reshape(B, T, H, d).transpose(0, 2, 1, 3)               # (B, H, T, d)
    kvh = kv.reshape(B, S, 2 * H, d).transpose(0, 2, 1, 3)          # (B, 2H, S, d)
    attn = pallas_mha(qh, kvh, cross_lens, n_heads=H,
                      q_off=0, k_off=0, v_off=H, causal=False)
    attn = attn.transpose(0, 2, 1, 3).reshape(B, T, D)
    x = pallas_linear(attn, p["cwo"], p["cbo"], residual=x)

    # --- MLP: LN fused into w1 prologue, GELU in w1 epilogue, residual in w2 -
    h = pallas_linear(x, p["w1"], p["b1"], ln=(p["ln3_g"], p["ln3_b"]),
                      activation="gelu")
    x = pallas_linear(h, p["w2"], p["b2"], residual=x)
    return x


@functools.partial(jax.jit, static_argnames=("n_heads",))
def _gpt_forward_jit(params, tokens, cond, hidden_state, total_lengths,
                     enc_lengths, *, n_heads):
    x = jnp.take(params["embedding"], tokens, axis=0)              # (B, mel, D) bf16
    x = jnp.concatenate([x, cond.astype(jnp.bfloat16)], axis=1)    # (B, T, D)
    T = x.shape[1]
    D = x.shape[2]
    d = D // n_heads
    cos, sin = rope_cos_sin(T, d)                                  # per-head RoPE
    hs = hidden_state.astype(jnp.bfloat16)
    for blk in params["blocks"]:
        x = gpt_block(x, blk, hs, cos, sin, total_lengths, enc_lengths, n_heads)
    return x.astype(jnp.float32)


def gpt_forward(params, tokens, cond, hidden_state, lengths=None,
                encoder_padding_mask=None, *, n_heads):
    B, mel_len = tokens.shape
    cond_len = cond.shape[1]
    total_len = mel_len + cond_len
    enc_len = hidden_state.shape[1]

    if lengths is not None:
        total_lengths = lengths.astype(jnp.int32) + cond_len
    else:
        total_lengths = jnp.full((B,), total_len, dtype=jnp.int32)
    if encoder_padding_mask is not None:                           # True = padded
        enc_lengths = jnp.sum(jnp.logical_not(encoder_padding_mask),
                              axis=-1).astype(jnp.int32)
    else:
        enc_lengths = jnp.full((B,), enc_len, dtype=jnp.int32)

    return _gpt_forward_jit(params, tokens, cond, hidden_state,
                            total_lengths, enc_lengths, n_heads=n_heads)


# ----------------------------------------------------------------------------
# Main
# ----------------------------------------------------------------------------

if __name__ == "__main__":
    n_tokens, n_blocks, model_dim, n_heads = 64, 2, 32, 4
    B, mel_len, cond_len, enc_len = 2, 8, 4, 6

    key = jax.random.PRNGKey(0)
    key, k_tok, k_cond, k_hid, k_param = jax.random.split(key, 5)

    tokens = jax.random.randint(k_tok, (B, mel_len), 0, n_tokens, dtype=jnp.int32)
    cond = jax.random.normal(k_cond, (B, cond_len, model_dim), dtype=jnp.float32)
    hidden_state = jax.random.normal(k_hid, (B, enc_len, model_dim),
                                     dtype=jnp.float32)
    lengths = jnp.array([mel_len, mel_len - 2], dtype=jnp.int32)
    enc_positions = jnp.arange(enc_len)[None, :]
    enc_valid = jnp.array([enc_len, enc_len - 1], dtype=jnp.int32)[:, None]
    encoder_padding_mask = enc_positions >= enc_valid              # True = padded

    params = init_gpt_params(k_param, n_tokens, n_blocks, model_dim)

    out = gpt_forward(params, tokens, cond, hidden_state, lengths,
                      encoder_padding_mask, n_heads=n_heads)
    out = jax.block_until_ready(out)
    assert out.shape == (B, mel_len + cond_len, model_dim)
    assert bool(jnp.all(jnp.isfinite(out)))
    print("KERNEL_OK")
</pallas_src>

<mosaic_0001>
module attributes {stable_mosaic.version = 11 : i64} {
  func.func @_linear_kernel(%arg0: i32, %arg1: i32, %arg2: i32, %arg3: memref<24x32xbf16, #tpu.memory_space<vmem>>, %arg4: memref<32x96xbf16, #tpu.memory_space<vmem>>, %arg5: memref<1x96xf32, #tpu.memory_space<vmem>>, %arg6: memref<1x32xf32, #tpu.memory_space<vmem>>, %arg7: memref<1x32xf32, #tpu.memory_space<vmem>>, %arg8: memref<24x96xbf16, #tpu.memory_space<vmem>>, %arg9: memref<24x96xf32, #tpu.memory_space<vmem>>) attributes {dimension_semantics = [#tpu.dimension_semantics<parallel>, #tpu.dimension_semantics<parallel>, #tpu.dimension_semantics<arbitrary>], iteration_bounds = array<i64: 1, 1, 1>, scalar_prefetch = 0 : i64, scratch_operands = 1 : i64, tpu.core_type = #tpu.core_type<tc>, window_params = [{transform_indices = @transform_0, window_bounds = array<i64: 24, 32>}, {transform_indices = @transform_1, window_bounds = array<i64: 32, 96>}, {transform_indices = @transform_2, window_bounds = array<i64: 1, 96>}, {transform_indices = @transform_3, window_bounds = array<i64: 1, 32>}, {transform_indices = @transform_4, window_bounds = array<i64: 1, 32>}, {transform_indices = @transform_5, window_bounds = array<i64: 24, 96>}]} {
    %c0_i32 = arith.constant 0 : i32
    %0 = arith.cmpi eq, %arg2, %c0_i32 : i32
    %1 = arith.extui %0 : i1 to i32
    %c0_i32_0 = arith.constant 0 : i32
    %2 = arith.cmpi ne, %1, %c0_i32_0 : i32
    scf.if %2 {
      %cst_19 = arith.constant 0.000000e+00 : f32
      %38 = vector.broadcast %cst_19 : f32 to vector<24x96xf32>
      %c0_20 = arith.constant 0 : index
      %c0_21 = arith.constant 0 : index
      %39 = vector.load %arg9[%c0_20, %c0_21] : memref<24x96xf32, #tpu.memory_space<vmem>>, vector<24x96xf32>
      tpu.vector_store %arg9[%c0_20, %c0_21], %38 {strides = array<i32>} : memref<24x96xf32, #tpu.memory_space<vmem>>, vector<24x96xf32>,
    } else {
    }
    %c0 = arith.constant 0 : index
    %c0_1 = arith.constant 0 : index
    %3 = vector.load %arg3[%c0, %c0_1] : memref<24x32xbf16, #tpu.memory_space<vmem>>, vector<24x32xbf16>
    %4 = arith.extf %3 : vector<24x32xbf16> to vector<24x32xf32>
    %cst = arith.constant dense<0.000000e+00> : vector<24xf32>
    %5 = vector.multi_reduction <add>, %4, %cst [1] : vector<24x32xf32> to vector<24xf32>
    %6 = vector.shape_cast %5 : vector<24xf32> to vector<24x1xf32>
    %cst_2 = arith.constant 3.200000e+01 : f32
    %7 = vector.broadcast %cst_2 : f32 to vector<24x1xf32>
    %8 = arith.divf %6, %7 : vector<24x1xf32>
    %9 = vector.broadcast %8 : vector<24x1xf32> to vector<24x32xf32>
    %10 = arith.subf %4, %9 : vector<24x32xf32>
    %11 = arith.mulf %10, %10 : vector<24x32xf32>
    %cst_3 = arith.constant dense<0.000000e+00> : vector<24xf32>
    %12 = vector.multi_reduction <add>, %11, %cst_3 [1] : vector<24x32xf32> to vector<24xf32>
    %13 = vector.shape_cast %12 : vector<24xf32> to vector<24x1xf32>
    %cst_4 = arith.constant 3.200000e+01 : f32
    %14 = vector.broadcast %cst_4 : f32 to vector<24x1xf32>
    %15 = arith.divf %13, %14 : vector<24x1xf32>
    %16 = vector.broadcast %8 : vector<24x1xf32> to vector<24x32xf32>
    %17 = arith.subf %4, %16 : vector<24x32xf32>
    %cst_5 = arith.constant 9.99999974E-6 : f32
    %18 = vector.broadcast %cst_5 : f32 to vector<24x1xf32>
    %19 = arith.addf %15, %18 : vector<24x1xf32>
    %20 = math.rsqrt %19 : vector<24x1xf32>
    %21 = vector.broadcast %20 : vector<24x1xf32> to vector<24x32xf32>
    %22 = arith.mulf %17, %21 : vector<24x32xf32>
    %c0_6 = arith.constant 0 : index
    %c0_7 = arith.constant 0 : index
    %23 = vector.load %arg6[%c0_6, %c0_7] : memref<1x32xf32, #tpu.memory_space<vmem>>, vector<1x32xf32>
    %24 = vector.broadcast %23 : vector<1x32xf32> to vector<24x32xf32>
    %25 = arith.mulf %22, %24 : vector<24x32xf32>
    %c0_8 = arith.constant 0 : index
    %c0_9 = arith.constant 0 : index
    %26 = vector.load %arg7[%c0_8, %c0_9] : memref<1x32xf32, #tpu.memory_space<vmem>>, vector<1x32xf32>
    %27 = vector.broadcast %26 : vector<1x32xf32> to vector<24x32xf32>
    %28 = arith.addf %25, %27 : vector<24x32xf32>
    %29 = arith.truncf %28 : vector<24x32xf32> to vector<24x32xbf16>
    %c0_10 = arith.constant 0 : index
    %c0_11 = arith.constant 0 : index
    %30 = vector.load %arg9[%c0_10, %c0_11] : memref<24x96xf32, #tpu.memory_space<vmem>>, vector<24x96xf32>
    %c0_12 = arith.constant 0 : index
    %c0_13 = arith.constant 0 : index
    %31 = vector.load %arg4[%c0_12, %c0_13] : memref<32x96xbf16, #tpu.memory_space<vmem>>, vector<32x96xbf16>
    %cst_14 = arith.constant dense<0.000000e+00> : vector<24x96xf32>
    %32 = tpu.matmul %29, %31, %cst_14 {dimension_numbers = #tpu.dot_dimension_numbers<[1], [0], [0], [1], [0, 0, 1, 1], [], []>} : vector<24x32xbf16>, vector<32x96xbf16>, vector<24x96xf32> -> vector<24x96xf32>
    %33 = arith.addf %30, %32 : vector<24x96xf32>
    %c0_15 = arith.constant 0 : index
    %c0_16 = arith.constant 0 : index
    %34 = vector.load %arg9[%c0_15, %c0_16] : memref<24x96xf32, #tpu.memory_space<vmem>>, vector<24x96xf32>
    tpu.vector_store %arg9[%c0_15, %c0_16], %33 {strides = array<i32>} : memref<24x96xf32, #tpu.memory_space<vmem>>, vector<24x96xf32>,
    %c0_i32_17 = arith.constant 0 : i32
    %35 = arith.cmpi eq, %arg2, %c0_i32_17 : i32
    %36 = arith.extui %35 : i1 to i32
    %c0_i32_18 = arith.constant 0 : i32
    %37 = arith.cmpi ne, %36, %c0_i32_18 : i32
    scf.if %37 {
      %c0_19 = arith.constant 0 : index
      %c0_20 = arith.constant 0 : index
      %38 = vector.load %arg9[%c0_19, %c0_20] : memref<24x96xf32, #tpu.memory_space<vmem>>, vector<24x96xf32>
      %c0_21 = arith.constant 0 : index
      %c0_22 = arith.constant 0 : index
      %39 = vector.load %arg5[%c0_21, %c0_22] : memref<1x96xf32, #tpu.memory_space<vmem>>, vector<1x96xf32>
      %40 = vector.broadcast %39 : vector<1x96xf32> to vector<24x96xf32>
      %41 = arith.addf %38, %40 : vector<24x96xf32>
      %42 = arith.truncf %41 : vector<24x96xf32> to vector<24x96xbf16>
      %c0_23 = arith.constant 0 : index
      %c0_24 = arith.constant 0 : index
      %43 = vector.load %arg8[%c0_23, %c0_24] : memref<24x96xbf16, #tpu.memory_space<vmem>>, vector<24x96xbf16>
      tpu.vector_store %arg8[%c0_23, %c0_24], %42 {strides = array<i32>} : memref<24x96xbf16, #tpu.memory_space<vmem>>, vector<24x96xbf16>,
    } else {
    }
    return
  }
  func.func @transform_0(%arg0: i32, %arg1: i32, %arg2: i32) -> (i32, i32) {
    %c0_i32 = arith.constant 0 : i32
    return %arg0, %arg2 : i32, i32
  }
  func.func @transform_1(%arg0: i32, %arg1: i32, %arg2: i32) -> (i32, i32) {
    %c0_i32 = arith.constant 0 : i32
    return %arg2, %arg1 : i32, i32
  }
  func.func @transform_2(%arg0: i32, %arg1: i32, %arg2: i32) -> (i32, i32) {
    %c0_i32 = arith.constant 0 : i32
    %c0_i32_0 = arith.constant 0 : i32
    return %c0_i32, %arg1 : i32, i32
  }
  func.func @transform_3(%arg0: i32, %arg1: i32, %arg2: i32) -> (i32, i32) {
    %c0_i32 = arith.constant 0 : i32
    %c0_i32_0 = arith.constant 0 : i32
    return %c0_i32, %arg2 : i32, i32
  }
  func.func @transform_4(%arg0: i32, %arg1: i32, %arg2: i32) -> (i32, i32) {
    %c0_i32 = arith.constant 0 : i32
    %c0_i32_0 = arith.constant 0 : i32
    return %c0_i32, %arg2 : i32, i32
  }
  func.func @transform_5(%arg0: i32, %arg1: i32, %arg2: i32) -> (i32, i32) {
    %c0_i32 = arith.constant 0 : i32
    return %arg0, %arg1 : i32, i32
  }
}

module attributes {stable_mosaic.version = 11 : i64} {
  func.func @_mha_kernel(%arg0: i32, %arg1: i32, %arg2: i32, %arg3: i32, %arg4: memref<2xi32, #tpu.memory_space<smem>>, %arg5: memref<1x1x12x8xbf16, #tpu.memory_space<vmem>>, %arg6: memref<1x1x12x8xbf16, #tpu.memory_space<vmem>>, %arg7: memref<1x1x12x8xbf16, #tpu.memory_space<vmem>>, %arg8: memref<12x8xf32, #tpu.memory_space<vmem>>, %arg9: memref<12x8xf32, #tpu.memory_space<vmem>>, %arg10: memref<12x8xf32, #tpu.memory_space<vmem>>, %arg11: memref<12x8xf32, #tpu.memory_space<vmem>>, %arg12: memref<8x8xbf16, #tpu.memory_space<vmem>>, %arg13: memref<1x1x12x8xbf16, #tpu.memory_space<vmem>>, %arg14: memref<12x1xf32, #tpu.memory_space<vmem>>, %arg15: memref<12x1xf32, #tpu.memory_space<vmem>>, %arg16: memref<12x8xf32, #tpu.memory_space<vmem>>) attributes {dimension_semantics = [#tpu.dimension_semantics<parallel>, #tpu.dimension_semantics<parallel>, #tpu.dimension_semantics<parallel>, #tpu.dimension_semantics<arbitrary>], iteration_bounds = array<i64: 2, 4, 1, 1>, scalar_prefetch = 1 : i64, scratch_operands = 3 : i64, tpu.core_type = #tpu.core_type<tc>, window_params = [{transform_indices = @transform_0, window_bounds = array<i64: 1, 1, 12, 8>}, {transform_indices = @transform_1, window_bounds = array<i64: 1, 1, 12, 8>}, {transform_indices = @transform_2, window_bounds = array<i64: 1, 1, 12, 8>}, {transform_indices = @transform_3, window_bounds = array<i64: 12, 8>}, {transform_indices = @transform_4, window_bounds = array<i64: 12, 8>}, {transform_indices = @transform_5, window_bounds = array<i64: 12, 8>}, {transform_indices = @transform_6, window_bounds = array<i64: 12, 8>}, {pipeline_mode = #tpu.pipeline_mode<synchronous>, transform_indices = @transform_7, window_bounds = array<i64: 8, 8>}, {transform_indices = @transform_8, window_bounds = array<i64: 1, 1, 12, 8>}]} {
    %c0_i32 = arith.constant 0 : i32
    %0 = arith.cmpi eq, %arg3, %c0_i32 : i32
    %1 = arith.extui %0 : i1 to i32
    %c0_i32_0 = arith.constant 0 : i32
    %2 = arith.cmpi ne, %1, %c0_i32_0 : i32
    scf.if %2 {
      %cst = arith.constant -1.000000e+30 : f32
      %17 = vector.broadcast %cst : f32 to vector<12x1xf32>
      %c0 = arith.constant 0 : index
      %c0_6 = arith.constant 0 : index
      %18 = vector.load %arg14[%c0, %c0_6] : memref<12x1xf32, #tpu.memory_space<vmem>>, vector<12x1xf32>
      tpu.vector_store %arg14[%c0, %c0_6], %17 {strides = array<i32>} : memref<12x1xf32, #tpu.memory_space<vmem>>, vector<12x1xf32>,
      %cst_7 = arith.constant 0.000000e+00 : f32
      %19 = vector.broadcast %cst_7 : f32 to vector<12x1xf32>
      %c0_8 = arith.constant 0 : index
      %c0_9 = arith.constant 0 : index
      %20 = vector.load %arg15[%c0_8, %c0_9] : memref<12x1xf32, #tpu.memory_space<vmem>>, vector<12x1xf32>
      tpu.vector_store %arg15[%c0_8, %c0_9], %19 {strides = array<i32>} : memref<12x1xf32, #tpu.memory_space<vmem>>, vector<12x1xf32>,
      %cst_10 = arith.constant 0.000000e+00 : f32
      %21 = vector.broadcast %cst_10 : f32 to vector<12x8xf32>
      %c0_11 = arith.constant 0 : index
      %c0_12 = arith.constant 0 : index
      %22 = vector.load %arg16[%c0_11, %c0_12] : memref<12x8xf32, #tpu.memory_space<vmem>>, vector<12x8xf32>
      tpu.vector_store %arg16[%c0_11, %c0_12], %21 {strides = array<i32>} : memref<12x8xf32, #tpu.memory_space<vmem>>, vector<12x8xf32>,
    } else {
    }
    %3 = arith.index_cast %arg0 : i32 to index
    %4 = memref.load %arg4[%3] : memref<2xi32, #tpu.memory_space<smem>>
    %c12_i32 = arith.constant 12 : i32
    %5 = arith.muli %arg2, %c12_i32 : i32
    %c12_i32_1 = arith.constant 12 : i32
    %6 = arith.muli %arg3, %c12_i32_1 : i32
    %7 = arith.cmpi slt, %6, %4 : i32
    %c12_i32_2 = arith.constant 12 : i32
    %8 = arith.addi %5, %c12_i32_2 : i32
    %c1_i32 = arith.constant 1 : i32
    %9 = arith.subi %8, %c1_i32 : i32
    %10 = arith.cmpi sle, %6, %9 : i32
    %11 = arith.andi %7, %10 : i1
    %12 = arith.extui %11 : i1 to i32
    %c0_i32_3 = arith.constant 0 : i32
    %13 = arith.cmpi ne, %12, %c0_i32_3 : i32
    scf.if %13 {
      %c0 = arith.constant 0 : index
      %c0_6 = arith.constant 0 : index
      %c0_7 = arith.constant 0 : index
      %c0_8 = arith.constant 0 : index
      %17 = vector.load %arg5[%c0, %c0_6, %c0_7, %c0_8] : memref<1x1x12x8xbf16, #tpu.memory_space<vmem>>, vector<1x1x12x8xbf16>
      %18 = vector.shape_cast %17 : vector<1x1x12x8xbf16> to vector<12x8xbf16>
      %c0_9 = arith.constant 0 : index
      %c0_10 = arith.constant 0 : index
      %19 = vector.load %arg8[%c0_9, %c0_10] : memref<12x8xf32, #tpu.memory_space<vmem>>, vector<12x8xf32>
      %c0_11 = arith.constant 0 : index
      %c0_12 = arith.constant 0 : index
      %20 = vector.load %arg9[%c0_11, %c0_12] : memref<12x8xf32, #tpu.memory_space<vmem>>, vector<12x8xf32>
      %c0_13 = arith.constant 0 : index
      %c0_14 = arith.constant 0 : index
      %21 = vector.load %arg12[%c0_13, %c0_14] : memref<8x8xbf16, #tpu.memory_space<vmem>>, vector<8x8xbf16>
      %22 = arith.extf %18 : vector<12x8xbf16> to vector<12x8xf32>
      %cst = arith.constant dense<0.000000e+00> : vector<12x8xf32>
      %23 = tpu.matmul %18, %21, %cst {dimension_numbers = #tpu.dot_dimension_numbers<[1], [0], [0], [1], [0, 0, 1, 1], [], []>} : vector<12x8xbf16>, vector<8x8xbf16>, vector<12x8xf32> -> vector<12x8xf32>
      %24 = arith.mulf %22, %19 : vector<12x8xf32>
      %25 = arith.mulf %23, %20 : vector<12x8xf32>
      %26 = arith.addf %24, %25 : vector<12x8xf32>
      %27 = arith.truncf %26 : vector<12x8xf32> to vector<12x8xbf16>
      %c0_15 = arith.constant 0 : index
      %c0_16 = arith.constant 0 : index
      %c0_17 = arith.constant 0 : index
      %c0_18 = arith.constant 0 : index
      %28 = vector.load %arg6[%c0_15, %c0_16, %c0_17, %c0_18] : memref<1x1x12x8xbf16, #tpu.memory_space<vmem>>, vector<1x1x12x8xbf16>
      %29 = vector.shape_cast %28 : vector<1x1x12x8xbf16> to vector<12x8xbf16>
      %c0_19 = arith.constant 0 : index
      %c0_20 = arith.constant 0 : index
      %30 = vector.load %arg10[%c0_19, %c0_20] : memref<12x8xf32, #tpu.memory_space<vmem>>, vector<12x8xf32>
      %c0_21 = arith.constant 0 : index
      %c0_22 = arith.constant 0 : index
      %31 = vector.load %arg11[%c0_21, %c0_22] : memref<12x8xf32, #tpu.memory_space<vmem>>, vector<12x8xf32>
      %c0_23 = arith.constant 0 : index
      %c0_24 = arith.constant 0 : index
      %32 = vector.load %arg12[%c0_23, %c0_24] : memref<8x8xbf16, #tpu.memory_space<vmem>>, vector<8x8xbf16>
      %33 = arith.extf %29 : vector<12x8xbf16> to vector<12x8xf32>
      %cst_25 = arith.constant dense<0.000000e+00> : vector<12x8xf32>
      %34 = tpu.matmul %29, %32, %cst_25 {dimension_numbers = #tpu.dot_dimension_numbers<[1], [0], [0], [1], [0, 0, 1, 1], [], []>} : vector<12x8xbf16>, vector<8x8xbf16>, vector<12x8xf32> -> vector<12x8xf32>
      %35 = arith.mulf %33, %30 : vector<12x8xf32>
      %36 = arith.mulf %34, %31 : vector<12x8xf32>
      %37 = arith.addf %35, %36 : vector<12x8xf32>
      %38 = arith.truncf %37 : vector<12x8xf32> to vector<12x8xbf16>
      %cst_26 = arith.constant dense<0.000000e+00> : vector<12x12xf32>
      %39 = tpu.matmul %27, %38, %cst_26 {dimension_numbers = #tpu.dot_dimension_numbers<[1], [1], [0], [0], [0, 0, 1, 0], [], []>} : vector<12x8xbf16>, vector<12x8xbf16>, vector<12x12xf32> -> vector<12x12xf32>
      %cst_27 = arith.constant 0.353553385 : f32
      %40 = vector.broadcast %cst_27 : f32 to vector<12x12xf32>
      %41 = arith.mulf %39, %40 : vector<12x12xf32>
      %42 = tpu.iota {dimensions = array<i32: 1>} : vector<12x12xi32>
      %43 = vector.broadcast %6 : i32 to vector<12x12xi32>
      %44 = arith.addi %43, %42 : vector<12x12xi32>
      %45 = vector.broadcast %4 : i32 to vector<12x12xi32>
      %46 = arith.cmpi slt, %44, %45 : vector<12x12xi32>
      %47 = tpu.iota {dimensions = array<i32: 0>} : vector<12x12xi32>
      %48 = vector.broadcast %5 : i32 to vector<12x12xi32>
      %49 = arith.addi %48, %47 : vector<12x12xi32>
      %50 = arith.cmpi sle, %44, %49 : vector<12x12xi32>
      %51 = arith.andi %46, %50 : vector<12x12xi1>
      %cst_28 = arith.constant -1.000000e+30 : f32
      %52 = vector.broadcast %cst_28 : f32 to vector<12x12xf32>
      %53 = arith.select %51, %41, %52 : vector<12x12xi1>, vector<12x12xf32>
      %c0_29 = arith.constant 0 : index
      %c0_30 = arith.constant 0 : index
      %54 = vector.load %arg14[%c0_29, %c0_30] : memref<12x1xf32, #tpu.memory_space<vmem>>, vector<12x1xf32>
      %cst_31 = arith.constant dense<0xFF800000> : vector<12xf32>
      %55 = vector.multi_reduction <maximumf>, %53, %cst_31 [1] : vector<12x12xf32> to vector<12xf32>
      %56 = vector.shape_cast %55 : vector<12xf32> to vector<12x1xf32>
      %57 = arith.maximumf %54, %56 : vector<12x1xf32>
      %58 = arith.subf %54, %57 : vector<12x1xf32>
      %59 = math.exp %58 : vector<12x1xf32>
      %60 = vector.broadcast %57 : vector<12x1xf32> to vector<12x12xf32>
      %61 = arith.subf %53, %60 : vector<12x12xf32>
      %62 = math.exp %61 : vector<12x12xf32>
      %cst_32 = arith.constant 0.000000e+00 : f32
      %63 = vector.broadcast %cst_32 : f32 to vector<12x12xf32>
      %64 = arith.select %51, %62, %63 : vector<12x12xi1>, vector<12x12xf32>
      %c0_33 = arith.constant 0 : index
      %c0_34 = arith.constant 0 : index
      %65 = vector.load %arg15[%c0_33, %c0_34] : memref<12x1xf32, #tpu.memory_space<vmem>>, vector<12x1xf32>
      %66 = arith.mulf %59, %65 : vector<12x1xf32>
      %cst_35 = arith.constant dense<0.000000e+00> : vector<12xf32>
      %67 = vector.multi_reduction <add>, %64, %cst_35 [1] : vector<12x12xf32> to vector<12xf32>
      %68 = vector.shape_cast %67 : vector<12xf32> to vector<12x1xf32>
      %69 = arith.addf %66, %68 : vector<12x1xf32>
      %c0_36 = arith.constant 0 : index
      %c0_37 = arith.constant 0 : index
      %70 = vector.load %arg15[%c0_36, %c0_37] : memref<12x1xf32, #tpu.memory_space<vmem>>, vector<12x1xf32>
      tpu.vector_store %arg15[%c0_36, %c0_37], %69 {strides = array<i32>} : memref<12x1xf32, #tpu.memory_space<vmem>>, vector<12x1xf32>,
      %c0_38 = arith.constant 0 : index
      %c0_39 = arith.constant 0 : index
      %71 = vector.load %arg16[%c0_38, %c0_39] : memref<12x8xf32, #tpu.memory_space<vmem>>, vector<12x8xf32>
      %72 = vector.broadcast %59 : vector<12x1xf32> to vector<12x8xf32>
      %73 = arith.mulf %72, %71 : vector<12x8xf32>
      %74 = arith.truncf %64 : vector<12x12xf32> to vector<12x12xbf16>
      %c0_40 = arith.constant 0 : index
      %c0_41 = arith.constant 0 : index
      %c0_42 = arith.constant 0 : index
      %c0_43 = arith.constant 0 : index
      %75 = vector.load %arg7[%c0_40, %c0_41, %c0_42, %c0_43] : memref<1x1x12x8xbf16, #tpu.memory_space<vmem>>, vector<1x1x12x8xbf16>
      %76 = vector.shape_cast %75 : vector<1x1x12x8xbf16> to vector<12x8xbf16>
      %cst_44 = arith.constant dense<0.000000e+00> : vector<12x8xf32>
      %77 = tpu.matmul %74, %76, %cst_44 {dimension_numbers = #tpu.dot_dimension_numbers<[1], [0], [0], [1], [0, 0, 1, 1], [], []>} : vector<12x12xbf16>, vector<12x8xbf16>, vector<12x8xf32> -> vector<12x8xf32>
      %78 = arith.addf %73, %77 : vector<12x8xf32>
      %c0_45 = arith.constant 0 : index
      %c0_46 = arith.constant 0 : index
      %79 = vector.load %arg16[%c0_45, %c0_46] : memref<12x8xf32, #tpu.memory_space<vmem>>, vector<12x8xf32>
      tpu.vector_store %arg16[%c0_45, %c0_46], %78 {strides = array<i32>} : memref<12x8xf32, #tpu.memory_space<vmem>>, vector<12x8xf32>,
      %c0_47 = arith.constant 0 : index
      %c0_48 = arith.constant 0 : index
      %80 = vector.load %arg14[%c0_47, %c0_48] : memref<12x1xf32, #tpu.memory_space<vmem>>, vector<12x1xf32>
      tpu.vector_store %arg14[%c0_47, %c0_48], %57 {strides = array<i32>} : memref<12x1xf32, #tpu.memory_space<vmem>>, vector<12x1xf32>,
    } else {
    }
    %c0_i32_4 = arith.constant 0 : i32
    %14 = arith.cmpi eq, %arg3, %c0_i32_4 : i32
    %15 = arith.extui %14 : i1 to i32
    %c0_i32_5 = arith.constant 0 : i32
    %16 = arith.cmpi ne, %15, %c0_i32_5 : i32
    scf.if %16 {
      %c0 = arith.constant 0 : index
      %c0_6 = arith.constant 0 : index
      %17 = vector.load %arg15[%c0, %c0_6] : memref<12x1xf32, #tpu.memory_space<vmem>>, vector<12x1xf32>
      %cst = arith.constant 1.000000e-30 : f32
      %18 = vector.broadcast %cst : f32 to vector<12x1xf32>
      %19 = arith.maximumf %17, %18 : vector<12x1xf32>
      %c0_7 = arith.constant 0 : index
      %c0_8 = arith.constant 0 : index
      %20 = vector.load %arg16[%c0_7, %c0_8] : memref<12x8xf32, #tpu.memory_space<vmem>>, vector<12x8xf32>
      %21 = tpu.reciprocal %19 {approx = true} : vector<12x1xf32> -> vector<12x1xf32>
      %22 = vector.broadcast %21 : vector<12x1xf32> to vector<12x8xf32>
      %23 = arith.mulf %20, %22 : vector<12x8xf32>
      %24 = arith.truncf %23 : vector<12x8xf32> to vector<12x8xbf16>
      %c0_9 = arith.constant 0 : index
      %c0_10 = arith.constant 0 : index
      %c0_11 = arith.constant 0 : index
      %c0_12 = arith.constant 0 : index
      %25 = vector.load %arg13[%c0_9, %c0_10, %c0_11, %c0_12] : memref<1x1x12x8xbf16, #tpu.memory_space<vmem>>, vector<1x1x12x8xbf16>
      %26 = vector.shape_cast %25 : vector<1x1x12x8xbf16> to vector<12x8xbf16>
      %27 = vector.shape_cast %24 : vector<12x8xbf16> to vector<1x1x12x8xbf16>
      tpu.vector_store %arg13[%c0_9, %c0_10, %c0_11, %c0_12], %27 {strides = array<i32>} : memref<1x1x12x8xbf16, #tpu.memory_space<vmem>>, vector<1x1x12x8xbf16>,
    } else {
    }
    return
  }
  func.func @transform_0(%arg0: i32, %arg1: i32, %arg2: i32, %arg3: i32, %arg4: memref<2xi32, #tpu.memory_space<smem>>) -> (i32, i32, i32, i32) {
    %c0_i32 = arith.constant 0 : i32
    %0 = arith.addi %c0_i32, %arg1 : i32
    %c0_i32_0 = arith.constant 0 : i32
    %c0_i32_1 = arith.constant 0 : i32
    return %arg0, %0, %arg2, %c0_i32_0 : i32, i32, i32, i32
  }
  func.func @transform_1(%arg0: i32, %arg1: i32, %arg2: i32, %arg3: i32, %arg4: memref<2xi32, #tpu.memory_space<smem>>) -> (i32, i32, i32, i32) {
    %c4_i32 = arith.constant 4 : i32
    %0 = arith.addi %c4_i32, %arg1 : i32
    %c0_i32 = arith.constant 0 : i32
    %c0_i32_0 = arith.constant 0 : i32
    return %arg0, %0, %arg3, %c0_i32 : i32, i32, i32, i32
  }
  func.func @transform_2(%arg0: i32, %arg1: i32, %arg2: i32, %arg3: i32, %arg4: memref<2xi32, #tpu.memory_space<smem>>) -> (i32, i32, i32, i32) {
    %c8_i32 = arith.constant 8 : i32
    %0 = arith.addi %c8_i32, %arg1 : i32
    %c0_i32 = arith.constant 0 : i32
    %c0_i32_0 = arith.constant 0 : i32
    return %arg0, %0, %arg3, %c0_i32 : i32, i32, i32, i32
  }
  func.func @transform_3(%arg0: i32, %arg1: i32, %arg2: i32, %arg3: i32, %arg4: memref<2xi32, #tpu.memory_space<smem>>) -> (i32, i32) {
    %c0_i32 = arith.constant 0 : i32
    %c0_i32_0 = arith.constant 0 : i32
    return %arg2, %c0_i32 : i32, i32
  }
  func.func @transform_4(%arg0: i32, %arg1: i32, %arg2: i32, %arg3: i32, %arg4: memref<2xi32, #tpu.memory_space<smem>>) -> (i32, i32) {
    %c0_i32 = arith.constant 0 : i32
    %c0_i32_0 = arith.constant 0 : i32
    return %arg2, %c0_i32 : i32, i32
  }
  func.func @transform_5(%arg0: i32, %arg1: i32, %arg2: i32, %arg3: i32, %arg4: memref<2xi32, #tpu.memory_space<smem>>) -> (i32, i32) {
    %c0_i32 = arith.constant 0 : i32
    %c0_i32_0 = arith.constant 0 : i32
    return %arg3, %c0_i32 : i32, i32
  }
  func.func @transform_6(%arg0: i32, %arg1: i32, %arg2: i32, %arg3: i32, %arg4: memref<2xi32, #tpu.memory_space<smem>>) -> (i32, i32) {
    %c0_i32 = arith.constant 0 : i32
    %c0_i32_0 = arith.constant 0 : i32
    return %arg3, %c0_i32 : i32, i32
  }
  func.func @transform_7(%arg0: i32, %arg1: i32, %arg2: i32, %arg3: i32, %arg4: memref<2xi32, #tpu.memory_space<smem>>) -> (i32, i32) {
    %c0_i32 = arith.constant 0 : i32
    %c0_i32_0 = arith.constant 0 : i32
    %c0_i32_1 = arith.constant 0 : i32
    return %c0_i32, %c0_i32_0 : i32, i32
  }
  func.func @transform_8(%arg0: i32, %arg1: i32, %arg2: i32, %arg3: i32, %arg4: memref<2xi32, #tpu.memory_space<smem>>) -> (i32, i32, i32, i32) {
    %c0_i32 = arith.constant 0 : i32
    %c0_i32_0 = arith.constant 0 : i32
    return %arg0, %arg1, %arg2, %c0_i32 : i32, i32, i32, i32
  }
}

module attributes {stable_mosaic.version = 11 : i64} {
  func.func @_linear_kernel(%arg0: i32, %arg1: i32, %arg2: i32, %arg3: memref<12x32xbf16, #tpu.memory_space<vmem>>, %arg4: memref<32x64xbf16, #tpu.memory_space<vmem>>, %arg5: memref<1x64xf32, #tpu.memory_space<vmem>>, %arg6: memref<12x64xbf16, #tpu.memory_space<vmem>>, %arg7: memref<12x64xf32, #tpu.memory_space<vmem>>) attributes {dimension_semantics = [#tpu.dimension_semantics<parallel>, #tpu.dimension_semantics<parallel>, #tpu.dimension_semantics<arbitrary>], iteration_bounds = array<i64: 1, 1, 1>, scalar_prefetch = 0 : i64, scratch_operands = 1 : i64, tpu.core_type = #tpu.core_type<tc>, window_params = [{transform_indices = @transform_0, window_bounds = array<i64: 12, 32>}, {transform_indices = @transform_1, window_bounds = array<i64: 32, 64>}, {transform_indices = @transform_2, window_bounds = array<i64: 1, 64>}, {transform_indices = @transform_3, window_bounds = array<i64: 12, 64>}]} {
    %c0_i32 = arith.constant 0 : i32
    %0 = arith.cmpi eq, %arg2, %c0_i32 : i32
    %1 = arith.extui %0 : i1 to i32
    %c0_i32_0 = arith.constant 0 : i32
    %2 = arith.cmpi ne, %1, %c0_i32_0 : i32
    scf.if %2 {
      %cst_10 = arith.constant 0.000000e+00 : f32
      %12 = vector.broadcast %cst_10 : f32 to vector<12x64xf32>
      %c0_11 = arith.constant 0 : index
      %c0_12 = arith.constant 0 : index
      %13 = vector.load %arg7[%c0_11, %c0_12] : memref<12x64xf32, #tpu.memory_space<vmem>>, vector<12x64xf32>
      tpu.vector_store %arg7[%c0_11, %c0_12], %12 {strides = array<i32>} : memref<12x64xf32, #tpu.memory_space<vmem>>, vector<12x64xf32>,
    } else {
    }
    %c0 = arith.constant 0 : index
    %c0_1 = arith.constant 0 : index
    %3 = vector.load %arg3[%c0, %c0_1] : memref<12x32xbf16, #tpu.memory_space<vmem>>, vector<12x32xbf16>
    %c0_2 = arith.constant 0 : index
    %c0_3 = arith.constant 0 : index
    %4 = vector.load %arg7[%c0_2, %c0_3] : memref<12x64xf32, #tpu.memory_space<vmem>>, vector<12x64xf32>
    %c0_4 = arith.constant 0 : index
    %c0_5 = arith.constant 0 : index
    %5 = vector.load %arg4[%c0_4, %c0_5] : memref<32x64xbf16, #tpu.memory_space<vmem>>, vector<32x64xbf16>
    %cst = arith.constant dense<0.000000e+00> : vector<12x64xf32>
    %6 = tpu.matmul %3, %5, %cst {dimension_numbers = #tpu.dot_dimension_numbers<[1], [0], [0], [1], [0, 0, 1, 1], [], []>} : vector<12x32xbf16>, vector<32x64xbf16>, vector<12x64xf32> -> vector<12x64xf32>
    %7 = arith.addf %4, %6 : vector<12x64xf32>
    %c0_6 = arith.constant 0 : index
    %c0_7 = arith.constant 0 : index
    %8 = vector.load %arg7[%c0_6, %c0_7] : memref<12x64xf32, #tpu.memory_space<vmem>>, vector<12x64xf32>
    tpu.vector_store %arg7[%c0_6, %c0_7], %7 {strides = array<i32>} : memref<12x64xf32, #tpu.memory_space<vmem>>, vector<12x64xf32>,
    %c0_i32_8 = arith.constant 0 : i32
    %9 = arith.cmpi eq, %arg2, %c0_i32_8 : i32
    %10 = arith.extui %9 : i1 to i32
    %c0_i32_9 = arith.constant 0 : i32
    %11 = arith.cmpi ne, %10, %c0_i32_9 : i32
    scf.if %11 {
      %c0_10 = arith.constant 0 : index
      %c0_11 = arith.constant 0 : index
      %12 = vector.load %arg7[%c0_10, %c0_11] : memref<12x64xf32, #tpu.memory_space<vmem>>, vector<12x64xf32>
      %c0_12 = arith.constant 0 : index
      %c0_13 = arith.constant 0 : index
      %13 = vector.load %arg5[%c0_12, %c0_13] : memref<1x64xf32, #tpu.memory_space<vmem>>, vector<1x64xf32>
      %14 = vector.broadcast %13 : vector<1x64xf32> to vector<12x64xf32>
      %15 = arith.addf %12, %14 : vector<12x64xf32>
      %16 = arith.truncf %15 : vector<12x64xf32> to vector<12x64xbf16>
      %c0_14 = arith.constant 0 : index
      %c0_15 = arith.constant 0 : index
      %17 = vector.load %arg6[%c0_14, %c0_15] : memref<12x64xbf16, #tpu.memory_space<vmem>>, vector<12x64xbf16>
      tpu.vector_store %arg6[%c0_14, %c0_15], %16 {strides = array<i32>} : memref<12x64xbf16, #tpu.memory_space<vmem>>, vector<12x64xbf16>,
    } else {
    }
    return
  }
  func.func @transform_0(%arg0: i32, %arg1: i32, %arg2: i32) -> (i32, i32) {
    %c0_i32 = arith.constant 0 : i32
    return %arg0, %arg2 : i32, i32
  }
  func.func @transform_1(%arg0: i32, %arg1: i32, %arg2: i32) -> (i32, i32) {
    %c0_i32 = arith.constant 0 : i32
    return %arg2, %arg1 : i32, i32
  }
  func.func @transform_2(%arg0: i32, %arg1: i32, %arg2: i32) -> (i32, i32) {
    %c0_i32 = arith.constant 0 : i32
    %c0_i32_0 = arith.constant 0 : i32
    return %c0_i32, %arg1 : i32, i32
  }
  func.func @transform_3(%arg0: i32, %arg1: i32, %arg2: i32) -> (i32, i32) {
    %c0_i32 = arith.constant 0 : i32
    return %arg0, %arg1 : i32, i32
  }
}

module attributes {stable_mosaic.version = 11 : i64} {
  func.func @_linear_kernel(%arg0: i32, %arg1: i32, %arg2: i32, %arg3: memref<24x32xbf16, #tpu.memory_space<vmem>>, %arg4: memref<32x32xbf16, #tpu.memory_space<vmem>>, %arg5: memref<1x32xf32, #tpu.memory_space<vmem>>, %arg6: memref<24x32xbf16, #tpu.memory_space<vmem>>, %arg7: memref<24x32xbf16, #tpu.memory_space<vmem>>, %arg8: memref<24x32xf32, #tpu.memory_space<vmem>>) attributes {dimension_semantics = [#tpu.dimension_semantics<parallel>, #tpu.dimension_semantics<parallel>, #tpu.dimension_semantics<arbitrary>], iteration_bounds = array<i64: 1, 1, 1>, scalar_prefetch = 0 : i64, scratch_operands = 1 : i64, tpu.core_type = #tpu.core_type<tc>, window_params = [{transform_indices = @transform_0, window_bounds = array<i64: 24, 32>}, {transform_indices = @transform_1, window_bounds = array<i64: 32, 32>}, {transform_indices = @transform_2, window_bounds = array<i64: 1, 32>}, {transform_indices = @transform_3, window_bounds = array<i64: 24, 32>}, {transform_indices = @transform_4, window_bounds = array<i64: 24, 32>}]} {
    %c0_i32 = arith.constant 0 : i32
    %0 = arith.cmpi eq, %arg2, %c0_i32 : i32
    %1 = arith.extui %0 : i1 to i32
    %c0_i32_0 = arith.constant 0 : i32
    %2 = arith.cmpi ne, %1, %c0_i32_0 : i32
    scf.if %2 {
      %cst_10 = arith.constant 0.000000e+00 : f32
      %12 = vector.broadcast %cst_10 : f32 to vector<24x32xf32>
      %c0_11 = arith.constant 0 : index
      %c0_12 = arith.constant 0 : index
      %13 = vector.load %arg8[%c0_11, %c0_12] : memref<24x32xf32, #tpu.memory_space<vmem>>, vector<24x32xf32>
      tpu.vector_store %arg8[%c0_11, %c0_12], %12 {strides = array<i32>} : memref<24x32xf32, #tpu.memory_space<vmem>>, vector<24x32xf32>,
    } else {
    }
    %c0 = arith.constant 0 : index
    %c0_1 = arith.constant 0 : index
    %3 = vector.load %arg3[%c0, %c0_1] : memref<24x32xbf16, #tpu.memory_space<vmem>>, vector<24x32xbf16>
    %c0_2 = arith.constant 0 : index
    %c0_3 = arith.constant 0 : index
    %4 = vector.load %arg8[%c0_2, %c0_3] : memref<24x32xf32, #tpu.memory_space<vmem>>, vector<24x32xf32>
    %c0_4 = arith.constant 0 : index
    %c0_5 = arith.constant 0 : index
    %5 = vector.load %arg4[%c0_4, %c0_5] : memref<32x32xbf16, #tpu.memory_space<vmem>>, vector<32x32xbf16>
    %cst = arith.constant dense<0.000000e+00> : vector<24x32xf32>
    %6 = tpu.matmul %3, %5, %cst {dimension_numbers = #tpu.dot_dimension_numbers<[1], [0], [0], [1], [0, 0, 1, 1], [], []>} : vector<24x32xbf16>, vector<32x32xbf16>, vector<24x32xf32> -> vector<24x32xf32>
    %7 = arith.addf %4, %6 : vector<24x32xf32>
    %c0_6 = arith.constant 0 : index
    %c0_7 = arith.constant 0 : index
    %8 = vector.load %arg8[%c0_6, %c0_7] : memref<24x32xf32, #tpu.memory_space<vmem>>, vector<24x32xf32>
    tpu.vector_store %arg8[%c0_6, %c0_7], %7 {strides = array<i32>} : memref<24x32xf32, #tpu.memory_space<vmem>>, vector<24x32xf32>,
    %c0_i32_8 = arith.constant 0 : i32
    %9 = arith.cmpi eq, %arg2, %c0_i32_8 : i32
    %10 = arith.extui %9 : i1 to i32
    %c0_i32_9 = arith.constant 0 : i32
    %11 = arith.cmpi ne, %10, %c0_i32_9 : i32
    scf.if %11 {
      %c0_10 = arith.constant 0 : index
      %c0_11 = arith.constant 0 : index
      %12 = vector.load %arg8[%c0_10, %c0_11] : memref<24x32xf32, #tpu.memory_space<vmem>>, vector<24x32xf32>
      %c0_12 = arith.constant 0 : index
      %c0_13 = arith.constant 0 : index
      %13 = vector.load %arg5[%c0_12, %c0_13] : memref<1x32xf32, #tpu.memory_space<vmem>>, vector<1x32xf32>
      %14 = vector.broadcast %13 : vector<1x32xf32> to vector<24x32xf32>
      %15 = arith.addf %12, %14 : vector<24x32xf32>
      %c0_14 = arith.constant 0 : index
      %c0_15 = arith.constant 0 : index
      %16 = vector.load %arg6[%c0_14, %c0_15] : memref<24x32xbf16, #tpu.memory_space<vmem>>, vector<24x32xbf16>
      %17 = arith.extf %16 : vector<24x32xbf16> to vector<24x32xf32>
      %18 = arith.addf %15, %17 : vector<24x32xf32>
      %19 = arith.truncf %18 : vector<24x32xf32> to vector<24x32xbf16>
      %c0_16 = arith.constant 0 : index
      %c0_17 = arith.constant 0 : index
      %20 = vector.load %arg7[%c0_16, %c0_17] : memref<24x32xbf16, #tpu.memory_space<vmem>>, vector<24x32xbf16>
      tpu.vector_store %arg7[%c0_16, %c0_17], %19 {strides = array<i32>} : memref<24x32xbf16, #tpu.memory_space<vmem>>, vector<24x32xbf16>,
    } else {
    }
    return
  }
  func.func @transform_0(%arg0: i32, %arg1: i32, %arg2: i32) -> (i32, i32) {
    %c0_i32 = arith.constant 0 : i32
    return %arg0, %arg2 : i32, i32
  }
  func.func @transform_1(%arg0: i32, %arg1: i32, %arg2: i32) -> (i32, i32) {
    %c0_i32 = arith.constant 0 : i32
    return %arg2, %arg1 : i32, i32
  }
  func.func @transform_2(%arg0: i32, %arg1: i32, %arg2: i32) -> (i32, i32) {
    %c0_i32 = arith.constant 0 : i32
    %c0_i32_0 = arith.constant 0 : i32
    return %c0_i32, %arg1 : i32, i32
  }
  func.func @transform_3(%arg0: i32, %arg1: i32, %arg2: i32) -> (i32, i32) {
    %c0_i32 = arith.constant 0 : i32
    return %arg0, %arg1 : i32, i32
  }
  func.func @transform_4(%arg0: i32, %arg1: i32, %arg2: i32) -> (i32, i32) {
    %c0_i32 = arith.constant 0 : i32
    return %arg0, %arg1 : i32, i32
  }
}

module attributes {stable_mosaic.version = 11 : i64} {
  func.func @_linear_kernel(%arg0: i32, %arg1: i32, %arg2: i32, %arg3: memref<24x32xbf16, #tpu.memory_space<vmem>>, %arg4: memref<32x32xbf16, #tpu.memory_space<vmem>>, %arg5: memref<1x32xf32, #tpu.memory_space<vmem>>, %arg6: memref<1x32xf32, #tpu.memory_space<vmem>>, %arg7: memref<1x32xf32, #tpu.memory_space<vmem>>, %arg8: memref<24x32xbf16, #tpu.memory_space<vmem>>, %arg9: memref<24x32xf32, #tpu.memory_space<vmem>>) attributes {dimension_semantics = [#tpu.dimension_semantics<parallel>, #tpu.dimension_semantics<parallel>, #tpu.dimension_semantics<arbitrary>], iteration_bounds = array<i64: 1, 1, 1>, scalar_prefetch = 0 : i64, scratch_operands = 1 : i64, tpu.core_type = #tpu.core_type<tc>, window_params = [{transform_indices = @transform_0, window_bounds = array<i64: 24, 32>}, {transform_indices = @transform_1, window_bounds = array<i64: 32, 32>}, {transform_indices = @transform_2, window_bounds = array<i64: 1, 32>}, {transform_indices = @transform_3, window_bounds = array<i64: 1, 32>}, {transform_indices = @transform_4, window_bounds = array<i64: 1, 32>}, {transform_indices = @transform_5, window_bounds = array<i64: 24, 32>}]} {
    %c0_i32 = arith.constant 0 : i32
    %0 = arith.cmpi eq, %arg2, %c0_i32 : i32
    %1 = arith.extui %0 : i1 to i32
    %c0_i32_0 = arith.constant 0 : i32
    %2 = arith.cmpi ne, %1, %c0_i32_0 : i32
    scf.if %2 {
      %cst_19 = arith.constant 0.000000e+00 : f32
      %38 = vector.broadcast %cst_19 : f32 to vector<24x32xf32>
      %c0_20 = arith.constant 0 : index
      %c0_21 = arith.constant 0 : index
      %39 = vector.load %arg9[%c0_20, %c0_21] : memref<24x32xf32, #tpu.memory_space<vmem>>, vector<24x32xf32>
      tpu.vector_store %arg9[%c0_20, %c0_21], %38 {strides = array<i32>} : memref<24x32xf32, #tpu.memory_space<vmem>>, vector<24x32xf32>,
    } else {
    }
    %c0 = arith.constant 0 : index
    %c0_1 = arith.constant 0 : index
    %3 = vector.load %arg3[%c0, %c0_1] : memref<24x32xbf16, #tpu.memory_space<vmem>>, vector<24x32xbf16>
    %4 = arith.extf %3 : vector<24x32xbf16> to vector<24x32xf32>
    %cst = arith.constant dense<0.000000e+00> : vector<24xf32>
    %5 = vector.multi_reduction <add>, %4, %cst [1] : vector<24x32xf32> to vector<24xf32>
    %6 = vector.shape_cast %5 : vector<24xf32> to vector<24x1xf32>
    %cst_2 = arith.constant 3.200000e+01 : f32
    %7 = vector.broadcast %cst_2 : f32 to vector<24x1xf32>
    %8 = arith.divf %6, %7 : vector<24x1xf32>
    %9 = vector.broadcast %8 : vector<24x1xf32> to vector<24x32xf32>
    %10 = arith.subf %4, %9 : vector<24x32xf32>
    %11 = arith.mulf %10, %10 : vector<24x32xf32>
    %cst_3 = arith.constant dense<0.000000e+00> : vector<24xf32>
    %12 = vector.multi_reduction <add>, %11, %cst_3 [1] : vector<24x32xf32> to vector<24xf32>
    %13 = vector.shape_cast %12 : vector<24xf32> to vector<24x1xf32>
    %cst_4 = arith.constant 3.200000e+01 : f32
    %14 = vector.broadcast %cst_4 : f32 to vector<24x1xf32>
    %15 = arith.divf %13, %14 : vector<24x1xf32>
    %16 = vector.broadcast %8 : vector<24x1xf32> to vector<24x32xf32>
    %17 = arith.subf %4, %16 : vector<24x32xf32>
    %cst_5 = arith.constant 9.99999974E-6 : f32
    %18 = vector.broadcast %cst_5 : f32 to vector<24x1xf32>
    %19 = arith.addf %15, %18 : vector<24x1xf32>
    %20 = math.rsqrt %19 : vector<24x1xf32>
    %21 = vector.broadcast %20 : vector<24x1xf32> to vector<24x32xf32>
    %22 = arith.mulf %17, %21 : vector<24x32xf32>
    %c0_6 = arith.constant 0 : index
    %c0_7 = arith.constant 0 : index
    %23 = vector.load %arg6[%c0_6, %c0_7] : memref<1x32xf32, #tpu.memory_space<vmem>>, vector<1x32xf32>
    %24 = vector.broadcast %23 : vector<1x32xf32> to vector<24x32xf32>
    %25 = arith.mulf %22, %24 : vector<24x32xf32>
    %c0_8 = arith.constant 0 : index
    %c0_9 = arith.constant 0 : index
    %26 = vector.load %arg7[%c0_8, %c0_9] : memref<1x32xf32, #tpu.memory_space<vmem>>, vector<1x32xf32>
    %27 = vector.broadcast %26 : vector<1x32xf32> to vector<24x32xf32>
    %28 = arith.addf %25, %27 : vector<24x32xf32>
    %29 = arith.truncf %28 : vector<24x32xf32> to vector<24x32xbf16>
    %c0_10 = arith.constant 0 : index
    %c0_11 = arith.constant 0 : index
    %30 = vector.load %arg9[%c0_10, %c0_11] : memref<24x32xf32, #tpu.memory_space<vmem>>, vector<24x32xf32>
    %c0_12 = arith.constant 0 : index
    %c0_13 = arith.constant 0 : index
    %31 = vector.load %arg4[%c0_12, %c0_13] : memref<32x32xbf16, #tpu.memory_space<vmem>>, vector<32x32xbf16>
    %cst_14 = arith.constant dense<0.000000e+00> : vector<24x32xf32>
    %32 = tpu.matmul %29, %31, %cst_14 {dimension_numbers = #tpu.dot_dimension_numbers<[1], [0], [0], [1], [0, 0, 1, 1], [], []>} : vector<24x32xbf16>, vector<32x32xbf16>, vector<24x32xf32> -> vector<24x32xf32>
    %33 = arith.addf %30, %32 : vector<24x32xf32>
    %c0_15 = arith.constant 0 : index
    %c0_16 = arith.constant 0 : index
    %34 = vector.load %arg9[%c0_15, %c0_16] : memref<24x32xf32, #tpu.memory_space<vmem>>, vector<24x32xf32>
    tpu.vector_store %arg9[%c0_15, %c0_16], %33 {strides = array<i32>} : memref<24x32xf32, #tpu.memory_space<vmem>>, vector<24x32xf32>,
    %c0_i32_17 = arith.constant 0 : i32
    %35 = arith.cmpi eq, %arg2, %c0_i32_17 : i32
    %36 = arith.extui %35 : i1 to i32
    %c0_i32_18 = arith.constant 0 : i32
    %37 = arith.cmpi ne, %36, %c0_i32_18 : i32
    scf.if %37 {
      %c0_19 = arith.constant 0 : index
      %c0_20 = arith.constant 0 : index
      %38 = vector.load %arg9[%c0_19, %c0_20] : memref<24x32xf32, #tpu.memory_space<vmem>>, vector<24x32xf32>
      %c0_21 = arith.constant 0 : index
      %c0_22 = arith.constant 0 : index
      %39 = vector.load %arg5[%c0_21, %c0_22] : memref<1x32xf32, #tpu.memory_space<vmem>>, vector<1x32xf32>
      %40 = vector.broadcast %39 : vector<1x32xf32> to vector<24x32xf32>
      %41 = arith.addf %38, %40 : vector<24x32xf32>
      %42 = arith.truncf %41 : vector<24x32xf32> to vector<24x32xbf16>
      %c0_23 = arith.constant 0 : index
      %c0_24 = arith.constant 0 : index
      %43 = vector.load %arg8[%c0_23, %c0_24] : memref<24x32xbf16, #tpu.memory_space<vmem>>, vector<24x32xbf16>
      tpu.vector_store %arg8[%c0_23, %c0_24], %42 {strides = array<i32>} : memref<24x32xbf16, #tpu.memory_space<vmem>>, vector<24x32xbf16>,
    } else {
    }
    return
  }
  func.func @transform_0(%arg0: i32, %arg1: i32, %arg2: i32) -> (i32, i32) {
    %c0_i32 = arith.constant 0 : i32
    return %arg0, %arg2 : i32, i32
  }
  func.func @transform_1(%arg0: i32, %arg1: i32, %arg2: i32) -> (i32, i32) {
    %c0_i32 = arith.constant 0 : i32
    return %arg2, %arg1 : i32, i32
  }
  func.func @transform_2(%arg0: i32, %arg1: i32, %arg2: i32) -> (i32, i32) {
    %c0_i32 = arith.constant 0 : i32
    %c0_i32_0 = arith.constant 0 : i32
    return %c0_i32, %arg1 : i32, i32
  }
  func.func @transform_3(%arg0: i32, %arg1: i32, %arg2: i32) -> (i32, i32) {
    %c0_i32 = arith.constant 0 : i32
    %c0_i32_0 = arith.constant 0 : i32
    return %c0_i32, %arg2 : i32, i32
  }
  func.func @transform_4(%arg0: i32, %arg1: i32, %arg2: i32) -> (i32, i32) {
    %c0_i32 = arith.constant 0 : i32
    %c0_i32_0 = arith.constant 0 : i32
    return %c0_i32, %arg2 : i32, i32
  }
  func.func @transform_5(%arg0: i32, %arg1: i32, %arg2: i32) -> (i32, i32) {
    %c0_i32 = arith.constant 0 : i32
    return %arg0, %arg1 : i32, i32
  }
}

module attributes {stable_mosaic.version = 11 : i64} {
  func.func @_mha_kernel(%arg0: i32, %arg1: i32, %arg2: i32, %arg3: i32, %arg4: memref<2xi32, #tpu.memory_space<smem>>, %arg5: memref<1x1x12x8xbf16, #tpu.memory_space<vmem>>, %arg6: memref<1x1x6x8xbf16, #tpu.memory_space<vmem>>, %arg7: memref<1x1x6x8xbf16, #tpu.memory_space<vmem>>, %arg8: memref<1x1x12x8xbf16, #tpu.memory_space<vmem>>, %arg9: memref<12x1xf32, #tpu.memory_space<vmem>>, %arg10: memref<12x1xf32, #tpu.memory_space<vmem>>, %arg11: memref<12x8xf32, #tpu.memory_space<vmem>>) attributes {dimension_semantics = [#tpu.dimension_semantics<parallel>, #tpu.dimension_semantics<parallel>, #tpu.dimension_semantics<parallel>, #tpu.dimension_semantics<arbitrary>], iteration_bounds = array<i64: 2, 4, 1, 1>, scalar_prefetch = 1 : i64, scratch_operands = 3 : i64, tpu.core_type = #tpu.core_type<tc>, window_params = [{transform_indices = @transform_0, window_bounds = array<i64: 1, 1, 12, 8>}, {transform_indices = @transform_1, window_bounds = array<i64: 1, 1, 6, 8>}, {transform_indices = @transform_2, window_bounds = array<i64: 1, 1, 6, 8>}, {transform_indices = @transform_3, window_bounds = array<i64: 1, 1, 12, 8>}]} {
    %c0_i32 = arith.constant 0 : i32
    %0 = arith.cmpi eq, %arg3, %c0_i32 : i32
    %1 = arith.extui %0 : i1 to i32
    %c0_i32_0 = arith.constant 0 : i32
    %2 = arith.cmpi ne, %1, %c0_i32_0 : i32
    scf.if %2 {
      %cst = arith.constant -1.000000e+30 : f32
      %12 = vector.broadcast %cst : f32 to vector<12x1xf32>
      %c0 = arith.constant 0 : index
      %c0_4 = arith.constant 0 : index
      %13 = vector.load %arg9[%c0, %c0_4] : memref<12x1xf32, #tpu.memory_space<vmem>>, vector<12x1xf32>
      tpu.vector_store %arg9[%c0, %c0_4], %12 {strides = array<i32>} : memref<12x1xf32, #tpu.memory_space<vmem>>, vector<12x1xf32>,
      %cst_5 = arith.constant 0.000000e+00 : f32
      %14 = vector.broadcast %cst_5 : f32 to vector<12x1xf32>
      %c0_6 = arith.constant 0 : index
      %c0_7 = arith.constant 0 : index
      %15 = vector.load %arg10[%c0_6, %c0_7] : memref<12x1xf32, #tpu.memory_space<vmem>>, vector<12x1xf32>
      tpu.vector_store %arg10[%c0_6, %c0_7], %14 {strides = array<i32>} : memref<12x1xf32, #tpu.memory_space<vmem>>, vector<12x1xf32>,
      %cst_8 = arith.constant 0.000000e+00 : f32
      %16 = vector.broadcast %cst_8 : f32 to vector<12x8xf32>
      %c0_9 = arith.constant 0 : index
      %c0_10 = arith.constant 0 : index
      %17 = vector.load %arg11[%c0_9, %c0_10] : memref<12x8xf32, #tpu.memory_space<vmem>>, vector<12x8xf32>
      tpu.vector_store %arg11[%c0_9, %c0_10], %16 {strides = array<i32>} : memref<12x8xf32, #tpu.memory_space<vmem>>, vector<12x8xf32>,
    } else {
    }
    %3 = arith.index_cast %arg0 : i32 to index
    %4 = memref.load %arg4[%3] : memref<2xi32, #tpu.memory_space<smem>>
    %c6_i32 = arith.constant 6 : i32
    %5 = arith.muli %arg3, %c6_i32 : i32
    %6 = arith.cmpi slt, %5, %4 : i32
    %7 = arith.extui %6 : i1 to i32
    %c0_i32_1 = arith.constant 0 : i32
    %8 = arith.cmpi ne, %7, %c0_i32_1 : i32
    scf.if %8 {
      %c0 = arith.constant 0 : index
      %c0_4 = arith.constant 0 : index
      %c0_5 = arith.constant 0 : index
      %c0_6 = arith.constant 0 : index
      %12 = vector.load %arg5[%c0, %c0_4, %c0_5, %c0_6] : memref<1x1x12x8xbf16, #tpu.memory_space<vmem>>, vector<1x1x12x8xbf16>
      %13 = vector.shape_cast %12 : vector<1x1x12x8xbf16> to vector<12x8xbf16>
      %c0_7 = arith.constant 0 : index
      %c0_8 = arith.constant 0 : index
      %c0_9 = arith.constant 0 : index
      %c0_10 = arith.constant 0 : index
      %14 = vector.load %arg6[%c0_7, %c0_8, %c0_9, %c0_10] : memref<1x1x6x8xbf16, #tpu.memory_space<vmem>>, vector<1x1x6x8xbf16>
      %15 = vector.shape_cast %14 : vector<1x1x6x8xbf16> to vector<6x8xbf16>
      %cst = arith.constant dense<0.000000e+00> : vector<12x6xf32>
      %16 = tpu.matmul %13, %15, %cst {dimension_numbers = #tpu.dot_dimension_numbers<[1], [1], [0], [0], [0, 0, 1, 0], [], []>} : vector<12x8xbf16>, vector<6x8xbf16>, vector<12x6xf32> -> vector<12x6xf32>
      %cst_11 = arith.constant 0.353553385 : f32
      %17 = vector.broadcast %cst_11 : f32 to vector<12x6xf32>
      %18 = arith.mulf %16, %17 : vector<12x6xf32>
      %19 = tpu.iota {dimensions = array<i32: 1>} : vector<12x6xi32>
      %20 = vector.broadcast %5 : i32 to vector<12x6xi32>
      %21 = arith.addi %20, %19 : vector<12x6xi32>
      %22 = vector.broadcast %4 : i32 to vector<12x6xi32>
      %23 = arith.cmpi slt, %21, %22 : vector<12x6xi32>
      %cst_12 = arith.constant -1.000000e+30 : f32
      %24 = vector.broadcast %cst_12 : f32 to vector<12x6xf32>
      %25 = arith.select %23, %18, %24 : vector<12x6xi1>, vector<12x6xf32>
      %c0_13 = arith.constant 0 : index
      %c0_14 = arith.constant 0 : index
      %26 = vector.load %arg9[%c0_13, %c0_14] : memref<12x1xf32, #tpu.memory_space<vmem>>, vector<12x1xf32>
      %cst_15 = arith.constant dense<0xFF800000> : vector<12xf32>
      %27 = vector.multi_reduction <maximumf>, %25, %cst_15 [1] : vector<12x6xf32> to vector<12xf32>
      %28 = vector.shape_cast %27 : vector<12xf32> to vector<12x1xf32>
      %29 = arith.maximumf %26, %28 : vector<12x1xf32>
      %30 = arith.subf %26, %29 : vector<12x1xf32>
      %31 = math.exp %30 : vector<12x1xf32>
      %32 = vector.broadcast %29 : vector<12x1xf32> to vector<12x6xf32>
      %33 = arith.subf %25, %32 : vector<12x6xf32>
      %34 = math.exp %33 : vector<12x6xf32>
      %cst_16 = arith.constant 0.000000e+00 : f32
      %35 = vector.broadcast %cst_16 : f32 to vector<12x6xf32>
      %36 = arith.select %23, %34, %35 : vector<12x6xi1>, vector<12x6xf32>
      %c0_17 = arith.constant 0 : index
      %c0_18 = arith.constant 0 : index
      %37 = vector.load %arg10[%c0_17, %c0_18] : memref<12x1xf32, #tpu.memory_space<vmem>>, vector<12x1xf32>
      %38 = arith.mulf %31, %37 : vector<12x1xf32>
      %cst_19 = arith.constant dense<0.000000e+00> : vector<12xf32>
      %39 = vector.multi_reduction <add>, %36, %cst_19 [1] : vector<12x6xf32> to vector<12xf32>
      %40 = vector.shape_cast %39 : vector<12xf32> to vector<12x1xf32>
      %41 = arith.addf %38, %40 : vector<12x1xf32>
      %c0_20 = arith.constant 0 : index
      %c0_21 = arith.constant 0 : index
      %42 = vector.load %arg10[%c0_20, %c0_21] : memref<12x1xf32, #tpu.memory_space<vmem>>, vector<12x1xf32>
      tpu.vector_store %arg10[%c0_20, %c0_21], %41 {strides = array<i32>} : memref<12x1xf32, #tpu.memory_space<vmem>>, vector<12x1xf32>,
      %c0_22 = arith.constant 0 : index
      %c0_23 = arith.constant 0 : index
      %43 = vector.load %arg11[%c0_22, %c0_23] : memref<12x8xf32, #tpu.memory_space<vmem>>, vector<12x8xf32>
      %44 = vector.broadcast %31 : vector<12x1xf32> to vector<12x8xf32>
      %45 = arith.mulf %44, %43 : vector<12x8xf32>
      %46 = arith.truncf %36 : vector<12x6xf32> to vector<12x6xbf16>
      %c0_24 = arith.constant 0 : index
      %c0_25 = arith.constant 0 : index
      %c0_26 = arith.constant 0 : index
      %c0_27 = arith.constant 0 : index
      %47 = vector.load %arg7[%c0_24, %c0_25, %c0_26, %c0_27] : memref<1x1x6x8xbf16, #tpu.memory_space<vmem>>, vector<1x1x6x8xbf16>
      %48 = vector.shape_cast %47 : vector<1x1x6x8xbf16> to vector<6x8xbf16>
      %cst_28 = arith.constant dense<0.000000e+00> : vector<12x8xf32>
      %49 = tpu.matmul %46, %48, %cst_28 {dimension_numbers = #tpu.dot_dimension_numbers<[1], [0], [0], [1], [0, 0, 1, 1], [], []>} : vector<12x6xbf16>, vector<6x8xbf16>, vector<12x8xf32> -> vector<12x8xf32>
      %50 = arith.addf %45, %49 : vector<12x8xf32>
      %c0_29 = arith.constant 0 : index
      %c0_30 = arith.constant 0 : index
      %51 = vector.load %arg11[%c0_29, %c0_30] : memref<12x8xf32, #tpu.memory_space<vmem>>, vector<12x8xf32>
      tpu.vector_store %arg11[%c0_29, %c0_30], %50 {strides = array<i32>} : memref<12x8xf32, #tpu.memory_space<vmem>>, vector<12x8xf32>,
      %c0_31 = arith.constant 0 : index
      %c0_32 = arith.constant 0 : index
      %52 = vector.load %arg9[%c0_31, %c0_32] : memref<12x1xf32, #tpu.memory_space<vmem>>, vector<12x1xf32>
      tpu.vector_store %arg9[%c0_31, %c0_32], %29 {strides = array<i32>} : memref<12x1xf32, #tpu.memory_space<vmem>>, vector<12x1xf32>,
    } else {
    }
    %c0_i32_2 = arith.constant 0 : i32
    %9 = arith.cmpi eq, %arg3, %c0_i32_2 : i32
    %10 = arith.extui %9 : i1 to i32
    %c0_i32_3 = arith.constant 0 : i32
    %11 = arith.cmpi ne, %10, %c0_i32_3 : i32
    scf.if %11 {
      %c0 = arith.constant 0 : index
      %c0_4 = arith.constant 0 : index
      %12 = vector.load %arg10[%c0, %c0_4] : memref<12x1xf32, #tpu.memory_space<vmem>>, vector<12x1xf32>
      %cst = arith.constant 1.000000e-30 : f32
      %13 = vector.broadcast %cst : f32 to vector<12x1xf32>
      %14 = arith.maximumf %12, %13 : vector<12x1xf32>
      %c0_5 = arith.constant 0 : index
      %c0_6 = arith.constant 0 : index
      %15 = vector.load %arg11[%c0_5, %c0_6] : memref<12x8xf32, #tpu.memory_space<vmem>>, vector<12x8xf32>
      %16 = tpu.reciprocal %14 {approx = true} : vector<12x1xf32> -> vector<12x1xf32>
      %17 = vector.broadcast %16 : vector<12x1xf32> to vector<12x8xf32>
      %18 = arith.mulf %15, %17 : vector<12x8xf32>
      %19 = arith.truncf %18 : vector<12x8xf32> to vector<12x8xbf16>
      %c0_7 = arith.constant 0 : index
      %c0_8 = arith.constant 0 : index
      %c0_9 = arith.constant 0 : index
      %c0_10 = arith.constant 0 : index
      %20 = vector.load %arg8[%c0_7, %c0_8, %c0_9, %c0_10] : memref<1x1x12x8xbf16, #tpu.memory_space<vmem>>, vector<1x1x12x8xbf16>
      %21 = vector.shape_cast %20 : vector<1x1x12x8xbf16> to vector<12x8xbf16>
      %22 = vector.shape_cast %19 : vector<12x8xbf16> to vector<1x1x12x8xbf16>
      tpu.vector_store %arg8[%c0_7, %c0_8, %c0_9, %c0_10], %22 {strides = array<i32>} : memref<1x1x12x8xbf16, #tpu.memory_space<vmem>>, vector<1x1x12x8xbf16>,
    } else {
    }
    return
  }
  func.func @transform_0(%arg0: i32, %arg1: i32, %arg2: i32, %arg3: i32, %arg4: memref<2xi32, #tpu.memory_space<smem>>) -> (i32, i32, i32, i32) {
    %c0_i32 = arith.constant 0 : i32
    %0 = arith.addi %c0_i32, %arg1 : i32
    %c0_i32_0 = arith.constant 0 : i32
    %c0_i32_1 = arith.constant 0 : i32
    return %arg0, %0, %arg2, %c0_i32_0 : i32, i32, i32, i32
  }
  func.func @transform_1(%arg0: i32, %arg1: i32, %arg2: i32, %arg3: i32, %arg4: memref<2xi32, #tpu.memory_space<smem>>) -> (i32, i32, i32, i32) {
    %c0_i32 = arith.constant 0 : i32
    %0 = arith.addi %c0_i32, %arg1 : i32
    %c0_i32_0 = arith.constant 0 : i32
    %c0_i32_1 = arith.constant 0 : i32
    return %arg0, %0, %arg3, %c0_i32_0 : i32, i32, i32, i32
  }
  func.func @transform_2(%arg0: i32, %arg1: i32, %arg2: i32, %arg3: i32, %arg4: memref<2xi32, #tpu.memory_space<smem>>) -> (i32, i32, i32, i32) {
    %c4_i32 = arith.constant 4 : i32
    %0 = arith.addi %c4_i32, %arg1 : i32
    %c0_i32 = arith.constant 0 : i32
    %c0_i32_0 = arith.constant 0 : i32
    return %arg0, %0, %arg3, %c0_i32 : i32, i32, i32, i32
  }
  func.func @transform_3(%arg0: i32, %arg1: i32, %arg2: i32, %arg3: i32, %arg4: memref<2xi32, #tpu.memory_space<smem>>) -> (i32, i32, i32, i32) {
    %c0_i32 = arith.constant 0 : i32
    %c0_i32_0 = arith.constant 0 : i32
    return %arg0, %arg1, %arg2, %c0_i32 : i32, i32, i32, i32
  }
}

module attributes {stable_mosaic.version = 11 : i64} {
  func.func @_linear_kernel(%arg0: i32, %arg1: i32, %arg2: i32, %arg3: memref<24x32xbf16, #tpu.memory_space<vmem>>, %arg4: memref<32x128xbf16, #tpu.memory_space<vmem>>, %arg5: memref<1x128xf32, #tpu.memory_space<vmem>>, %arg6: memref<1x32xf32, #tpu.memory_space<vmem>>, %arg7: memref<1x32xf32, #tpu.memory_space<vmem>>, %arg8: memref<24x128xbf16, #tpu.memory_space<vmem>>, %arg9: memref<24x128xf32, #tpu.memory_space<vmem>>) attributes {dimension_semantics = [#tpu.dimension_semantics<parallel>, #tpu.dimension_semantics<parallel>, #tpu.dimension_semantics<arbitrary>], iteration_bounds = array<i64: 1, 1, 1>, scalar_prefetch = 0 : i64, scratch_operands = 1 : i64, tpu.core_type = #tpu.core_type<tc>, window_params = [{transform_indices = @transform_0, window_bounds = array<i64: 24, 32>}, {transform_indices = @transform_1, window_bounds = array<i64: 32, 128>}, {transform_indices = @transform_2, window_bounds = array<i64: 1, 128>}, {transform_indices = @transform_3, window_bounds = array<i64: 1, 32>}, {transform_indices = @transform_4, window_bounds = array<i64: 1, 32>}, {transform_indices = @transform_5, window_bounds = array<i64: 24, 128>}]} {
    %c0_i32 = arith.constant 0 : i32
    %0 = arith.cmpi eq, %arg2, %c0_i32 : i32
    %1 = arith.extui %0 : i1 to i32
    %c0_i32_0 = arith.constant 0 : i32
    %2 = arith.cmpi ne, %1, %c0_i32_0 : i32
    scf.if %2 {
      %cst_19 = arith.constant 0.000000e+00 : f32
      %38 = vector.broadcast %cst_19 : f32 to vector<24x128xf32>
      %c0_20 = arith.constant 0 : index
      %c0_21 = arith.constant 0 : index
      %39 = vector.load %arg9[%c0_20, %c0_21] : memref<24x128xf32, #tpu.memory_space<vmem>>, vector<24x128xf32>
      tpu.vector_store %arg9[%c0_20, %c0_21], %38 {strides = array<i32>} : memref<24x128xf32, #tpu.memory_space<vmem>>, vector<24x128xf32>,
    } else {
    }
    %c0 = arith.constant 0 : index
    %c0_1 = arith.constant 0 : index
    %3 = vector.load %arg3[%c0, %c0_1] : memref<24x32xbf16, #tpu.memory_space<vmem>>, vector<24x32xbf16>
    %4 = arith.extf %3 : vector<24x32xbf16> to vector<24x32xf32>
    %cst = arith.constant dense<0.000000e+00> : vector<24xf32>
    %5 = vector.multi_reduction <add>, %4, %cst [1] : vector<24x32xf32> to vector<24xf32>
    %6 = vector.shape_cast %5 : vector<24xf32> to vector<24x1xf32>
    %cst_2 = arith.constant 3.200000e+01 : f32
    %7 = vector.broadcast %cst_2 : f32 to vector<24x1xf32>
    %8 = arith.divf %6, %7 : vector<24x1xf32>
    %9 = vector.broadcast %8 : vector<24x1xf32> to vector<24x32xf32>
    %10 = arith.subf %4, %9 : vector<24x32xf32>
    %11 = arith.mulf %10, %10 : vector<24x32xf32>
    %cst_3 = arith.constant dense<0.000000e+00> : vector<24xf32>
    %12 = vector.multi_reduction <add>, %11, %cst_3 [1] : vector<24x32xf32> to vector<24xf32>
    %13 = vector.shape_cast %12 : vector<24xf32> to vector<24x1xf32>
    %cst_4 = arith.constant 3.200000e+01 : f32
    %14 = vector.broadcast %cst_4 : f32 to vector<24x1xf32>
    %15 = arith.divf %13, %14 : vector<24x1xf32>
    %16 = vector.broadcast %8 : vector<24x1xf32> to vector<24x32xf32>
    %17 = arith.subf %4, %16 : vector<24x32xf32>
    %cst_5 = arith.constant 9.99999974E-6 : f32
    %18 = vector.broadcast %cst_5 : f32 to vector<24x1xf32>
    %19 = arith.addf %15, %18 : vector<24x1xf32>
    %20 = math.rsqrt %19 : vector<24x1xf32>
    %21 = vector.broadcast %20 : vector<24x1xf32> to vector<24x32xf32>
    %22 = arith.mulf %17, %21 : vector<24x32xf32>
    %c0_6 = arith.constant 0 : index
    %c0_7 = arith.constant 0 : index
    %23 = vector.load %arg6[%c0_6, %c0_7] : memref<1x32xf32, #tpu.memory_space<vmem>>, vector<1x32xf32>
    %24 = vector.broadcast %23 : vector<1x32xf32> to vector<24x32xf32>
    %25 = arith.mulf %22, %24 : vector<24x32xf32>
    %c0_8 = arith.constant 0 : index
    %c0_9 = arith.constant 0 : index
    %26 = vector.load %arg7[%c0_8, %c0_9] : memref<1x32xf32, #tpu.memory_space<vmem>>, vector<1x32xf32>
    %27 = vector.broadcast %26 : vector<1x32xf32> to vector<24x32xf32>
    %28 = arith.addf %25, %27 : vector<24x32xf32>
    %29 = arith.truncf %28 : vector<24x32xf32> to vector<24x32xbf16>
    %c0_10 = arith.constant 0 : index
    %c0_11 = arith.constant 0 : index
    %30 = vector.load %arg9[%c0_10, %c0_11] : memref<24x128xf32, #tpu.memory_space<vmem>>, vector<24x128xf32>
    %c0_12 = arith.constant 0 : index
    %c0_13 = arith.constant 0 : index
    %31 = vector.load %arg4[%c0_12, %c0_13] : memref<32x128xbf16, #tpu.memory_space<vmem>>, vector<32x128xbf16>
    %cst_14 = arith.constant dense<0.000000e+00> : vector<24x128xf32>
    %32 = tpu.matmul %29, %31, %cst_14 {dimension_numbers = #tpu.dot_dimension_numbers<[1], [0], [0], [1], [0, 0, 1, 1], [], []>} : vector<24x32xbf16>, vector<32x128xbf16>, vector<24x128xf32> -> vector<24x128xf32>
    %33 = arith.addf %30, %32 : vector<24x128xf32>
    %c0_15 = arith.constant 0 : index
    %c0_16 = arith.constant 0 : index
    %34 = vector.load %arg9[%c0_15, %c0_16] : memref<24x128xf32, #tpu.memory_space<vmem>>, vector<24x128xf32>
    tpu.vector_store %arg9[%c0_15, %c0_16], %33 {strides = array<i32>} : memref<24x128xf32, #tpu.memory_space<vmem>>, vector<24x128xf32>,
    %c0_i32_17 = arith.constant 0 : i32
    %35 = arith.cmpi eq, %arg2, %c0_i32_17 : i32
    %36 = arith.extui %35 : i1 to i32
    %c0_i32_18 = arith.constant 0 : i32
    %37 = arith.cmpi ne, %36, %c0_i32_18 : i32
    scf.if %37 {
      %c0_19 = arith.constant 0 : index
      %c0_20 = arith.constant 0 : index
      %38 = vector.load %arg9[%c0_19, %c0_20] : memref<24x128xf32, #tpu.memory_space<vmem>>, vector<24x128xf32>
      %c0_21 = arith.constant 0 : index
      %c0_22 = arith.constant 0 : index
      %39 = vector.load %arg5[%c0_21, %c0_22] : memref<1x128xf32, #tpu.memory_space<vmem>>, vector<1x128xf32>
      %40 = vector.broadcast %39 : vector<1x128xf32> to vector<24x128xf32>
      %41 = arith.addf %38, %40 : vector<24x128xf32>
      %cst_23 = arith.constant 5.000000e-01 : f32
      %42 = vector.broadcast %cst_23 : f32 to vector<24x128xf32>
      %43 = arith.mulf %42, %41 : vector<24x128xf32>
      %cst_24 = arith.constant 4.471500e-02 : f32
      %44 = vector.broadcast %cst_24 : f32 to vector<24x128xf32>
      %45 = arith.mulf %44, %41 : vector<24x128xf32>
      %46 = arith.mulf %45, %41 : vector<24x128xf32>
      %47 = arith.mulf %46, %41 : vector<24x128xf32>
      %48 = arith.addf %41, %47 : vector<24x128xf32>
      %cst_25 = arith.constant 0.797884583 : f32
      %49 = vector.broadcast %cst_25 : f32 to vector<24x128xf32>
      %50 = arith.mulf %49, %48 : vector<24x128xf32>
      %51 = math.tanh %50 : vector<24x128xf32>
      %cst_26 = arith.constant 1.000000e+00 : f32
      %52 = vector.broadcast %cst_26 : f32 to vector<24x128xf32>
      %53 = arith.addf %52, %51 : vector<24x128xf32>
      %54 = arith.mulf %43, %53 : vector<24x128xf32>
      %55 = arith.truncf %54 : vector<24x128xf32> to vector<24x128xbf16>
      %c0_27 = arith.constant 0 : index
      %c0_28 = arith.constant 0 : index
      %56 = vector.load %arg8[%c0_27, %c0_28] : memref<24x128xbf16, #tpu.memory_space<vmem>>, vector<24x128xbf16>
      tpu.vector_store %arg8[%c0_27, %c0_28], %55 {strides = array<i32>} : memref<24x128xbf16, #tpu.memory_space<vmem>>, vector<24x128xbf16>,
    } else {
    }
    return
  }
  func.func @transform_0(%arg0: i32, %arg1: i32, %arg2: i32) -> (i32, i32) {
    %c0_i32 = arith.constant 0 : i32
    return %arg0, %arg2 : i32, i32
  }
  func.func @transform_1(%arg0: i32, %arg1: i32, %arg2: i32) -> (i32, i32) {
    %c0_i32 = arith.constant 0 : i32
    return %arg2, %arg1 : i32, i32
  }
  func.func @transform_2(%arg0: i32, %arg1: i32, %arg2: i32) -> (i32, i32) {
    %c0_i32 = arith.constant 0 : i32
    %c0_i32_0 = arith.constant 0 : i32
    return %c0_i32, %arg1 : i32, i32
  }
  func.func @transform_3(%arg0: i32, %arg1: i32, %arg2: i32) -> (i32, i32) {
    %c0_i32 = arith.constant 0 : i32
    %c0_i32_0 = arith.constant 0 : i32
    return %c0_i32, %arg2 : i32, i32
  }
  func.func @transform_4(%arg0: i32, %arg1: i32, %arg2: i32) -> (i32, i32) {
    %c0_i32 = arith.constant 0 : i32
    %c0_i32_0 = arith.constant 0 : i32
    return %c0_i32, %arg2 : i32, i32
  }
  func.func @transform_5(%arg0: i32, %arg1: i32, %arg2: i32) -> (i32, i32) {
    %c0_i32 = arith.constant 0 : i32
    return %arg0, %arg1 : i32, i32
  }
}

module attributes {stable_mosaic.version = 11 : i64} {
  func.func @_linear_kernel(%arg0: i32, %arg1: i32, %arg2: i32, %arg3: memref<24x128xbf16, #tpu.memory_space<vmem>>, %arg4: memref<128x32xbf16, #tpu.memory_space<vmem>>, %arg5: memref<1x32xf32, #tpu.memory_space<vmem>>, %arg6: memref<24x32xbf16, #tpu.memory_space<vmem>>, %arg7: memref<24x32xbf16, #tpu.memory_space<vmem>>, %arg8: memref<24x32xf32, #tpu.memory_space<vmem>>) attributes {dimension_semantics = [#tpu.dimension_semantics<parallel>, #tpu.dimension_semantics<parallel>, #tpu.dimension_semantics<arbitrary>], iteration_bounds = array<i64: 1, 1, 1>, scalar_prefetch = 0 : i64, scratch_operands = 1 : i64, tpu.core_type = #tpu.core_type<tc>, window_params = [{transform_indices = @transform_0, window_bounds = array<i64: 24, 128>}, {transform_indices = @transform_1, window_bounds = array<i64: 128, 32>}, {transform_indices = @transform_2, window_bounds = array<i64: 1, 32>}, {transform_indices = @transform_3, window_bounds = array<i64: 24, 32>}, {transform_indices = @transform_4, window_bounds = array<i64: 24, 32>}]} {
    %c0_i32 = arith.constant 0 : i32
    %0 = arith.cmpi eq, %arg2, %c0_i32 : i32
    %1 = arith.extui %0 : i1 to i32
    %c0_i32_0 = arith.constant 0 : i32
    %2 = arith.cmpi ne, %1, %c0_i32_0 : i32
    scf.if %2 {
      %cst_10 = arith.constant 0.000000e+00 : f32
      %12 = vector.broadcast %cst_10 : f32 to vector<24x32xf32>
      %c0_11 = arith.constant 0 : index
      %c0_12 = arith.constant 0 : index
      %13 = vector.load %arg8[%c0_11, %c0_12] : memref<24x32xf32, #tpu.memory_space<vmem>>, vector<24x32xf32>
      tpu.vector_store %arg8[%c0_11, %c0_12], %12 {strides = array<i32>} : memref<24x32xf32, #tpu.memory_space<vmem>>, vector<24x32xf32>,
    } else {
    }
    %c0 = arith.constant 0 : index
    %c0_1 = arith.constant 0 : index
    %3 = vector.load %arg3[%c0, %c0_1] : memref<24x128xbf16, #tpu.memory_space<vmem>>, vector<24x128xbf16>
    %c0_2 = arith.constant 0 : index
    %c0_3 = arith.constant 0 : index
    %4 = vector.load %arg8[%c0_2, %c0_3] : memref<24x32xf32, #tpu.memory_space<vmem>>, vector<24x32xf32>
    %c0_4 = arith.constant 0 : index
    %c0_5 = arith.constant 0 : index
    %5 = vector.load %arg4[%c0_4, %c0_5] : memref<128x32xbf16, #tpu.memory_space<vmem>>, vector<128x32xbf16>
    %cst = arith.constant dense<0.000000e+00> : vector<24x32xf32>
    %6 = tpu.matmul %3, %5, %cst {dimension_numbers = #tpu.dot_dimension_numbers<[1], [0], [0], [1], [0, 0, 1, 1], [], []>} : vector<24x128xbf16>, vector<128x32xbf16>, vector<24x32xf32> -> vector<24x32xf32>
    %7 = arith.addf %4, %6 : vector<24x32xf32>
    %c0_6 = arith.constant 0 : index
    %c0_7 = arith.constant 0 : index
    %8 = vector.load %arg8[%c0_6, %c0_7] : memref<24x32xf32, #tpu.memory_space<vmem>>, vector<24x32xf32>
    tpu.vector_store %arg8[%c0_6, %c0_7], %7 {strides = array<i32>} : memref<24x32xf32, #tpu.memory_space<vmem>>, vector<24x32xf32>,
    %c0_i32_8 = arith.constant 0 : i32
    %9 = arith.cmpi eq, %arg2, %c0_i32_8 : i32
    %10 = arith.extui %9 : i1 to i32
    %c0_i32_9 = arith.constant 0 : i32
    %11 = arith.cmpi ne, %10, %c0_i32_9 : i32
    scf.if %11 {
      %c0_10 = arith.constant 0 : index
      %c0_11 = arith.constant 0 : index
      %12 = vector.load %arg8[%c0_10, %c0_11] : memref<24x32xf32, #tpu.memory_space<vmem>>, vector<24x32xf32>
      %c0_12 = arith.constant 0 : index
      %c0_13 = arith.constant 0 : index
      %13 = vector.load %arg5[%c0_12, %c0_13] : memref<1x32xf32, #tpu.memory_space<vmem>>, vector<1x32xf32>
      %14 = vector.broadcast %13 : vector<1x32xf32> to vector<24x32xf32>
      %15 = arith.addf %12, %14 : vector<24x32xf32>
      %c0_14 = arith.constant 0 : index
      %c0_15 = arith.constant 0 : index
      %16 = vector.load %arg6[%c0_14, %c0_15] : memref<24x32xbf16, #tpu.memory_space<vmem>>, vector<24x32xbf16>
      %17 = arith.extf %16 : vector<24x32xbf16> to vector<24x32xf32>
      %18 = arith.addf %15, %17 : vector<24x32xf32>
      %19 = arith.truncf %18 : vector<24x32xf32> to vector<24x32xbf16>
      %c0_16 = arith.constant 0 : index
      %c0_17 = arith.constant 0 : index
      %20 = vector.load %arg7[%c0_16, %c0_17] : memref<24x32xbf16, #tpu.memory_space<vmem>>, vector<24x32xbf16>
      tpu.vector_store %arg7[%c0_16, %c0_17], %19 {strides = array<i32>} : memref<24x32xbf16, #tpu.memory_space<vmem>>, vector<24x32xbf16>,
    } else {
    }
    return
  }
  func.func @transform_0(%arg0: i32, %arg1: i32, %arg2: i32) -> (i32, i32) {
    %c0_i32 = arith.constant 0 : i32
    return %arg0, %arg2 : i32, i32
  }
  func.func @transform_1(%arg0: i32, %arg1: i32, %arg2: i32) -> (i32, i32) {
    %c0_i32 = arith.constant 0 : i32
    return %arg2, %arg1 : i32, i32
  }
  func.func @transform_2(%arg0: i32, %arg1: i32, %arg2: i32) -> (i32, i32) {
    %c0_i32 = arith.constant 0 : i32
    %c0_i32_0 = arith.constant 0 : i32
    return %c0_i32, %arg1 : i32, i32
  }
  func.func @transform_3(%arg0: i32, %arg1: i32, %arg2: i32) -> (i32, i32) {
    %c0_i32 = arith.constant 0 : i32
    return %arg0, %arg1 : i32, i32
  }
  func.func @transform_4(%arg0: i32, %arg1: i32, %arg2: i32) -> (i32, i32) {
    %c0_i32 = arith.constant 0 : i32
    return %arg0, %arg1 : i32, i32
  }
}

</mosaic_0001>

<llo_original>
// kernel: _gpt_forward_jit.18
$region0: #{_gpt_forward_jit.18}
  #allocation0 [shape = 'u32[]', space=smem, size = 0x4, offset = 0x4, fixed_abs, tag = 'smem constant byte address 0x4 - core index']
  #allocation1 [shape = 'u32[72,128]{1,0:T(1,128)}', space=vmem, size = 0x9000, scoped, tag = 'internal scratch']
  #allocation2 [shape = 'f32[24,96]{1,0:T(8,128)}', space=vmem, size = 0x3000, scoped, tag = 'scratch operand']
  %s0 = inlined_call_operand.vmem [shape: bf16[24,32], index: 0, kind: input, shape index: {}]
  %s1 = inlined_call_operand.vmem [shape: bf16[32,96], index: 1, kind: input, shape index: {}]
  %s2 = inlined_call_operand.vmem [shape: f32[1,96], index: 2, kind: input, shape index: {}]
  %s3 = inlined_call_operand.vmem [shape: f32[1,32], index: 3, kind: input, shape index: {}]
  %s4 = inlined_call_operand.vmem [shape: f32[1,32], index: 4, kind: input, shape index: {}]
  %s5 = inlined_call_operand.vmem [shape: bf16[24,96], index: 5, kind: output, shape index: {}]
  %s6 = sld [smem:[#allocation0]]
  $region38: #{_gpt_forward_jit.18} parent=0
    _
  %s8 = ssub.s32 1, %s6
  %s9 = scalar_select 0, %s8, %s6
  // Predicated region
  $region2: #{_gpt_forward_jit.18} parent=0 // pred_check
    _
  $region3: #{_gpt_forward_jit.18} parent=0 // pred_check_branch
    %11 = sbr.rel (0) target = $region5
  $region4: #{_gpt_forward_jit.18} parent=0 // pred_region
    _
  $region5: #{_gpt_forward_jit.18} parent=0 // pred_fallthru
    _
  // Predicated region
  $region6: #{_gpt_forward_jit.18} parent=0 // pred_check
    _
  $region7: #{_gpt_forward_jit.18} parent=0 // pred_check_branch
    %13 = sbr.rel (0) target = $region9
  $region8: #{_gpt_forward_jit.18} parent=0 // pred_region
    _
  $region9: #{_gpt_forward_jit.18} parent=0 // pred_fallthru
    _
  // Predicated region
  $region10: #{_gpt_forward_jit.18} parent=0 // pred_check
    _
  $region11: #{_gpt_forward_jit.18} parent=0 // pred_check_branch
    %15 = sbr.rel (0) target = $region13
  $region12: #{_gpt_forward_jit.18} parent=0 // pred_region
    _
  $region13: #{_gpt_forward_jit.18} parent=0 // pred_fallthru
    _
  // Predicated region
  $region14: #{_gpt_forward_jit.18} parent=0 // pred_check
    _
  $region15: #{_gpt_forward_jit.18} parent=0 // pred_check_branch
    %17 = sbr.rel (0) target = $region17
  $region16: #{_gpt_forward_jit.18} parent=0 // pred_region
    _
  $region17: #{_gpt_forward_jit.18} parent=0 // pred_fallthru
    _
  // Predicated region
  $region18: #{_gpt_forward_jit.18} parent=0 // pred_check
    _
  $region19: #{_gpt_forward_jit.18} parent=0 // pred_check_branch
    %19 = sbr.rel (0) target = $region21
  $region20: #{_gpt_forward_jit.18} parent=0 // pred_region
    _
  $region21: #{_gpt_forward_jit.18} parent=0 // pred_fallthru
    _
  %p21 = scmp.eq.s32.totalorder 0, 0
  // Predicated region
  $region22: #{_gpt_forward_jit.18} parent=0 // pred_check
    %p22 = pneg %p21
  $region23: #{_gpt_forward_jit.18} parent=0 // pred_check_branch
    %24 = sbr.rel (%p22) target = $region25
  $region24: #{_gpt_forward_jit.18} parent=0 // pred_region
    %vm25 = vcmask 785408
    %26 = vst.msk [vmem:[#allocation2] sm:$0xff] %vm25, 0.0
    %27 = vst.msk [vmem:[#allocation2 + $0x8] sm:$0xff] %vm25, 0.0
    %28 = vst.msk [vmem:[#allocation2 + $0x10] sm:$0xff] %vm25, 0.0
  $region25: #{_gpt_forward_jit.18} parent=0 // pred_fallthru
    _
  %v29 = vld [vmem:[%s0] sm:$0xf]
  %v30 = vld [vmem:[%s0 + $0x4] sm:$0xf]
  %v31 = vld [vmem:[%s0 + $0x8] sm:$0xf]
  %v32 = vunpack.c.l.bf16 %v29
  %v33 = vunpack.c.l.bf16 %v30
  %v34 = vunpack.c.l.bf16 %v31
  %vm35 = vcmask 261120
  %v36 = vsel %vm35, %v32, 0.0
  %37 = vadd.xlane.f32.xlu0 %v36
  %v38 = vpop.xlane.xlu0 %37
  %v39 = vsel %vm35, %v33, 0.0
  %40 = vadd.xlane.f32.xlu0 %v39
  %v41 = vpop.xlane.xlu0 %40
  %v42 = vsel %vm35, %v34, 0.0
  %43 = vadd.xlane.f32.xlu0 %v42
  %v44 = vpop.xlane.xlu0 %43
  %v45 = vrcp.pop 32.0
  %v46 = vmul.f32 32.0, %v45
  %v47 = vsub.f32 1.0, %v46
  %v48 = vmul.f32 %v45, %v47
  %v49 = vadd.f32 %v45, %v48
  %vm50 = vweird.f32 %v45
  %v51 = vsel %vm50, %v45, %v49
  %v52 = vmul.f32 %v38, %v51
  %v53 = vmul.f32 %v41, %v51
  %v54 = vmul.f32 %v44, %v51
  %v55 = vsub.f32 %v32, %v52
  %v56 = vsub.f32 %v33, %v53
  %v57 = vsub.f32 %v34, %v54
  %v58 = vmul.f32 %v55, %v55
  %v59 = vmul.f32 %v56, %v56
  %v60 = vmul.f32 %v57, %v57
  %v61 = vsel %vm35, %v58, 0.0
  %62 = vadd.xlane.f32.xlu0 %v61
  %v63 = vpop.xlane.xlu0 %62
  %v64 = vsel %vm35, %v59, 0.0
  %65 = vadd.xlane.f32.xlu0 %v64
  %v66 = vpop.xlane.xlu0 %65
  %v67 = vsel %vm35, %v60, 0.0
  %68 = vadd.xlane.f32.xlu0 %v67
  %v69 = vpop.xlane.xlu0 %68
  %v70 = vmul.f32 %v63, %v51
  %v71 = vmul.f32 %v66, %v51
  %v72 = vmul.f32 %v69, %v51
  %v73 = vadd.f32 %v70, 1e-05
  %v74 = vadd.f32 %v71, 1e-05
  %v75 = vadd.f32 %v72, 1e-05
  %v76 = vrsqrt.pop %v73
  %v77 = vmul.f32 %v76, %v73
  %v78 = vmul.f32 %v77, %v76
  %v79 = vmul.f32 0.5, %v78
  %v80 = vsub.f32 1.5, %v79
  %v81 = vmul.f32 %v76, %v80
  %vm82 = vweird.f32 %v73
  %vm83 = vweird.f32 %v76
  %vm84 = vmor %vm82, %vm83
  %v85 = vsel %vm84, %v76, %v81
  %v86 = vrsqrt.pop %v74
  %v87 = vmul.f32 %v86, %v74
  %v88 = vmul.f32 %v87, %v86
  %v89 = vmul.f32 0.5, %v88
  %v90 = vsub.f32 1.5, %v89
  %v91 = vmul.f32 %v86, %v90
  %vm92 = vweird.f32 %v74
  %vm93 = vweird.f32 %v86
  %vm94 = vmor %vm92, %vm93
  %v95 = vsel %vm94, %v86, %v91
  %v96 = vrsqrt.pop %v75
  %v97 = vmul.f32 %v96, %v75
  %v98 = vmul.f32 %v97, %v96
  %v99 = vmul.f32 0.5, %v98
  %v100 = vsub.f32 1.5, %v99
  %v101 = vmul.f32 %v96, %v100
  %vm102 = vweird.f32 %v75
  %vm103 = vweird.f32 %v96
  %vm104 = vmor %vm102, %vm103
  %v105 = vsel %vm104, %v96, %v101
  %v106 = vmul.f32 %v55, %v85
  %v107 = vmul.f32 %v56, %v95
  %v108 = vmul.f32 %v57, %v105
  %v109 = vld [vmem:[%s3] sm:$0x1]
  %v111 = vperm.slane %v109, 0
  %v113 = vmul.f32 %v106, %v111
  %v114 = vmul.f32 %v107, %v111
  %v115 = vmul.f32 %v108, %v111
  %v116 = vld [vmem:[%s4] sm:$0x1]
  %v118 = vperm.slane %v116, 0
  %v120 = vadd.f32 %v113, %v118
  %v121 = vadd.f32 %v114, %v118
  %v122 = vadd.f32 %v115, %v118
  %v123 = vpack.c.bf16 %v121, %v120
  %v124 = vpack.c.bf16 %v122, %v122
  %v125 = vld [vmem:[#allocation2] sm:$0xff]
  %v126 = vld [vmem:[#allocation2 + $0x8] sm:$0xff]
  %v127 = vld [vmem:[#allocation2 + $0x10] sm:$0xff]
  %v128 = vld [vmem:[%s1] sm:$0xf]
  %v129 = vld [vmem:[%s1 + $0x4] sm:$0xf]
  %v130 = vld [vmem:[%s1 + $0x8] sm:$0xf]
  %v131 = vld [vmem:[%s1 + $0xc] sm:$0xf]
  %v136 = vunpack.c.l.b16 %v128
  %v137 = vunpack.c.l.b16 %v129
  %v138 = vunpack.c.l.b16 %v130
  %v139 = vunpack.c.l.b16 %v131
  %v140 = vpack.c.b16 %v137, %v136
  %v141 = vpack.c.b16 %v139, %v138
  %v145 = vsel %vm35, %v123, 0
  %v148 = vsel %vm35, %v124, 0
  %150 = vmatpush.bf16.msra.mxu0 0
  %151 = vmatpush.bf16.msra.mxu0 0
  %152 = vmatpush.bf16.msra.mxu0 0
  %153 = vmatpush.bf16.msra.mxu0 0
  %154 = vmatpush.bf16.msra.mxu0 0
  %155 = vmatpush.bf16.msra.mxu0 0
  %156 = vmatpush.bf16.msra.mxu0 %v141
  %157 = vmatpush.bf16.msra.mxu0 %v140
  %158 = vmatmul.bf16.gmra.mxu0 %v145
  %v159 = vpop.f32.mrf.mxu0
  %v160 = vadd.f32 0.0, %v159
  %v161 = vpop.f32.mrf.mxu0
  %v162 = vadd.f32 0.0, %v161
  %163 = vmatmul.bf16.gmra.mxu0 %v148
  %v164 = vpop.f32.mrf.mxu0
  %v165 = vadd.f32 0.0, %v164
  %v166 = vpop.f32.mrf.mxu0
  %167 = vdwg.mxu0
  %v168 = vadd.f32 %v125, %v160
  %v169 = vadd.f32 %v126, %v162
  %v170 = vadd.f32 %v127, %v165
  %vm171 = vcmask 785408
  %172 = vst.msk [vmem:[#allocation2] sm:$0xff] %vm171, %v168
  %173 = vst.msk [vmem:[#allocation2 + $0x8] sm:$0xff] %vm171, %v169
  %174 = vst.msk [vmem:[#allocation2 + $0x10] sm:$0xff] %vm171, %v170
  // Predicated region
  $region26: #{_gpt_forward_jit.18} parent=0 // pred_check
    %p175 = pneg %p21
  $region27: #{_gpt_forward_jit.18} parent=0 // pred_check_branch
    %177 = sbr.rel (%p175) target = $region29
  $region28: #{_gpt_forward_jit.18} parent=0 // pred_region
    %v178 = vld [vmem:[#allocation2] sm:$0xff]
    %v179 = vld [vmem:[#allocation2 + $0x8] sm:$0xff]
    %v180 = vld [vmem:[#allocation2 + $0x10] sm:$0xff]
    %v181 = vld [vmem:[%s2] sm:$0x1]
    %v183 = vperm.slane %v181, 0
    %v185 = vadd.f32 %v178, %v183
    %v186 = vadd.f32 %v179, %v183
    %v187 = vadd.f32 %v180, %v183
    %v188 = vpack.c.bf16 %v185, %v185
    %v189 = vpack.c.bf16 %v186, %v186
    %v190 = vpack.c.bf16 %v187, %v187
    %vm191 = vcmask 781312
    %192 = vst.msk [vmem:[%s5] sm:$0xf] %vm191, %v188
    %193 = vst.msk [vmem:[%s5 + $0x4] sm:$0xf] %vm191, %v189
    %194 = vst.msk [vmem:[%s5 + $0x8] sm:$0xf] %vm191, %v190
  $region29: #{_gpt_forward_jit.18} parent=0 // pred_fallthru
    _
  // Predicated region
  $region30: #{_gpt_forward_jit.18} parent=0 // pred_check
    _
  $region31: #{_gpt_forward_jit.18} parent=0 // pred_check_branch
    %196 = sbr.rel (0) target = $region33
  $region32: #{_gpt_forward_jit.18} parent=0 // pred_region
    _
  $region33: #{_gpt_forward_jit.18} parent=0 // pred_fallthru
    _
  // Predicated region
  $region34: #{_gpt_forward_jit.18} parent=0 // pred_check
    _
  $region35: #{_gpt_forward_jit.18} parent=0 // pred_check_branch
    %198 = sbr.rel (0) target = $region37
  $region36: #{_gpt_forward_jit.18} parent=0 // pred_region
    _
  $region37: #{_gpt_forward_jit.18} parent=0 // pred_fallthru
    _

// kernel: _gpt_forward_jit.19
$region0: #{_gpt_forward_jit.19}
  #allocation0 [shape = 'u32[]', space=smem, size = 0x4, offset = 0x4, fixed_abs, tag = 'smem constant byte address 0x4 - core index']
  #allocation1 [shape = 'u32[72,128]{1,0:T(1,128)}', space=vmem, size = 0x9000, scoped, tag = 'internal scratch']
  #allocation2 [shape = 'f32[12,1]{1,0:T(8,128)}', space=vmem, size = 0x2000, scoped, tag = 'scratch operand']
  #allocation3 [shape = 'f32[12,1]{1,0:T(8,128)}', space=vmem, size = 0x2000, scoped, tag = 'scratch operand']
  #allocation4 [shape = 'f32[12,8]{1,0:T(8,128)}', space=vmem, size = 0x2000, scoped, tag = 'scratch operand']
  #allocation5 [shape = 's32[1]{0}', space=sflag, size = 0x4, scoped, tag = 'scoped memory for _gpt_forward_jit.19']
  #allocation6 [shape = 'u8[512]{0}', space=smem, size = 0x200, scoped, tag = 'prefetched SMEM operand 0']
  %s0 = inlined_call_operand.vmem [shape: s32[2], index: 0, kind: input, shape index: {}]
  %s1 = inlined_call_operand.vmem [shape: bf16[2,12,12,8], index: 1, kind: input, shape index: {}, may-alias: {1,2,3}]
  %s2 = inlined_call_operand.vmem [shape: bf16[2,12,12,8], index: 2, kind: input, shape index: {}, may-alias: {1,2,3}]
  %s3 = inlined_call_operand.vmem [shape: bf16[2,12,12,8], index: 3, kind: input, shape index: {}, may-alias: {1,2,3}]
  %s4 = inlined_call_operand.vmem [shape: f32[12,8], index: 4, kind: input, shape index: {}, may-alias: {4,6}]
  %s5 = inlined_call_operand.vmem [shape: f32[12,8], index: 5, kind: input, shape index: {}, may-alias: {5,7}]
  %s6 = inlined_call_operand.vmem [shape: f32[12,8], index: 6, kind: input, shape index: {}, may-alias: {4,6}]
  %s7 = inlined_call_operand.vmem [shape: f32[12,8], index: 7, kind: input, shape index: {}, may-alias: {5,7}]
  %s8 = inlined_call_operand.vmem [shape: bf16[8,8], index: 8, kind: input, shape index: {}]
  %s9 = inlined_call_operand.vmem [shape: bf16[2,4,12,8], index: 9, kind: output, shape index: {}]
  %s10 = sld [smem:[#allocation0]]
  $region77: #{_gpt_forward_jit.19} parent=0
    _
  %s12 = ssub.s32 1, %s10
  %s13 = scalar_select 0, %s12, %s10
  %s15 = sshll.u32 %s0, 4
  %s16 = int_to_ptr.vmem [resolvable:$true] %s15
  %18 = dma.vmem_to_smem %s16, 16, [#allocation6], [#allocation5]
  %20 = dma.done [#allocation5], 16
  %21 = sfence
  loop: start=0, step=1, limit=10
  $region2: #{_gpt_forward_jit.19} parent=0 // loop_pre_header
    _
  $region3: #{_gpt_forward_jit.19} parent=0 // loop_header
    %s23 = sphi 0, %s27
    %p24 = scmp.ge.s32.totalorder %s23, 10
    %s30 = sphi 0, %s56
    %s31 = sphi 0, %s52
    %s32 = sphi 0, %s48
    %s33 = sphi 0, %s44
    %s34 = sphi 0, %s30
    %s35 = sphi 0, %s31
    %s36 = sphi 0, %s32
    %s37 = sphi 0, %s33
    %s38 = sphi 0, %s34
    %s39 = sphi 0, %s35
    %s40 = sphi 0, %s36
    %s41 = sphi 0, %s37
    %s63 = sphi 0, %s65
    %s66 = sphi 0, %s63
    %s67 = sphi 0, %s66
    %s83 = sphi 0, %s67
    %s95 = sphi 0, %s97
    %s98 = sphi 0, %s95
    %s99 = sphi 0, %s98
    %s115 = sphi 0, %s99
    %s127 = sphi 0, %s129
    %s130 = sphi 0, %s127
    %s131 = sphi 0, %s130
    %s147 = sphi 0, %s131
    %s153 = sphi 0, %s155
    %s156 = sphi 0, %s153
    %s157 = sphi 0, %s156
    %s173 = sphi 0, %s157
    %s179 = sphi 0, %s181
    %s182 = sphi 0, %s179
    %s183 = sphi 0, %s182
    %s199 = sphi 0, %s183
    %s205 = sphi 0, %s207
    %s208 = sphi 0, %s205
    %s209 = sphi 0, %s208
    %s225 = sphi 0, %s209
    %s231 = sphi 0, %s233
    %s234 = sphi 0, %s231
    %s235 = sphi 0, %s234
    %s251 = sphi 0, %s235
    %s255 = sphi 0, %s255
    %s257 = sphi 0, %s255
    %s258 = sphi 0, %s257
    %s272 = sphi 0, %s258
    %s282 = sphi 0, %s284
    %s285 = sphi 0, %s282
    %s286 = sphi 0, %s285
    %s302 = sphi 0, %s286
  $region4: #{_gpt_forward_jit.19} parent=0 // loop_header_branch
    %26 = sbr.rel (%p24) target = $region8
  $region5: #{_gpt_forward_jit.19} parent=0 // loop_body
    %s28 = ssub.s32 %s23, 1
    %s29 = ssub.s32 %s23, 2
    %s42 = sadd.s32 1, %s33
    %p43 = scmp.ge.s32.totalorder %s42, 1
    %s44 = scalar_select %p43, 0, %s42
    %s45 = sadd.s32 1, %s32
    %s46 = scalar_select %p43, %s45, %s32
    %p47 = scmp.ge.s32.totalorder %s46, 1
    %s48 = scalar_select %p47, 0, %s46
    %s49 = sadd.s32 1, %s31
    %s50 = scalar_select %p47, %s49, %s31
    %p51 = scmp.ge.s32.totalorder %s50, 4
    %s52 = scalar_select %p51, 0, %s50
    %s53 = sadd.s32 1, %s30
    %s54 = scalar_select %p51, %s53, %s30
    %p55 = scmp.ge.s32.totalorder %s54, 2
    %s56 = scalar_select %p55, 0, %s54
    %s57 = ssub.s32 %s30, %s56
    %s58 = ssub.s32 %s31, %s52
    %s59 = sor.u32 %s57, %s58
    %s60 = ssub.s32 %s32, %s48
    %s61 = sor.u32 %s59, %s60
    %p62 = scmp.eq.s32.totalorder %s61, 0
    %s64 = sadd.s32 %s63, 1
    %s65 = scalar_select %p62, %s63, %s64
    %p68 = pneg %p62
    %p69 = scmp.eq.s32.totalorder %s23, 7
    %p70 = por %p68, %p69
    %p71 = scmp.ne.s32.totalorder %s63, %s66
    %p72 = scmp.eq.s32.totalorder %s23, 0
    %p73 = por %p71, %p72
    %p74 = scmp.ne.s32.totalorder %s63, %s66
    %p75 = scmp.eq.s32.totalorder %s28, 7
    %p76 = por %p74, %p75
    %p77 = scmp.ne.s32.totalorder %s66, %s67
    %p78 = scmp.eq.s32.totalorder %s28, 0
    %p79 = por %p77, %p78
    %p80 = scmp.ne.s32.totalorder %s66, %s67
    %p81 = scmp.eq.s32.totalorder %s29, 7
    %p82 = por %p80, %p81
    %p84 = scmp.ne.s32.totalorder %s67, %s83
    %p85 = scmp.eq.s32.totalorder %s29, 0
    %p86 = por %p84, %p85
    %s87 = sadd.s32 %s31, 4
    %s88 = sadd.s32 %s52, 4
    %s89 = ssub.s32 %s30, %s56
    %s90 = ssub.s32 %s87, %s88
    %s91 = sor.u32 %s89, %s90
    %s92 = ssub.s32 %s33, %s44
    %s93 = sor.u32 %s91, %s92
    %p94 = scmp.eq.s32.totalorder %s93, 0
    %s96 = sadd.s32 %s95, 1
    %s97 = scalar_select %p94, %s95, %s96
    %p100 = pneg %p94
    %p101 = scmp.eq.s32.totalorder %s23, 7
    %p102 = por %p100, %p101
    %p103 = scmp.ne.s32.totalorder %s95, %s98
    %p104 = scmp.eq.s32.totalorder %s23, 0
    %p105 = por %p103, %p104
    %p106 = scmp.ne.s32.totalorder %s95, %s98
    %p107 = scmp.eq.s32.totalorder %s28, 7
    %p108 = por %p106, %p107
    %p109 = scmp.ne.s32.totalorder %s98, %s99
    %p110 = scmp.eq.s32.totalorder %s28, 0
    %p111 = por %p109, %p110
    %p112 = scmp.ne.s32.totalorder %s98, %s99
    %p113 = scmp.eq.s32.totalorder %s29, 7
    %p114 = por %p112, %p113
    %p116 = scmp.ne.s32.totalorder %s99, %s115
    %p117 = scmp.eq.s32.totalorder %s29, 0
    %p118 = por %p116, %p117
    %s119 = sadd.s32 %s31, 8
    %s120 = sadd.s32 %s52, 8
    %s121 = ssub.s32 %s30, %s56
    %s122 = ssub.s32 %s119, %s120
    %s123 = sor.u32 %s121, %s122
    %s124 = ssub.s32 %s33, %s44
    %s125 = sor.u32 %s123, %s124
    %p126 = scmp.eq.s32.totalorder %s125, 0
    %s128 = sadd.s32 %s127, 1
    %s129 = scalar_select %p126, %s127, %s128
    %p132 = pneg %p126
    %p133 = scmp.eq.s32.totalorder %s23, 7
    %p134 = por %p132, %p133
    %p135 = scmp.ne.s32.totalorder %s127, %s130
    %p136 = scmp.eq.s32.totalorder %s23, 0
    %p137 = por %p135, %p136
    %p138 = scmp.ne.s32.totalorder %s127, %s130
    %p139 = scmp.eq.s32.totalorder %s28, 7
    %p140 = por %p138, %p139
    %p141 = scmp.ne.s32.totalorder %s130, %s131
    %p142 = scmp.eq.s32.totalorder %s28, 0
    %p143 = por %p141, %p142
    %p144 = scmp.ne.s32.totalorder %s130, %s131
    %p145 = scmp.eq.s32.totalorder %s29, 7
    %p146 = por %p144, %p145
    %p148 = scmp.ne.s32.totalorder %s131, %s147
    %p149 = scmp.eq.s32.totalorder %s29, 0
    %p150 = por %p148, %p149
    %s151 = ssub.s32 %s32, %s48
    %p152 = scmp.eq.s32.totalorder %s151, 0
    %s154 = sadd.s32 %s153, 1
    %s155 = scalar_select %p152, %s153, %s154
    %p158 = pneg %p152
    %p159 = scmp.eq.s32.totalorder %s23, 7
    %p160 = por %p158, %p159
    %p161 = scmp.ne.s32.totalorder %s153, %s156
    %p162 = scmp.eq.s32.totalorder %s23, 0
    %p163 = por %p161, %p162
    %p164 = scmp.ne.s32.totalorder %s153, %s156
    %p165 = scmp.eq.s32.totalorder %s28, 7
    %p166 = por %p164, %p165
    %p167 = scmp.ne.s32.totalorder %s156, %s157
    %p168 = scmp.eq.s32.totalorder %s28, 0
    %p169 = por %p167, %p168
    %p170 = scmp.ne.s32.totalorder %s156, %s157
    %p171 = scmp.eq.s32.totalorder %s29, 7
    %p172 = por %p170, %p171
    %p174 = scmp.ne.s32.totalorder %s157, %s173
    %p175 = scmp.eq.s32.totalorder %s29, 0
    %p176 = por %p174, %p175
    %s177 = ssub.s32 %s32, %s48
    %p178 = scmp.eq.s32.totalorder %s177, 0
    %s180 = sadd.s32 %s179, 1
    %s181 = scalar_select %p178, %s179, %s180
    %p184 = pneg %p178
    %p185 = scmp.eq.s32.totalorder %s23, 7
    %p186 = por %p184, %p185
    %p187 = scmp.ne.s32.totalorder %s179, %s182
    %p188 = scmp.eq.s32.totalorder %s23, 0
    %p189 = por %p187, %p188
    %p190 = scmp.ne.s32.totalorder %s179, %s182
    %p191 = scmp.eq.s32.totalorder %s28, 7
    %p192 = por %p190, %p191
    %p193 = scmp.ne.s32.totalorder %s182, %s183
    %p194 = scmp.eq.s32.totalorder %s28, 0
    %p195 = por %p193, %p194
    %p196 = scmp.ne.s32.totalorder %s182, %s183
    %p197 = scmp.eq.s32.totalorder %s29, 7
    %p198 = por %p196, %p197
    %p200 = scmp.ne.s32.totalorder %s183, %s199
    %p201 = scmp.eq.s32.totalorder %s29, 0
    %p202 = por %p200, %p201
    %s203 = ssub.s32 %s33, %s44
    %p204 = scmp.eq.s32.totalorder %s203, 0
    %s206 = sadd.s32 %s205, 1
    %s207 = scalar_select %p204, %s205, %s206
    %p210 = pneg %p204
    %p211 = scmp.eq.s32.totalorder %s23, 7
    %p212 = por %p210, %p211
    %p213 = scmp.ne.s32.totalorder %s205, %s208
    %p214 = scmp.eq.s32.totalorder %s23, 0
    %p215 = por %p213, %p214
    %p216 = scmp.ne.s32.totalorder %s205, %s208
    %p217 = scmp.eq.s32.totalorder %s28, 7
    %p218 = por %p216, %p217
    %p219 = scmp.ne.s32.totalorder %s208, %s209
    %p220 = scmp.eq.s32.totalorder %s28, 0
    %p221 = por %p219, %p220
    %p222 = scmp.ne.s32.totalorder %s208, %s209
    %p223 = scmp.eq.s32.totalorder %s29, 7
    %p224 = por %p222, %p223
    %p226 = scmp.ne.s32.totalorder %s209, %s225
    %p227 = scmp.eq.s32.totalorder %s29, 0
    %p228 = por %p226, %p227
    %s229 = ssub.s32 %s33, %s44
    %p230 = scmp.eq.s32.totalorder %s229, 0
    %s232 = sadd.s32 %s231, 1
    %s233 = scalar_select %p230, %s231, %s232
    %p236 = pneg %p230
    %p237 = scmp.eq.s32.totalorder %s23, 7
    %p238 = por %p236, %p237
    %p239 = scmp.ne.s32.totalorder %s231, %s234
    %p240 = scmp.eq.s32.totalorder %s23, 0
    %p241 = por %p239, %p240
    %p242 = scmp.ne.s32.totalorder %s231, %s234
    %p243 = scmp.eq.s32.totalorder %s28, 7
    %p244 = por %p242, %p243
    %p245 = scmp.ne.s32.totalorder %s234, %s235
    %p246 = scmp.eq.s32.totalorder %s28, 0
    %p247 = por %p245, %p246
    %p248 = scmp.ne.s32.totalorder %s234, %s235
    %p249 = scmp.eq.s32.totalorder %s29, 7
    %p250 = por %p248, %p249
    %p252 = scmp.ne.s32.totalorder %s235, %s251
    %p253 = scmp.eq.s32.totalorder %s29, 0
    %p254 = por %p252, %p253
    %s256 = sadd.s32 %s255, 1
    %p259 = scmp.eq.s32.totalorder %s23, 7
    %p260 = scmp.ne.s32.totalorder %s255, %s257
    %p261 = scmp.eq.s32.totalorder %s23, 0
    %p262 = por %p260, %p261
    %p263 = scmp.ne.s32.totalorder %s255, %s257
    %p264 = scmp.eq.s32.totalorder %s28, 7
    %p265 = por %p263, %p264
    %p266 = scmp.ne.s32.totalorder %s257, %s258
    %p267 = scmp.eq.s32.totalorder %s28, 0
    %p268 = por %p266, %p267
    %p269 = scmp.ne.s32.totalorder %s257, %s258
    %p270 = scmp.eq.s32.totalorder %s29, 7
    %p271 = por %p269, %p270
    %p273 = scmp.ne.s32.totalorder %s258, %s272
    %p274 = scmp.eq.s32.totalorder %s29, 0
    %p275 = por %p273, %p274
    %s276 = ssub.s32 %s30, %s56
    %s277 = ssub.s32 %s31, %s52
    %s278 = sor.u32 %s276, %s277
    %s279 = ssub.s32 %s32, %s48
    %s280 = sor.u32 %s278, %s279
    %p281 = scmp.eq.s32.totalorder %s280, 0
    %s283 = sadd.s32 %s282, 1
    %s284 = scalar_select %p281, %s282, %s283
    %p287 = pneg %p281
    %p288 = scmp.eq.s32.totalorder %s23, 7
    %p289 = por %p287, %p288
    %p290 = scmp.ne.s32.totalorder %s282, %s285
    %p291 = scmp.eq.s32.totalorder %s23, 0
    %p292 = por %p290, %p291
    %p293 = scmp.ne.s32.totalorder %s282, %s285
    %p294 = scmp.eq.s32.totalorder %s28, 7
    %p295 = por %p293, %p294
    %p296 = scmp.ne.s32.totalorder %s285, %s286
    %p297 = scmp.eq.s32.totalorder %s28, 0
    %p298 = por %p296, %p297
    %p299 = scmp.ne.s32.totalorder %s285, %s286
    %p300 = scmp.eq.s32.totalorder %s29, 7
    %p301 = por %p299, %p300
    %p303 = scmp.ne.s32.totalorder %s286, %s302
    %p304 = scmp.eq.s32.totalorder %s29, 0
    %p305 = por %p303, %p304
    %p306 = scmp.le.s32.totalorder 1, %s23
    %p307 = scmp.lt.s32.totalorder %s23, 9
    %p308 = pnand %p306, %p307
    %p309 = pneg %p308
    // Predicated region
    $region9: #{_gpt_forward_jit.19} parent=5 // pred_check
      _
    $region10: #{_gpt_forward_jit.19} parent=5 // pred_check_branch
      %311 = sbr.rel (%p308) target = $region12
    $region11: #{_gpt_forward_jit.19} parent=5 // pred_region
      %s312 = ssub.s32 %s23, 1
      // Predicated region
      $region13: #{_gpt_forward_jit.19} parent=11 // pred_check
        %p313 = pneg %p169
      $region14: #{_gpt_forward_jit.19} parent=11 // pred_check_branch
        %315 = sbr.rel (%p313) target = $region16
      $region15: #{_gpt_forward_jit.19} parent=11 // pred_region
        %s316 = smul.u32 2, %s36
        %p317 = scmp.lt.s32.totalorder %s316, 1
        %s318 = scalar_select %p317, %s316, 1
        %s319 = smul.addr %s318, 8
        %s320 = scalar_lea.vmem %s4, %s319
        %s321 = smul.u32 2, %s36
      $region16: #{_gpt_forward_jit.19} parent=11 // pred_fallthru
        _
      // Predicated region
      $region17: #{_gpt_forward_jit.19} parent=11 // pred_check
        %p322 = pneg %p195
      $region18: #{_gpt_forward_jit.19} parent=11 // pred_check_branch
        %324 = sbr.rel (%p322) target = $region20
      $region19: #{_gpt_forward_jit.19} parent=11 // pred_region
        %s325 = smul.u32 2, %s36
        %p326 = scmp.lt.s32.totalorder %s325, 1
        %s327 = scalar_select %p326, %s325, 1
        %s328 = smul.addr %s327, 8
        %s329 = scalar_lea.vmem %s5, %s328
        %s330 = smul.u32 2, %s36
      $region20: #{_gpt_forward_jit.19} parent=11 // pred_fallthru
        _
      // Predicated region
      $region21: #{_gpt_forward_jit.19} parent=11 // pred_check
        %p331 = pneg %p221
      $region22: #{_gpt_forward_jit.19} parent=11 // pred_check_branch
        %333 = sbr.rel (%p331) target = $region24
      $region23: #{_gpt_forward_jit.19} parent=11 // pred_region
        %s334 = smul.u32 2, %s37
        %p335 = scmp.lt.s32.totalorder %s334, 1
        %s336 = scalar_select %p335, %s334, 1
        %s337 = smul.addr %s336, 8
        %s338 = scalar_lea.vmem %s6, %s337
        %s339 = smul.u32 2, %s37
      $region24: #{_gpt_forward_jit.19} parent=11 // pred_fallthru
        _
      // Predicated region
      $region25: #{_gpt_forward_jit.19} parent=11 // pred_check
        %p340 = pneg %p247
      $region26: #{_gpt_forward_jit.19} parent=11 // pred_check_branch
        %342 = sbr.rel (%p340) target = $region28
      $region27: #{_gpt_forward_jit.19} parent=11 // pred_region
        %s343 = smul.u32 2, %s37
        %p344 = scmp.lt.s32.totalorder %s343, 1
        %s345 = scalar_select %p344, %s343, 1
        %s346 = smul.addr %s345, 8
        %s347 = scalar_lea.vmem %s7, %s346
        %s348 = smul.u32 2, %s37
      $region28: #{_gpt_forward_jit.19} parent=11 // pred_fallthru
        _
      // Predicated region
      $region29: #{_gpt_forward_jit.19} parent=11 // pred_check
        %p349 = pneg %p268
      $region30: #{_gpt_forward_jit.19} parent=11 // pred_check_branch
        %351 = sbr.rel (%p349) target = $region32
      $region31: #{_gpt_forward_jit.19} parent=11 // pred_region
        _
      $region32: #{_gpt_forward_jit.19} parent=11 // pred_fallthru
        _
    $region12: #{_gpt_forward_jit.19} parent=5 // pred_fallthru
      _
    %p352 = scmp.lt.s32.totalorder %s23, 8
    // Predicated region
    $region33: #{_gpt_forward_jit.19} parent=5 // pred_check
      %p353 = pneg %p352
    $region34: #{_gpt_forward_jit.19} parent=5 // pred_check_branch
      %355 = sbr.rel (%p353) target = $region36
    $region35: #{_gpt_forward_jit.19} parent=5 // pred_region
      // Predicated region
      $region37: #{_gpt_forward_jit.19} parent=35 // pred_check
        %p356 = pneg %p73
      $region38: #{_gpt_forward_jit.19} parent=35 // pred_check_branch
        %358 = sbr.rel (%p356) target = $region40
      $region39: #{_gpt_forward_jit.19} parent=35 // pred_region
        %s359 = smul.u32 2, %s32
        %p360 = scmp.lt.s32.totalorder %s30, 1
        %s361 = scalar_select %p360, %s30, 1
        %p362 = scmp.lt.s32.totalorder %s31, 11
        %s363 = scalar_select %p362, %s31, 11
        %p364 = scmp.lt.s32.totalorder %s359, 1
        %s365 = scalar_select %p364, %s359, 1
        %s366 = smul.addr %s363, 2
        %s367 = sadd.s32 %s365, %s366
        %s368 = smul.addr %s361, 24
        %s369 = sadd.s32 %s367, %s368
        %s370 = smul.addr %s369, 4
        %s371 = scalar_lea.vmem %s1, %s370
        %s372 = smul.u32 2, %s32
      $region40: #{_gpt_forward_jit.19} parent=35 // pred_fallthru
        _
      // Predicated region
      $region41: #{_gpt_forward_jit.19} parent=35 // pred_check
        %p373 = pneg %p105
      $region42: #{_gpt_forward_jit.19} parent=35 // pred_check_branch
        %375 = sbr.rel (%p373) target = $region44
      $region43: #{_gpt_forward_jit.19} parent=35 // pred_region
        %s376 = sadd.s32 %s31, 4
        %s377 = smul.u32 2, %s33
        %p378 = scmp.lt.s32.totalorder %s30, 1
        %s379 = scalar_select %p378, %s30, 1
        %p380 = scmp.lt.s32.totalorder %s376, 11
        %s381 = scalar_select %p380, %s376, 11
        %p382 = scmp.lt.s32.totalorder %s377, 1
        %s383 = scalar_select %p382, %s377, 1
        %s384 = smul.addr %s381, 2
        %s385 = sadd.s32 %s383, %s384
        %s386 = smul.addr %s379, 24
        %s387 = sadd.s32 %s385, %s386
        %s388 = smul.addr %s387, 4
        %s389 = scalar_lea.vmem %s2, %s388
        %s390 = sadd.s32 %s31, 4
        %s391 = smul.u32 2, %s33
      $region44: #{_gpt_forward_jit.19} parent=35 // pred_fallthru
        _
      // Predicated region
      $region45: #{_gpt_forward_jit.19} parent=35 // pred_check
        %p392 = pneg %p137
      $region46: #{_gpt_forward_jit.19} parent=35 // pred_check_branch
        %394 = sbr.rel (%p392) target = $region48
      $region47: #{_gpt_forward_jit.19} parent=35 // pred_region
        %s395 = sadd.s32 %s31, 8
        %s396 = smul.u32 2, %s33
        %p397 = scmp.lt.s32.totalorder %s30, 1
        %s398 = scalar_select %p397, %s30, 1
        %p399 = scmp.lt.s32.totalorder %s395, 11
        %s400 = scalar_select %p399, %s395, 11
        %p401 = scmp.lt.s32.totalorder %s396, 1
        %s402 = scalar_select %p401, %s396, 1
        %s403 = smul.addr %s400, 2
        %s404 = sadd.s32 %s402, %s403
        %s405 = smul.addr %s398, 24
        %s406 = sadd.s32 %s404, %s405
        %s407 = smul.addr %s406, 4
        %s408 = scalar_lea.vmem %s3, %s407
        %s409 = sadd.s32 %s31, 8
        %s410 = smul.u32 2, %s33
      $region48: #{_gpt_forward_jit.19} parent=35 // pred_fallthru
        _
    $region36: #{_gpt_forward_jit.19} parent=5 // pred_fallthru
      _
    %p411 = scmp.le.s32.totalorder 1, %s23
    %p412 = scmp.lt.s32.totalorder %s23, 9
    %p413 = pnand %p411, %p412
    %p414 = pneg %p413
    // Predicated region
    $region49: #{_gpt_forward_jit.19} parent=5 // pred_check
      _
    $region50: #{_gpt_forward_jit.19} parent=5 // pred_check_branch
      %416 = sbr.rel (%p413) target = $region52
    $region51: #{_gpt_forward_jit.19} parent=5 // pred_region
      %s417 = ssub.s32 %s23, 1
      %s418 = smul.u32 2, %s36
      %p419 = scmp.lt.s32.totalorder %s34, 1
      %s420 = scalar_select %p419, %s34, 1
      %p421 = scmp.lt.s32.totalorder %s35, 11
      %s422 = scalar_select %p421, %s35, 11
      %p423 = scmp.lt.s32.totalorder %s418, 1
      %s424 = scalar_select %p423, %s418, 1
      %s425 = smul.addr %s422, 2
      %s426 = sadd.s32 %s424, %s425
      %s427 = smul.addr %s420, 24
      %s428 = sadd.s32 %s426, %s427
      %s429 = smul.addr %s428, 4
      %s430 = scalar_lea.vmem %s1, %s429
      %p431 = pneg %p79
      %p432 = pneg %p76
      %s433 = sadd.s32 %s35, 4
      %s434 = smul.u32 2, %s37
      %p435 = scmp.lt.s32.totalorder %s34, 1
      %s436 = scalar_select %p435, %s34, 1
      %p437 = scmp.lt.s32.totalorder %s433, 11
      %s438 = scalar_select %p437, %s433, 11
      %p439 = scmp.lt.s32.totalorder %s434, 1
      %s440 = scalar_select %p439, %s434, 1
      %s441 = smul.addr %s438, 2
      %s442 = sadd.s32 %s440, %s441
      %s443 = smul.addr %s436, 24
      %s444 = sadd.s32 %s442, %s443
      %s445 = smul.addr %s444, 4
      %s446 = scalar_lea.vmem %s2, %s445
      %p447 = pneg %p111
      %p448 = pneg %p108
      %s449 = sadd.s32 %s35, 8
      %s450 = smul.u32 2, %s37
      %p451 = scmp.lt.s32.totalorder %s34, 1
      %s452 = scalar_select %p451, %s34, 1
      %p453 = scmp.lt.s32.totalorder %s449, 11
      %s454 = scalar_select %p453, %s449, 11
      %p455 = scmp.lt.s32.totalorder %s450, 1
      %s456 = scalar_select %p455, %s450, 1
      %s457 = smul.addr %s454, 2
      %s458 = sadd.s32 %s456, %s457
      %s459 = smul.addr %s452, 24
      %s460 = sadd.s32 %s458, %s459
      %s461 = smul.addr %s460, 4
      %s462 = scalar_lea.vmem %s3, %s461
      %p463 = pneg %p143
      %p464 = pneg %p140
      %s465 = smul.u32 2, %s36
      %p466 = scmp.lt.s32.totalorder %s465, 1
      %s467 = scalar_select %p466, %s465, 1
      %s468 = smul.addr %s467, 8
      %s469 = scalar_lea.vmem %s4, %s468
      %p470 = pneg %p169
      %p471 = pneg %p166
      %s472 = smul.u32 2, %s36
      %p473 = scmp.lt.s32.totalorder %s472, 1
      %s474 = scalar_select %p473, %s472, 1
      %s475 = smul.addr %s474, 8
      %s476 = scalar_lea.vmem %s5, %s475
      %p477 = pneg %p195
      %p478 = pneg %p192
      %s479 = smul.u32 2, %s37
      %p480 = scmp.lt.s32.totalorder %s479, 1
      %s481 = scalar_select %p480, %s479, 1
      %s482 = smul.addr %s481, 8
      %s483 = scalar_lea.vmem %s6, %s482
      %p484 = pneg %p221
      %p485 = pneg %p218
      %s486 = smul.u32 2, %s37
      %p487 = scmp.lt.s32.totalorder %s486, 1
      %s488 = scalar_select %p487, %s486, 1
      %s489 = smul.addr %s488, 8
      %s490 = scalar_lea.vmem %s7, %s489
      %p491 = pneg %p247
      %p492 = pneg %p244
      %p493 = pneg %p268
      %p494 = pneg %p265
      %p495 = pneg %p298
      %p496 = pneg %p295
      %s497 = smul.u32 2, %s36
      %p498 = scmp.lt.s32.totalorder %s34, 1
      %s499 = scalar_select %p498, %s34, 1
      %p500 = scmp.lt.s32.totalorder %s35, 3
      %s501 = scalar_select %p500, %s35, 3
      %p502 = scmp.lt.s32.totalorder %s497, 1
      %s503 = scalar_select %p502, %s497, 1
      %s504 = smul.addr %s501, 2
      %s505 = sadd.s32 %s503, %s504
      %s506 = smul.addr %s499, 8
      %s507 = sadd.s32 %s505, %s506
      %s508 = smul.addr %s507, 4
      %s509 = scalar_lea.vmem %s9, %s508
      %s510 = smul.u32 2, %s36
      %p511 = scmp.lt.s32.totalorder %s34, 1
      %s512 = scalar_select %p511, %s34, 1
      %p513 = scmp.lt.s32.totalorder %s35, 11
      %s514 = scalar_select %p513, %s35, 11
      %p515 = scmp.lt.s32.totalorder %s510, 1
      %s516 = scalar_select %p515, %s510, 1
      %s517 = smul.addr %s514, 2
      %s518 = sadd.s32 %s516, %s517
      %s519 = smul.addr %s512, 24
      %s520 = sadd.s32 %s518, %s519
      %s521 = smul.addr %s520, 4
      %s522 = scalar_lea.vmem %s1, %s521
      %s523 = smul.u32 2, %s36
      %s524 = sadd.s32 %s35, 4
      %s525 = smul.u32 2, %s37
      %p526 = scmp.lt.s32.totalorder %s34, 1
      %s527 = scalar_select %p526, %s34, 1
      %p528 = scmp.lt.s32.totalorder %s524, 11
      %s529 = scalar_select %p528, %s524, 11
      %p530 = scmp.lt.s32.totalorder %s525, 1
      %s531 = scalar_select %p530, %s525, 1
      %s532 = smul.addr %s529, 2
      %s533 = sadd.s32 %s531, %s532
      %s534 = smul.addr %s527, 24
      %s535 = sadd.s32 %s533, %s534
      %s536 = smul.addr %s535, 4
      %s537 = scalar_lea.vmem %s2, %s536
      %s538 = sadd.s32 %s35, 4
      %s539 = smul.u32 2, %s37
      %s540 = sadd.s32 %s35, 8
      %s541 = smul.u32 2, %s37
      %p542 = scmp.lt.s32.totalorder %s34, 1
      %s543 = scalar_select %p542, %s34, 1
      %p544 = scmp.lt.s32.totalorder %s540, 11
      %s545 = scalar_select %p544, %s540, 11
      %p546 = scmp.lt.s32.totalorder %s541, 1
      %s547 = scalar_select %p546, %s541, 1
      %s548 = smul.addr %s545, 2
      %s549 = sadd.s32 %s547, %s548
      %s550 = smul.addr %s543, 24
      %s551 = sadd.s32 %s549, %s550
      %s552 = smul.addr %s551, 4
      %s553 = scalar_lea.vmem %s3, %s552
      %s554 = sadd.s32 %s35, 8
      %s555 = smul.u32 2, %s37
      %s556 = smul.u32 2, %s36
      %p557 = scmp.lt.s32.totalorder %s556, 1
      %s558 = scalar_select %p557, %s556, 1
      %s559 = smul.addr %s558, 8
      %s560 = scalar_lea.vmem %s4, %s559
      %s561 = smul.u32 2, %s36
      %s562 = smul.u32 2, %s36
      %p563 = scmp.lt.s32.totalorder %s562, 1
      %s564 = scalar_select %p563, %s562, 1
      %s565 = smul.addr %s564, 8
      %s566 = scalar_lea.vmem %s5, %s565
      %s567 = smul.u32 2, %s36
      %s568 = smul.u32 2, %s37
      %p569 = scmp.lt.s32.totalorder %s568, 1
      %s570 = scalar_select %p569, %s568, 1
      %s571 = smul.addr %s570, 8
      %s572 = scalar_lea.vmem %s6, %s571
      %s573 = smul.u32 2, %s37
      %s574 = smul.u32 2, %s37
      %p575 = scmp.lt.s32.totalorder %s574, 1
      %s576 = scalar_select %p575, %s574, 1
      %s577 = smul.addr %s576, 8
      %s578 = scalar_lea.vmem %s7, %s577
      %s579 = smul.u32 2, %s37
      %s580 = smul.u32 2, %s36
      %p581 = scmp.lt.s32.totalorder %s34, 1
      %s582 = scalar_select %p581, %s34, 1
      %p583 = scmp.lt.s32.totalorder %s35, 3
      %s584 = scalar_select %p583, %s35, 3
      %p585 = scmp.lt.s32.totalorder %s580, 1
      %s586 = scalar_select %p585, %s580, 1
      %s587 = smul.addr %s584, 2
      %s588 = sadd.s32 %s586, %s587
      %s589 = smul.addr %s582, 8
      %s590 = sadd.s32 %s588, %s589
      %s591 = smul.addr %s590, 4
      %s592 = scalar_lea.vmem %s9, %s591
      %s593 = smul.u32 2, %s36
      %p595 = scmp.eq.s32.totalorder %s37, 0
      // Predicated region
      $region53: #{_gpt_forward_jit.19} parent=51 // pred_check
        %p596 = pneg %p595
      $region54: #{_gpt_forward_jit.19} parent=51 // pred_check_branch
        %598 = sbr.rel (%p596) target = $region56
      $region55: #{_gpt_forward_jit.19} parent=51 // pred_region
        %vm599 = vcmask 7168
        %600 = vst.msk [vmem:[#allocation2] sm:$0xff] %vm599, -1e+30
        %vm601 = vcmask 3072
        %602 = vst.msk [vmem:[#allocation2 + $0x8] sm:$0xf] %vm601, -1e+30
        %603 = vst.msk [vmem:[#allocation3] sm:$0xff] %vm599, 0.0
        %604 = vst.msk [vmem:[#allocation3 + $0x8] sm:$0xf] %vm601, 0.0
        %vm605 = vcmask 64512
        %606 = vst.msk [vmem:[#allocation4] sm:$0xff] %vm605, 0.0
        %vm607 = vcmask 60416
        %608 = vst.msk [vmem:[#allocation4 + $0x8] sm:$0xf] %vm607, 0.0
      $region56: #{_gpt_forward_jit.19} parent=51 // pred_fallthru
        _
      %s609 = sld [smem:[#allocation6 + %s34]]
      %s610 = smul.u32 %s36, 12
      %s611 = smul.u32 %s37, 12
      %p612 = scmp.lt.s32.totalorder %s611, %s609
      %s613 = sadd.s32 %s610, 11
      %p614 = scmp.le.s32.totalorder %s611, %s613
      %p615 = pnand %p612, %p614
      %p616 = pneg %p615
      // Predicated region
      $region57: #{_gpt_forward_jit.19} parent=51 // pred_check
        _
      $region58: #{_gpt_forward_jit.19} parent=51 // pred_check_branch
        %618 = sbr.rel (%p615) target = $region60
      $region59: #{_gpt_forward_jit.19} parent=51 // pred_region
        %v619 = vld [vmem:[%s522] sm:$0xf]
        %v620 = vld [vmem:[%s522 + $0x4] sm:$0x3]
        %v621 = vld [vmem:[%s560] sm:$0xff]
        %v622 = vld [vmem:[%s560 + $0x8] sm:$0xf]
        %v623 = vld [vmem:[%s566] sm:$0xff]
        %v624 = vld [vmem:[%s566 + $0x8] sm:$0xf]
        %v625 = vld [vmem:[%s8] sm:$0xf]
        %v626 = vunpack.c.l.bf16 %v619
        %v627 = vunpack.c.l.bf16 %v620
        %v630 = vunpack.c.l.b16 %v619
        %v631 = vunpack.c.l.b16 %v620
        %v632 = vpack.c.b16 %v631, %v630
        %vm633 = vcmask 64512
        %v635 = vsel %vm633, %v632, 0
        %vm637 = vcmask 1043456
        %v639 = vsel %vm637, %v625, 0
        %641 = vmatpush.bf16.msra.mxu0 0
        %642 = vmatpush.bf16.msra.mxu0 0
        %643 = vmatpush.bf16.msra.mxu0 0
        %644 = vmatpush.bf16.msra.mxu0 0
        %645 = vmatpush.bf16.msra.mxu0 0
        %646 = vmatpush.bf16.msra.mxu0 0
        %647 = vmatpush.bf16.msra.mxu0 0
        %648 = vmatpush.bf16.msra.mxu0 %v639
        %649 = vmatmul.bf16.gmra.mxu0 %v635
        %v650 = vpop.f32.mrf.mxu0
        %v651 = vadd.f32 0.0, %v650
        %v652 = vpop.f32.mrf.mxu0
        %v653 = vadd.f32 0.0, %v652
        %654 = vdwg.mxu0
        %v655 = vmul.f32 %v626, %v621
        %v656 = vmul.f32 %v627, %v622
        %v657 = vmul.f32 %v651, %v623
        %v658 = vmul.f32 %v653, %v624
        %v659 = vadd.f32 %v655, %v657
        %v660 = vadd.f32 %v656, %v658
        %v661 = vpack.c.bf16 %v660, %v659
        %v662 = vld [vmem:[%s537] sm:$0xf]
        %v663 = vld [vmem:[%s537 + $0x4] sm:$0x3]
        %v664 = vld [vmem:[%s572] sm:$0xff]
        %v665 = vld [vmem:[%s572 + $0x8] sm:$0xf]
        %v666 = vld [vmem:[%s578] sm:$0xff]
        %v667 = vld [vmem:[%s578 + $0x8] sm:$0xf]
        %v668 = vunpack.c.l.bf16 %v662
        %v669 = vunpack.c.l.bf16 %v663
        %v672 = vunpack.c.l.b16 %v662
        %v673 = vunpack.c.l.b16 %v663
        %v674 = vpack.c.b16 %v673, %v672
        %v676 = vsel %vm633, %v674, 0
        %678 = vmatpush.bf16.msra.mxu0 0
        %679 = vmatpush.bf16.msra.mxu0 0
        %680 = vmatpush.bf16.msra.mxu0 0
        %681 = vmatpush.bf16.msra.mxu0 0
        %682 = vmatpush.bf16.msra.mxu0 0
        %683 = vmatpush.bf16.msra.mxu0 0
        %684 = vmatpush.bf16.msra.mxu0 0
        %685 = vmatpush.bf16.msra.mxu0 %v639
        %686 = vmatmul.bf16.gmra.mxu0 %v676
        %v687 = vpop.f32.mrf.mxu0
        %v688 = vadd.f32 0.0, %v687
        %v689 = vpop.f32.mrf.mxu0
        %v690 = vadd.f32 0.0, %v689
        %691 = vdwg.mxu0
        %v692 = vmul.f32 %v668, %v664
        %v693 = vmul.f32 %v669, %v665
        %v694 = vmul.f32 %v688, %v666
        %v695 = vmul.f32 %v690, %v667
        %v696 = vadd.f32 %v692, %v694
        %v697 = vadd.f32 %v693, %v695
        %v698 = vpack.c.bf16 %v697, %v696
        %v700 = vsel %vm633, %v661, 0
        %v703 = vsel %vm633, %v698, 0
        %705 = vmatpush.bf16.xpose.msra.mxu0 0
        %706 = vmatpush.bf16.xpose.msra.mxu0 0
        %707 = vmatpush.bf16.xpose.msra.mxu0 0
        %708 = vmatpush.bf16.xpose.msra.mxu0 0
        %709 = vmatpush.bf16.xpose.msra.mxu0 0
        %710 = vmatpush.bf16.xpose.msra.mxu0 0
        %711 = vmatpush.bf16.xpose.msra.mxu0 0
        %712 = vmatpush.bf16.xpose.msra.mxu0 %v703
        %713 = vmatmul.bf16.gmra.mxu0 %v700
        %v714 = vpop.f32.mrf.mxu0
        %v715 = vadd.f32 0.0, %v714
        %v716 = vpop.f32.mrf.mxu0
        %v717 = vadd.f32 0.0, %v716
        %718 = vdwg.mxu0
        %v719 = vmul.f32 %v715, 0.35355338
        %v720 = vmul.f32 %v717, 0.35355338
        %v721 = vlaneseq
        %v722 = vand.u32 %v721, 127
        %v723 = vstv %s611
        %v724 = vadd.s32 %v723, %v722
        %v725 = vstv %s609
        %vm726 = vcmp.lt.s32.totalorder %v724, %v725
        %v727 = vlaneseq
        %v728 = vshrl.u32 %v727, 7
        %v729 = vadd.s32 %v728, 8
        %v730 = vstv %s610
        %v731 = vadd.s32 %v730, %v728
        %v732 = vadd.s32 %v730, %v729
        %vm733 = vcmp.le.s32.totalorder %v724, %v731
        %vm734 = vcmp.le.s32.totalorder %v724, %v732
        %vm735 = vmand %vm726, %vm733
        %vm736 = vmand %vm726, %vm734
        %v737 = vsel %vm735, %v719, -1e+30
        %v738 = vsel %vm736, %v720, -1e+30
        %v739 = vld [vmem:[#allocation2] sm:$0xff]
        %v740 = vld [vmem:[#allocation2 + $0x8] sm:$0xf]
        %vm741 = vcmask 97280
        %v742 = vsel %vm741, %v737, -inf
        %743 = vmax.xlane.f32.xlu0 %v742
        %v744 = vpop.xlane.xlu0 %743
        %vm745 = vcmask 93184
        %v746 = vsel %vm745, %v738, -inf
        %747 = vmax.xlane.f32.xlu0 %v746
        %v748 = vpop.xlane.xlu0 %747
        %v749 = vmax.f32 %v739, %v744
        %v750 = vmax.f32 %v740, %v748
        %v751 = vsub.f32 %v739, %v749
        %v752 = vsub.f32 %v740, %v750
        %v753 = vmul.f32 %v751, 1.442695
        %v754 = vpow.pop %v753
        %v755 = vmul.f32 %v752, 1.442695
        %v756 = vpow.pop %v755
        %758 = vset.pattern.permute.xlu0 0
        %759 = vperm.xlu0 %758, %v749
        %v760 = vpop.permute.xlu0 %759
        %763 = vset.pattern.permute.xlu0 0
        %764 = vperm.xlu0 %763, %v750
        %v765 = vpop.permute.xlu0 %764
        %v767 = vsub.f32 %v737, %v760
        %v768 = vsub.f32 %v738, %v765
        %v769 = vmul.f32 %v767, 1.442695
        %v770 = vpow.pop %v769
        %v771 = vmul.f32 %v768, 1.442695
        %v772 = vpow.pop %v771
        %v773 = vsel %vm735, %v770, 0.0
        %v774 = vsel %vm736, %v772, 0.0
        %v775 = vld [vmem:[#allocation3] sm:$0xff]
        %v776 = vld [vmem:[#allocation3 + $0x8] sm:$0xf]
        %v777 = vmul.f32 %v754, %v775
        %v778 = vmul.f32 %v756, %v776
        %v779 = vsel %vm741, %v773, 0.0
        %780 = vadd.xlane.f32.xlu0 %v779
        %v781 = vpop.xlane.xlu0 %780
        %v782 = vsel %vm745, %v774, 0.0
        %783 = vadd.xlane.f32.xlu0 %v782
        %v784 = vpop.xlane.xlu0 %783
        %v785 = vadd.f32 %v777, %v781
        %v786 = vadd.f32 %v778, %v784
        %vm787 = vcmask 7168
        %788 = vst.msk [vmem:[#allocation3] sm:$0xff] %vm787, %v785
        %vm789 = vcmask 3072
        %790 = vst.msk [vmem:[#allocation3 + $0x8] sm:$0xf] %vm789, %v786
        %v791 = vld [vmem:[#allocation4] sm:$0xff]
        %v792 = vld [vmem:[#allocation4 + $0x8] sm:$0xf]
        %794 = vset.pattern.permute.xlu0 0
        %795 = vperm.xlu0 %794, %v754
        %v796 = vpop.permute.xlu0 %795
        %799 = vset.pattern.permute.xlu0 0
        %800 = vperm.xlu0 %799, %v756
        %v801 = vpop.permute.xlu0 %800
        %v803 = vmul.f32 %v796, %v791
        %v804 = vmul.f32 %v801, %v792
        %v805 = vpack.c.bf16 %v774, %v773
        %v806 = vld [vmem:[%s553] sm:$0xf]
        %v807 = vld [vmem:[%s553 + $0x4] sm:$0x3]
        %v810 = vunpack.c.l.b16 %v806
        %v811 = vunpack.c.l.b16 %v807
        %v812 = vpack.c.b16 %v811, %v810
        %v814 = vsel %vm741, %v805, 0
        %vm816 = vcmask 1045504
        %v818 = vsel %vm816, %v812, 0
        %820 = vmatpush.bf16.msra.mxu0 0
        %821 = vmatpush.bf16.msra.mxu0 0
        %822 = vmatpush.bf16.msra.mxu0 0
        %823 = vmatpush.bf16.msra.mxu0 0
        %824 = vmatpush.bf16.msra.mxu0 0
        %825 = vmatpush.bf16.msra.mxu0 0
        %826 = vmatpush.bf16.msra.mxu0 0
        %827 = vmatpush.bf16.msra.mxu0 %v818
        %828 = vmatmul.bf16.gmra.mxu0 %v814
        %v829 = vpop.f32.mrf.mxu0
        %v830 = vadd.f32 0.0, %v829
        %v831 = vpop.f32.mrf.mxu0
        %v832 = vadd.f32 0.0, %v831
        %833 = vdwg.mxu0
        %v834 = vadd.f32 %v803, %v830
        %v835 = vadd.f32 %v804, %v832
        %836 = vst.msk [vmem:[#allocation4] sm:$0xff] %vm633, %v834
        %vm837 = vcmask 60416
        %838 = vst.msk [vmem:[#allocation4 + $0x8] sm:$0xf] %vm837, %v835
        %839 = vst.msk [vmem:[#allocation2] sm:$0xff] %vm787, %v749
        %840 = vst.msk [vmem:[#allocation2 + $0x8] sm:$0xf] %vm789, %v750
      $region60: #{_gpt_forward_jit.19} parent=51 // pred_fallthru
        _
      // Predicated region
      $region61: #{_gpt_forward_jit.19} parent=51 // pred_check
        %p841 = pneg %p595
      $region62: #{_gpt_forward_jit.19} parent=51 // pred_check_branch
        %843 = sbr.rel (%p841) target = $region64
      $region63: #{_gpt_forward_jit.19} parent=51 // pred_region
        %v844 = vld [vmem:[#allocation3] sm:$0xff]
        %v845 = vld [vmem:[#allocation3 + $0x8] sm:$0xf]
        %v846 = vmax.f32 %v844, 1e-30
        %v847 = vmax.f32 %v845, 1e-30
        %v848 = vld [vmem:[#allocation4] sm:$0xff]
        %v849 = vld [vmem:[#allocation4 + $0x8] sm:$0xf]
        %v850 = vrcp.pop %v846
        %v851 = vrcp.pop %v847
        %853 = vset.pattern.permute.xlu0 0
        %854 = vperm.xlu0 %853, %v850
        %v855 = vpop.permute.xlu0 %854
        %858 = vset.pattern.permute.xlu0 0
        %859 = vperm.xlu0 %858, %v851
        %v860 = vpop.permute.xlu0 %859
        %v862 = vmul.f32 %v848, %v855
        %v863 = vmul.f32 %v849, %v860
        %v864 = vpack.c.bf16 %v862, %v862
        %v865 = vpack.c.bf16 %v863, %v863
        %vm866 = vcmask 60416
        %867 = vst.msk [vmem:[%s592] sm:$0xf] %vm866, %v864
        %vm868 = vcmask 58368
        %869 = vst.msk [vmem:[%s592 + $0x4] sm:$0x3] %vm868, %v865
      $region64: #{_gpt_forward_jit.19} parent=51 // pred_fallthru
        _
      %s870 = smul.u32 2, %s36
      %p871 = scmp.lt.s32.totalorder %s34, 1
      %s872 = scalar_select %p871, %s34, 1
      %p873 = scmp.lt.s32.totalorder %s35, 3
      %s874 = scalar_select %p873, %s35, 3
      %p875 = scmp.lt.s32.totalorder %s870, 1
      %s876 = scalar_select %p875, %s870, 1
      %s877 = smul.addr %s874, 2
      %s878 = sadd.s32 %s876, %s877
      %s879 = smul.addr %s872, 8
      %s880 = sadd.s32 %s878, %s879
      %s881 = smul.addr %s880, 4
      %s882 = scalar_lea.vmem %s9, %s881
      // Predicated region
      $region65: #{_gpt_forward_jit.19} parent=51 // pred_check
        %p883 = pneg %p295
      $region66: #{_gpt_forward_jit.19} parent=51 // pred_check_branch
        %885 = sbr.rel (%p883) target = $region68
      $region67: #{_gpt_forward_jit.19} parent=51 // pred_region
        %s886 = smul.u32 2, %s36
      $region68: #{_gpt_forward_jit.19} parent=51 // pred_fallthru
        _
    $region52: #{_gpt_forward_jit.19} parent=5 // pred_fallthru
      _
    %p887 = scmp.le.s32.totalorder 2, %s23
    // Predicated region
    $region69: #{_gpt_forward_jit.19} parent=5 // pred_check
      %p888 = pneg %p887
    $region70: #{_gpt_forward_jit.19} parent=5 // pred_check_branch
      %890 = sbr.rel (%p888) target = $region72
    $region71: #{_gpt_forward_jit.19} parent=5 // pred_region
      %s891 = ssub.s32 %s23, 2
      // Predicated region
      $region73: #{_gpt_forward_jit.19} parent=71 // pred_check
        %p892 = pneg %p301
      $region74: #{_gpt_forward_jit.19} parent=71 // pred_check_branch
        %894 = sbr.rel (%p892) target = $region76
      $region75: #{_gpt_forward_jit.19} parent=71 // pred_region
        %s895 = smul.u32 2, %s40
        %p896 = scmp.lt.s32.totalorder %s38, 1
        %s897 = scalar_select %p896, %s38, 1
        %p898 = scmp.lt.s32.totalorder %s39, 3
        %s899 = scalar_select %p898, %s39, 3
        %p900 = scmp.lt.s32.totalorder %s895, 1
        %s901 = scalar_select %p900, %s895, 1
        %s902 = smul.addr %s899, 2
        %s903 = sadd.s32 %s901, %s902
        %s904 = smul.addr %s897, 8
        %s905 = sadd.s32 %s903, %s904
        %s906 = smul.addr %s905, 4
        %s907 = scalar_lea.vmem %s9, %s906
      $region76: #{_gpt_forward_jit.19} parent=71 // pred_fallthru
        _
    $region72: #{_gpt_forward_jit.19} parent=5 // pred_fallthru
      _
  $region6: #{_gpt_forward_jit.19} parent=0 // loop_footer
    %s27 = sadd.s32 1, %s23
  $region7: #{_gpt_forward_jit.19} parent=0 // loop_footer_branch
    %22 = sbr.rel target = $region3
  $region8: #{_gpt_forward_jit.19} parent=0 // loop_exit
    _

// kernel: _gpt_forward_jit.22
$region0: #{_gpt_forward_jit.22}
  #allocation0 [shape = 'u32[]', space=smem, size = 0x4, offset = 0x4, fixed_abs, tag = 'smem constant byte address 0x4 - core index']
  #allocation1 [shape = 'u32[72,128]{1,0:T(1,128)}', space=vmem, size = 0x9000, scoped, tag = 'internal scratch']
  #allocation2 [shape = 'f32[12,64]{1,0:T(8,128)}', space=vmem, size = 0x2000, scoped, tag = 'scratch operand']
  %s0 = inlined_call_operand.vmem [shape: bf16[12,32], index: 0, kind: input, shape index: {}]
  %s1 = inlined_call_operand.vmem [shape: bf16[32,64], index: 1, kind: input, shape index: {}]
  %s2 = inlined_call_operand.vmem [shape: f32[1,64], index: 2, kind: input, shape index: {}]
  %s3 = inlined_call_operand.vmem [shape: bf16[12,64], index: 3, kind: output, shape index: {}]
  %s4 = sld [smem:[#allocation0]]
  $region30: #{_gpt_forward_jit.22} parent=0
    _
  %s6 = ssub.s32 1, %s4
  %s7 = scalar_select 0, %s6, %s4
  // Predicated region
  $region2: #{_gpt_forward_jit.22} parent=0 // pred_check
    _
  $region3: #{_gpt_forward_jit.22} parent=0 // pred_check_branch
    %9 = sbr.rel (0) target = $region5
  $region4: #{_gpt_forward_jit.22} parent=0 // pred_region
    _
  $region5: #{_gpt_forward_jit.22} parent=0 // pred_fallthru
    _
  // Predicated region
  $region6: #{_gpt_forward_jit.22} parent=0 // pred_check
    _
  $region7: #{_gpt_forward_jit.22} parent=0 // pred_check_branch
    %11 = sbr.rel (0) target = $region9
  $region8: #{_gpt_forward_jit.22} parent=0 // pred_region
    _
  $region9: #{_gpt_forward_jit.22} parent=0 // pred_fallthru
    _
  // Predicated region
  $region10: #{_gpt_forward_jit.22} parent=0 // pred_check
    _
  $region11: #{_gpt_forward_jit.22} parent=0 // pred_check_branch
    %13 = sbr.rel (0) target = $region13
  $region12: #{_gpt_forward_jit.22} parent=0 // pred_region
    _
  $region13: #{_gpt_forward_jit.22} parent=0 // pred_fallthru
    _
  %p15 = scmp.eq.s32.totalorder 0, 0
  // Predicated region
  $region14: #{_gpt_forward_jit.22} parent=0 // pred_check
    %p16 = pneg %p15
  $region15: #{_gpt_forward_jit.22} parent=0 // pred_check_branch
    %18 = sbr.rel (%p16) target = $region17
  $region16: #{_gpt_forward_jit.22} parent=0 // pred_region
    %vm19 = vcmask 523264
    %20 = vst.msk [vmem:[#allocation2] sm:$0xff] %vm19, 0.0
    %vm21 = vcmask 519168
    %22 = vst.msk [vmem:[#allocation2 + $0x8] sm:$0xf] %vm21, 0.0
  $region17: #{_gpt_forward_jit.22} parent=0 // pred_fallthru
    _
  %v23 = vld [vmem:[%s0] sm:$0xf]
  %v24 = vld [vmem:[%s0 + $0x4] sm:$0x3]
  %v25 = vld [vmem:[#allocation2] sm:$0xff]
  %v26 = vld [vmem:[#allocation2 + $0x8] sm:$0xf]
  %v27 = vld [vmem:[%s1] sm:$0xf]
  %v28 = vld [vmem:[%s1 + $0x4] sm:$0xf]
  %v29 = vld [vmem:[%s1 + $0x8] sm:$0xf]
  %v30 = vld [vmem:[%s1 + $0xc] sm:$0xf]
  %v33 = vunpack.c.l.b16 %v23
  %v34 = vunpack.c.l.b16 %v24
  %v35 = vpack.c.b16 %v34, %v33
  %v40 = vunpack.c.l.b16 %v27
  %v41 = vunpack.c.l.b16 %v28
  %v42 = vunpack.c.l.b16 %v29
  %v43 = vunpack.c.l.b16 %v30
  %v44 = vpack.c.b16 %v41, %v40
  %v45 = vpack.c.b16 %v43, %v42
  %vm48 = vcmask 261120
  %v50 = vsel %vm48, %v35, 0
  %52 = vmatpush.bf16.msra.mxu0 0
  %53 = vmatpush.bf16.msra.mxu0 0
  %54 = vmatpush.bf16.msra.mxu0 0
  %55 = vmatpush.bf16.msra.mxu0 0
  %56 = vmatpush.bf16.msra.mxu0 0
  %57 = vmatpush.bf16.msra.mxu0 0
  %58 = vmatpush.bf16.msra.mxu0 %v45
  %59 = vmatpush.bf16.msra.mxu0 %v44
  %60 = vmatmul.bf16.gmra.mxu0 %v50
  %v61 = vpop.f32.mrf.mxu0
  %v62 = vadd.f32 0.0, %v61
  %v63 = vpop.f32.mrf.mxu0
  %v64 = vadd.f32 0.0, %v63
  %65 = vdwg.mxu0
  %v66 = vadd.f32 %v25, %v62
  %v67 = vadd.f32 %v26, %v64
  %vm68 = vcmask 523264
  %69 = vst.msk [vmem:[#allocation2] sm:$0xff] %vm68, %v66
  %vm70 = vcmask 519168
  %71 = vst.msk [vmem:[#allocation2 + $0x8] sm:$0xf] %vm70, %v67
  // Predicated region
  $region18: #{_gpt_forward_jit.22} parent=0 // pred_check
    %p72 = pneg %p15
  $region19: #{_gpt_forward_jit.22} parent=0 // pred_check_branch
    %74 = sbr.rel (%p72) target = $region21
  $region20: #{_gpt_forward_jit.22} parent=0 // pred_region
    %v75 = vld [vmem:[#allocation2] sm:$0xff]
    %v76 = vld [vmem:[#allocation2 + $0x8] sm:$0xf]
    %v77 = vld [vmem:[%s2] sm:$0x1]
    %v79 = vperm.slane %v77, 0
    %v81 = vadd.f32 %v75, %v79
    %v82 = vadd.f32 %v76, %v79
    %v83 = vpack.c.bf16 %v81, %v81
    %v84 = vpack.c.bf16 %v82, %v82
    %85 = vst.msk [vmem:[%s3] sm:$0xf] %vm70, %v83
    %vm86 = vcmask 517120
    %87 = vst.msk [vmem:[%s3 + $0x4] sm:$0x3] %vm86, %v84
  $region21: #{_gpt_forward_jit.22} parent=0 // pred_fallthru
    _
  // Predicated region
  $region22: #{_gpt_forward_jit.22} parent=0 // pred_check
    _
  $region23: #{_gpt_forward_jit.22} parent=0 // pred_check_branch
    %89 = sbr.rel (0) target = $region25
  $region24: #{_gpt_forward_jit.22} parent=0 // pred_region
    _
  $region25: #{_gpt_forward_jit.22} parent=0 // pred_fallthru
    _
  // Predicated region
  $region26: #{_gpt_forward_jit.22} parent=0 // pred_check
    _
  $region27: #{_gpt_forward_jit.22} parent=0 // pred_check_branch
    %91 = sbr.rel (0) target = $region29
  $region28: #{_gpt_forward_jit.22} parent=0 // pred_region
    _
  $region29: #{_gpt_forward_jit.22} parent=0 // pred_fallthru
    _

// kernel: _gpt_forward_jit.20
$region0: #{_gpt_forward_jit.20}
  #allocation0 [shape = 'u32[]', space=smem, size = 0x4, offset = 0x4, fixed_abs, tag = 'smem constant byte address 0x4 - core index']
  #allocation1 [shape = 'u32[72,128]{1,0:T(1,128)}', space=vmem, size = 0x9000, scoped, tag = 'internal scratch']
  #allocation2 [shape = 'f32[24,32]{1,0:T(8,128)}', space=vmem, size = 0x3000, scoped, tag = 'scratch operand']
  %s0 = inlined_call_operand.vmem [shape: bf16[24,32], index: 0, kind: input, shape index: {}]
  %s1 = inlined_call_operand.vmem [shape: bf16[32,32], index: 1, kind: input, shape index: {}]
  %s2 = inlined_call_operand.vmem [shape: f32[1,32], index: 2, kind: input, shape index: {}]
  %s3 = inlined_call_operand.vmem [shape: bf16[24,32], index: 3, kind: input, shape index: {}]
  %s4 = inlined_call_operand.vmem [shape: bf16[24,32], index: 4, kind: output, shape index: {}]
  %s5 = sld [smem:[#allocation0]]
  $region34: #{_gpt_forward_jit.20} parent=0
    _
  %s7 = ssub.s32 1, %s5
  %s8 = scalar_select 0, %s7, %s5
  // Predicated region
  $region2: #{_gpt_forward_jit.20} parent=0 // pred_check
    _
  $region3: #{_gpt_forward_jit.20} parent=0 // pred_check_branch
    %10 = sbr.rel (0) target = $region5
  $region4: #{_gpt_forward_jit.20} parent=0 // pred_region
    _
  $region5: #{_gpt_forward_jit.20} parent=0 // pred_fallthru
    _
  // Predicated region
  $region6: #{_gpt_forward_jit.20} parent=0 // pred_check
    _
  $region7: #{_gpt_forward_jit.20} parent=0 // pred_check_branch
    %12 = sbr.rel (0) target = $region9
  $region8: #{_gpt_forward_jit.20} parent=0 // pred_region
    _
  $region9: #{_gpt_forward_jit.20} parent=0 // pred_fallthru
    _
  // Predicated region
  $region10: #{_gpt_forward_jit.20} parent=0 // pred_check
    _
  $region11: #{_gpt_forward_jit.20} parent=0 // pred_check_branch
    %14 = sbr.rel (0) target = $region13
  $region12: #{_gpt_forward_jit.20} parent=0 // pred_region
    _
  $region13: #{_gpt_forward_jit.20} parent=0 // pred_fallthru
    _
  // Predicated region
  $region14: #{_gpt_forward_jit.20} parent=0 // pred_check
    _
  $region15: #{_gpt_forward_jit.20} parent=0 // pred_check_branch
    %16 = sbr.rel (0) target = $region17
  $region16: #{_gpt_forward_jit.20} parent=0 // pred_region
    _
  $region17: #{_gpt_forward_jit.20} parent=0 // pred_fallthru
    _
  %p18 = scmp.eq.s32.totalorder 0, 0
  // Predicated region
  $region18: #{_gpt_forward_jit.20} parent=0 // pred_check
    %p19 = pneg %p18
  $region19: #{_gpt_forward_jit.20} parent=0 // pred_check_branch
    %21 = sbr.rel (%p19) target = $region21
  $region20: #{_gpt_forward_jit.20} parent=0 // pred_region
    %vm22 = vcmask 261120
    %23 = vst.msk [vmem:[#allocation2] sm:$0xff] %vm22, 0.0
    %24 = vst.msk [vmem:[#allocation2 + $0x8] sm:$0xff] %vm22, 0.0
    %25 = vst.msk [vmem:[#allocation2 + $0x10] sm:$0xff] %vm22, 0.0
  $region21: #{_gpt_forward_jit.20} parent=0 // pred_fallthru
    _
  %v26 = vld [vmem:[%s0] sm:$0xf]
  %v27 = vld [vmem:[%s0 + $0x4] sm:$0xf]
  %v28 = vld [vmem:[%s0 + $0x8] sm:$0xf]
  %v29 = vld [vmem:[#allocation2] sm:$0xff]
  %v30 = vld [vmem:[#allocation2 + $0x8] sm:$0xff]
  %v31 = vld [vmem:[#allocation2 + $0x10] sm:$0xff]
  %v32 = vld [vmem:[%s1] sm:$0xf]
  %v33 = vld [vmem:[%s1 + $0x4] sm:$0xf]
  %v34 = vld [vmem:[%s1 + $0x8] sm:$0xf]
  %v35 = vld [vmem:[%s1 + $0xc] sm:$0xf]
  %v39 = vunpack.c.l.b16 %v26
  %v40 = vunpack.c.l.b16 %v27
  %v41 = vunpack.c.l.b16 %v28
  %v42 = vpack.c.b16 %v40, %v39
  %v43 = vpack.c.b16 %v41, %v41
  %v48 = vunpack.c.l.b16 %v32
  %v49 = vunpack.c.l.b16 %v33
  %v50 = vunpack.c.l.b16 %v34
  %v51 = vunpack.c.l.b16 %v35
  %v52 = vpack.c.b16 %v49, %v48
  %v53 = vpack.c.b16 %v51, %v50
  %vm56 = vcmask 261120
  %v58 = vsel %vm56, %v42, 0
  %v61 = vsel %vm56, %v43, 0
  %63 = vmatpush.bf16.msra.mxu0 0
  %64 = vmatpush.bf16.msra.mxu0 0
  %65 = vmatpush.bf16.msra.mxu0 0
  %66 = vmatpush.bf16.msra.mxu0 0
  %67 = vmatpush.bf16.msra.mxu0 0
  %68 = vmatpush.bf16.msra.mxu0 0
  %69 = vmatpush.bf16.msra.mxu0 %v53
  %70 = vmatpush.bf16.msra.mxu0 %v52
  %71 = vmatmul.bf16.gmra.mxu0 %v58
  %v72 = vpop.f32.mrf.mxu0
  %v73 = vadd.f32 0.0, %v72
  %v74 = vpop.f32.mrf.mxu0
  %v75 = vadd.f32 0.0, %v74
  %76 = vmatmul.bf16.gmra.mxu0 %v61
  %v77 = vpop.f32.mrf.mxu0
  %v78 = vadd.f32 0.0, %v77
  %v79 = vpop.f32.mrf.mxu0
  %80 = vdwg.mxu0
  %v81 = vadd.f32 %v29, %v73
  %v82 = vadd.f32 %v30, %v75
  %v83 = vadd.f32 %v31, %v78
  %84 = vst.msk [vmem:[#allocation2] sm:$0xff] %vm56, %v81
  %85 = vst.msk [vmem:[#allocation2 + $0x8] sm:$0xff] %vm56, %v82
  %86 = vst.msk [vmem:[#allocation2 + $0x10] sm:$0xff] %vm56, %v83
  // Predicated region
  $region22: #{_gpt_forward_jit.20} parent=0 // pred_check
    %p87 = pneg %p18
  $region23: #{_gpt_forward_jit.20} parent=0 // pred_check_branch
    %89 = sbr.rel (%p87) target = $region25
  $region24: #{_gpt_forward_jit.20} parent=0 // pred_region
    %v90 = vld [vmem:[#allocation2] sm:$0xff]
    %v91 = vld [vmem:[#allocation2 + $0x8] sm:$0xff]
    %v92 = vld [vmem:[#allocation2 + $0x10] sm:$0xff]
    %v93 = vld [vmem:[%s2] sm:$0x1]
    %v95 = vperm.slane %v93, 0
    %v97 = vadd.f32 %v90, %v95
    %v98 = vadd.f32 %v91, %v95
    %v99 = vadd.f32 %v92, %v95
    %v100 = vld [vmem:[%s3] sm:$0xf]
    %v101 = vld [vmem:[%s3 + $0x4] sm:$0xf]
    %v102 = vld [vmem:[%s3 + $0x8] sm:$0xf]
    %v103 = vunpack.c.l.bf16 %v100
    %v104 = vunpack.c.l.bf16 %v101
    %v105 = vunpack.c.l.bf16 %v102
    %v106 = vadd.f32 %v97, %v103
    %v107 = vadd.f32 %v98, %v104
    %v108 = vadd.f32 %v99, %v105
    %v109 = vpack.c.bf16 %v106, %v106
    %v110 = vpack.c.bf16 %v107, %v107
    %v111 = vpack.c.bf16 %v108, %v108
    %vm112 = vcmask 257024
    %113 = vst.msk [vmem:[%s4] sm:$0xf] %vm112, %v109
    %114 = vst.msk [vmem:[%s4 + $0x4] sm:$0xf] %vm112, %v110
    %115 = vst.msk [vmem:[%s4 + $0x8] sm:$0xf] %vm112, %v111
  $region25: #{_gpt_forward_jit.20} parent=0 // pred_fallthru
    _
  // Predicated region
  $region26: #{_gpt_forward_jit.20} parent=0 // pred_check
    _
  $region27: #{_gpt_forward_jit.20} parent=0 // pred_check_branch
    %117 = sbr.rel (0) target = $region29
  $region28: #{_gpt_forward_jit.20} parent=0 // pred_region
    _
  $region29: #{_gpt_forward_jit.20} parent=0 // pred_fallthru
    _
  // Predicated region
  $region30: #{_gpt_forward_jit.20} parent=0 // pred_check
    _
  $region31: #{_gpt_forward_jit.20} parent=0 // pred_check_branch
    %119 = sbr.rel (0) target = $region33
  $region32: #{_gpt_forward_jit.20} parent=0 // pred_region
    _
  $region33: #{_gpt_forward_jit.20} parent=0 // pred_fallthru
    _

// kernel: _gpt_forward_jit.23
$region0: #{_gpt_forward_jit.23}
  #allocation0 [shape = 'u32[]', space=smem, size = 0x4, offset = 0x4, fixed_abs, tag = 'smem constant byte address 0x4 - core index']
  #allocation1 [shape = 'u32[72,128]{1,0:T(1,128)}', space=vmem, size = 0x9000, scoped, tag = 'internal scratch']
  #allocation2 [shape = 'f32[12,1]{1,0:T(8,128)}', space=vmem, size = 0x2000, scoped, tag = 'scratch operand']
  #allocation3 [shape = 'f32[12,1]{1,0:T(8,128)}', space=vmem, size = 0x2000, scoped, tag = 'scratch operand']
  #allocation4 [shape = 'f32[12,8]{1,0:T(8,128)}', space=vmem, size = 0x2000, scoped, tag = 'scratch operand']
  #allocation5 [shape = 's32[1]{0}', space=sflag, size = 0x4, scoped, tag = 'scoped memory for _gpt_forward_jit.23']
  #allocation6 [shape = 'u8[512]{0}', space=smem, size = 0x200, scoped, tag = 'prefetched SMEM operand 0']
  %s0 = inlined_call_operand.vmem [shape: s32[2], index: 0, kind: input, shape index: {}]
  %s1 = inlined_call_operand.vmem [shape: bf16[2,4,12,8], index: 1, kind: input, shape index: {}]
  %s2 = inlined_call_operand.vmem [shape: bf16[2,8,6,8], index: 2, kind: input, shape index: {}, may-alias: {2,3}]
  %s3 = inlined_call_operand.vmem [shape: bf16[2,8,6,8], index: 3, kind: input, shape index: {}, may-alias: {2,3}]
  %s4 = inlined_call_operand.vmem [shape: bf16[2,4,12,8], index: 4, kind: output, shape index: {}]
  %s5 = sld [smem:[#allocation0]]
  $region57: #{_gpt_forward_jit.23} parent=0
    _
  %s7 = ssub.s32 1, %s5
  %s8 = scalar_select 0, %s7, %s5
  %s10 = sshll.u32 %s0, 4
  %s11 = int_to_ptr.vmem [resolvable:$true] %s10
  %13 = dma.vmem_to_smem %s11, 16, [#allocation6], [#allocation5]
  %15 = dma.done [#allocation5], 16
  %16 = sfence
  loop: start=0, step=1, limit=10
  $region2: #{_gpt_forward_jit.23} parent=0 // loop_pre_header
    _
  $region3: #{_gpt_forward_jit.23} parent=0 // loop_header
    %s18 = sphi 0, %s22
    %p19 = scmp.ge.s32.totalorder %s18, 10
    %s25 = sphi 0, %s51
    %s26 = sphi 0, %s47
    %s27 = sphi 0, %s43
    %s28 = sphi 0, %s39
    %s29 = sphi 0, %s25
    %s30 = sphi 0, %s26
    %s31 = sphi 0, %s27
    %s32 = sphi 0, %s28
    %s33 = sphi 0, %s29
    %s34 = sphi 0, %s30
    %s35 = sphi 0, %s31
    %s36 = sphi 0, %s32
    %s58 = sphi 0, %s60
    %s61 = sphi 0, %s58
    %s62 = sphi 0, %s61
    %s78 = sphi 0, %s62
    %s88 = sphi 0, %s90
    %s91 = sphi 0, %s88
    %s92 = sphi 0, %s91
    %s108 = sphi 0, %s92
    %s120 = sphi 0, %s122
    %s123 = sphi 0, %s120
    %s124 = sphi 0, %s123
    %s140 = sphi 0, %s124
    %s150 = sphi 0, %s152
    %s153 = sphi 0, %s150
    %s154 = sphi 0, %s153
    %s170 = sphi 0, %s154
  $region4: #{_gpt_forward_jit.23} parent=0 // loop_header_branch
    %21 = sbr.rel (%p19) target = $region8
  $region5: #{_gpt_forward_jit.23} parent=0 // loop_body
    %s23 = ssub.s32 %s18, 1
    %s24 = ssub.s32 %s18, 2
    %s37 = sadd.s32 1, %s28
    %p38 = scmp.ge.s32.totalorder %s37, 1
    %s39 = scalar_select %p38, 0, %s37
    %s40 = sadd.s32 1, %s27
    %s41 = scalar_select %p38, %s40, %s27
    %p42 = scmp.ge.s32.totalorder %s41, 1
    %s43 = scalar_select %p42, 0, %s41
    %s44 = sadd.s32 1, %s26
    %s45 = scalar_select %p42, %s44, %s26
    %p46 = scmp.ge.s32.totalorder %s45, 4
    %s47 = scalar_select %p46, 0, %s45
    %s48 = sadd.s32 1, %s25
    %s49 = scalar_select %p46, %s48, %s25
    %p50 = scmp.ge.s32.totalorder %s49, 2
    %s51 = scalar_select %p50, 0, %s49
    %s52 = ssub.s32 %s25, %s51
    %s53 = ssub.s32 %s26, %s47
    %s54 = sor.u32 %s52, %s53
    %s55 = ssub.s32 %s27, %s43
    %s56 = sor.u32 %s54, %s55
    %p57 = scmp.eq.s32.totalorder %s56, 0
    %s59 = sadd.s32 %s58, 1
    %s60 = scalar_select %p57, %s58, %s59
    %p63 = pneg %p57
    %p64 = scmp.eq.s32.totalorder %s18, 7
    %p65 = por %p63, %p64
    %p66 = scmp.ne.s32.totalorder %s58, %s61
    %p67 = scmp.eq.s32.totalorder %s18, 0
    %p68 = por %p66, %p67
    %p69 = scmp.ne.s32.totalorder %s58, %s61
    %p70 = scmp.eq.s32.totalorder %s23, 7
    %p71 = por %p69, %p70
    %p72 = scmp.ne.s32.totalorder %s61, %s62
    %p73 = scmp.eq.s32.totalorder %s23, 0
    %p74 = por %p72, %p73
    %p75 = scmp.ne.s32.totalorder %s61, %s62
    %p76 = scmp.eq.s32.totalorder %s24, 7
    %p77 = por %p75, %p76
    %p79 = scmp.ne.s32.totalorder %s62, %s78
    %p80 = scmp.eq.s32.totalorder %s24, 0
    %p81 = por %p79, %p80
    %s82 = ssub.s32 %s25, %s51
    %s83 = ssub.s32 %s26, %s47
    %s84 = sor.u32 %s82, %s83
    %s85 = ssub.s32 %s28, %s39
    %s86 = sor.u32 %s84, %s85
    %p87 = scmp.eq.s32.totalorder %s86, 0
    %s89 = sadd.s32 %s88, 1
    %s90 = scalar_select %p87, %s88, %s89
    %p93 = pneg %p87
    %p94 = scmp.eq.s32.totalorder %s18, 7
    %p95 = por %p93, %p94
    %p96 = scmp.ne.s32.totalorder %s88, %s91
    %p97 = scmp.eq.s32.totalorder %s18, 0
    %p98 = por %p96, %p97
    %p99 = scmp.ne.s32.totalorder %s88, %s91
    %p100 = scmp.eq.s32.totalorder %s23, 7
    %p101 = por %p99, %p100
    %p102 = scmp.ne.s32.totalorder %s91, %s92
    %p103 = scmp.eq.s32.totalorder %s23, 0
    %p104 = por %p102, %p103
    %p105 = scmp.ne.s32.totalorder %s91, %s92
    %p106 = scmp.eq.s32.totalorder %s24, 7
    %p107 = por %p105, %p106
    %p109 = scmp.ne.s32.totalorder %s92, %s108
    %p110 = scmp.eq.s32.totalorder %s24, 0
    %p111 = por %p109, %p110
    %s112 = sadd.s32 %s26, 4
    %s113 = sadd.s32 %s47, 4
    %s114 = ssub.s32 %s25, %s51
    %s115 = ssub.s32 %s112, %s113
    %s116 = sor.u32 %s114, %s115
    %s117 = ssub.s32 %s28, %s39
    %s118 = sor.u32 %s116, %s117
    %p119 = scmp.eq.s32.totalorder %s118, 0
    %s121 = sadd.s32 %s120, 1
    %s122 = scalar_select %p119, %s120, %s121
    %p125 = pneg %p119
    %p126 = scmp.eq.s32.totalorder %s18, 7
    %p127 = por %p125, %p126
    %p128 = scmp.ne.s32.totalorder %s120, %s123
    %p129 = scmp.eq.s32.totalorder %s18, 0
    %p130 = por %p128, %p129
    %p131 = scmp.ne.s32.totalorder %s120, %s123
    %p132 = scmp.eq.s32.totalorder %s23, 7
    %p133 = por %p131, %p132
    %p134 = scmp.ne.s32.totalorder %s123, %s124
    %p135 = scmp.eq.s32.totalorder %s23, 0
    %p136 = por %p134, %p135
    %p137 = scmp.ne.s32.totalorder %s123, %s124
    %p138 = scmp.eq.s32.totalorder %s24, 7
    %p139 = por %p137, %p138
    %p141 = scmp.ne.s32.totalorder %s124, %s140
    %p142 = scmp.eq.s32.totalorder %s24, 0
    %p143 = por %p141, %p142
    %s144 = ssub.s32 %s25, %s51
    %s145 = ssub.s32 %s26, %s47
    %s146 = sor.u32 %s144, %s145
    %s147 = ssub.s32 %s27, %s43
    %s148 = sor.u32 %s146, %s147
    %p149 = scmp.eq.s32.totalorder %s148, 0
    %s151 = sadd.s32 %s150, 1
    %s152 = scalar_select %p149, %s150, %s151
    %p155 = pneg %p149
    %p156 = scmp.eq.s32.totalorder %s18, 7
    %p157 = por %p155, %p156
    %p158 = scmp.ne.s32.totalorder %s150, %s153
    %p159 = scmp.eq.s32.totalorder %s18, 0
    %p160 = por %p158, %p159
    %p161 = scmp.ne.s32.totalorder %s150, %s153
    %p162 = scmp.eq.s32.totalorder %s23, 7
    %p163 = por %p161, %p162
    %p164 = scmp.ne.s32.totalorder %s153, %s154
    %p165 = scmp.eq.s32.totalorder %s23, 0
    %p166 = por %p164, %p165
    %p167 = scmp.ne.s32.totalorder %s153, %s154
    %p168 = scmp.eq.s32.totalorder %s24, 7
    %p169 = por %p167, %p168
    %p171 = scmp.ne.s32.totalorder %s154, %s170
    %p172 = scmp.eq.s32.totalorder %s24, 0
    %p173 = por %p171, %p172
    %p174 = scmp.le.s32.totalorder 1, %s18
    %p175 = scmp.lt.s32.totalorder %s18, 9
    %p176 = pnand %p174, %p175
    %p177 = pneg %p176
    // Predicated region
    $region9: #{_gpt_forward_jit.23} parent=5 // pred_check
      _
    $region10: #{_gpt_forward_jit.23} parent=5 // pred_check_branch
      %179 = sbr.rel (%p176) target = $region12
    $region11: #{_gpt_forward_jit.23} parent=5 // pred_region
      %s180 = ssub.s32 %s18, 1
    $region12: #{_gpt_forward_jit.23} parent=5 // pred_fallthru
      _
    %p181 = scmp.lt.s32.totalorder %s18, 8
    // Predicated region
    $region13: #{_gpt_forward_jit.23} parent=5 // pred_check
      %p182 = pneg %p181
    $region14: #{_gpt_forward_jit.23} parent=5 // pred_check_branch
      %184 = sbr.rel (%p182) target = $region16
    $region15: #{_gpt_forward_jit.23} parent=5 // pred_region
      // Predicated region
      $region17: #{_gpt_forward_jit.23} parent=15 // pred_check
        %p185 = pneg %p68
      $region18: #{_gpt_forward_jit.23} parent=15 // pred_check_branch
        %187 = sbr.rel (%p185) target = $region20
      $region19: #{_gpt_forward_jit.23} parent=15 // pred_region
        %s188 = smul.u32 2, %s27
        %p189 = scmp.lt.s32.totalorder %s25, 1
        %s190 = scalar_select %p189, %s25, 1
        %p191 = scmp.lt.s32.totalorder %s26, 3
        %s192 = scalar_select %p191, %s26, 3
        %p193 = scmp.lt.s32.totalorder %s188, 1
        %s194 = scalar_select %p193, %s188, 1
        %s195 = smul.addr %s192, 2
        %s196 = sadd.s32 %s194, %s195
        %s197 = smul.addr %s190, 8
        %s198 = sadd.s32 %s196, %s197
        %s199 = smul.addr %s198, 4
        %s200 = scalar_lea.vmem %s1, %s199
        %s201 = smul.u32 2, %s27
      $region20: #{_gpt_forward_jit.23} parent=15 // pred_fallthru
        _
      // Predicated region
      $region21: #{_gpt_forward_jit.23} parent=15 // pred_check
        %p202 = pneg %p98
      $region22: #{_gpt_forward_jit.23} parent=15 // pred_check_branch
        %204 = sbr.rel (%p202) target = $region24
      $region23: #{_gpt_forward_jit.23} parent=15 // pred_region
        %p205 = scmp.lt.s32.totalorder %s25, 1
        %s206 = scalar_select %p205, %s25, 1
        %p207 = scmp.lt.s32.totalorder %s26, 7
        %s208 = scalar_select %p207, %s26, 7
        %p209 = scmp.lt.s32.totalorder %s28, 0
        %s210 = scalar_select %p209, %s28, 0
        %s211 = sadd.s32 %s210, %s208
        %s212 = smul.addr %s206, 8
        %s213 = sadd.s32 %s211, %s212
        %s214 = smul.addr %s213, 4
        %s215 = scalar_lea.vmem %s2, %s214
      $region24: #{_gpt_forward_jit.23} parent=15 // pred_fallthru
        _
      // Predicated region
      $region25: #{_gpt_forward_jit.23} parent=15 // pred_check
        %p216 = pneg %p130
      $region26: #{_gpt_forward_jit.23} parent=15 // pred_check_branch
        %218 = sbr.rel (%p216) target = $region28
      $region27: #{_gpt_forward_jit.23} parent=15 // pred_region
        %s219 = sadd.s32 %s26, 4
        %p220 = scmp.lt.s32.totalorder %s25, 1
        %s221 = scalar_select %p220, %s25, 1
        %p222 = scmp.lt.s32.totalorder %s219, 7
        %s223 = scalar_select %p222, %s219, 7
        %p224 = scmp.lt.s32.totalorder %s28, 0
        %s225 = scalar_select %p224, %s28, 0
        %s226 = sadd.s32 %s225, %s223
        %s227 = smul.addr %s221, 8
        %s228 = sadd.s32 %s226, %s227
        %s229 = smul.addr %s228, 4
        %s230 = scalar_lea.vmem %s3, %s229
        %s231 = sadd.s32 %s26, 4
      $region28: #{_gpt_forward_jit.23} parent=15 // pred_fallthru
        _
    $region16: #{_gpt_forward_jit.23} parent=5 // pred_fallthru
      _
    %p232 = scmp.le.s32.totalorder 1, %s18
    %p233 = scmp.lt.s32.totalorder %s18, 9
    %p234 = pnand %p232, %p233
    %p235 = pneg %p234
    // Predicated region
    $region29: #{_gpt_forward_jit.23} parent=5 // pred_check
      _
    $region30: #{_gpt_forward_jit.23} parent=5 // pred_check_branch
      %237 = sbr.rel (%p234) target = $region32
    $region31: #{_gpt_forward_jit.23} parent=5 // pred_region
      %s238 = ssub.s32 %s18, 1
      %s239 = smul.u32 2, %s31
      %p240 = scmp.lt.s32.totalorder %s29, 1
      %s241 = scalar_select %p240, %s29, 1
      %p242 = scmp.lt.s32.totalorder %s30, 3
      %s243 = scalar_select %p242, %s30, 3
      %p244 = scmp.lt.s32.totalorder %s239, 1
      %s245 = scalar_select %p244, %s239, 1
      %s246 = smul.addr %s243, 2
      %s247 = sadd.s32 %s245, %s246
      %s248 = smul.addr %s241, 8
      %s249 = sadd.s32 %s247, %s248
      %s250 = smul.addr %s249, 4
      %s251 = scalar_lea.vmem %s1, %s250
      %p252 = pneg %p74
      %p253 = pneg %p71
      %p254 = scmp.lt.s32.totalorder %s29, 1
      %s255 = scalar_select %p254, %s29, 1
      %p256 = scmp.lt.s32.totalorder %s30, 7
      %s257 = scalar_select %p256, %s30, 7
      %p258 = scmp.lt.s32.totalorder %s32, 0
      %s259 = scalar_select %p258, %s32, 0
      %s260 = sadd.s32 %s259, %s257
      %s261 = smul.addr %s255, 8
      %s262 = sadd.s32 %s260, %s261
      %s263 = smul.addr %s262, 4
      %s264 = scalar_lea.vmem %s2, %s263
      %p265 = pneg %p104
      %p266 = pneg %p101
      %s267 = sadd.s32 %s30, 4
      %p268 = scmp.lt.s32.totalorder %s29, 1
      %s269 = scalar_select %p268, %s29, 1
      %p270 = scmp.lt.s32.totalorder %s267, 7
      %s271 = scalar_select %p270, %s267, 7
      %p272 = scmp.lt.s32.totalorder %s32, 0
      %s273 = scalar_select %p272, %s32, 0
      %s274 = sadd.s32 %s273, %s271
      %s275 = smul.addr %s269, 8
      %s276 = sadd.s32 %s274, %s275
      %s277 = smul.addr %s276, 4
      %s278 = scalar_lea.vmem %s3, %s277
      %p279 = pneg %p136
      %p280 = pneg %p133
      %p281 = pneg %p166
      %p282 = pneg %p163
      %s283 = smul.u32 2, %s31
      %p284 = scmp.lt.s32.totalorder %s29, 1
      %s285 = scalar_select %p284, %s29, 1
      %p286 = scmp.lt.s32.totalorder %s30, 3
      %s287 = scalar_select %p286, %s30, 3
      %p288 = scmp.lt.s32.totalorder %s283, 1
      %s289 = scalar_select %p288, %s283, 1
      %s290 = smul.addr %s287, 2
      %s291 = sadd.s32 %s289, %s290
      %s292 = smul.addr %s285, 8
      %s293 = sadd.s32 %s291, %s292
      %s294 = smul.addr %s293, 4
      %s295 = scalar_lea.vmem %s4, %s294
      %s296 = smul.u32 2, %s31
      %p297 = scmp.lt.s32.totalorder %s29, 1
      %s298 = scalar_select %p297, %s29, 1
      %p299 = scmp.lt.s32.totalorder %s30, 3
      %s300 = scalar_select %p299, %s30, 3
      %p301 = scmp.lt.s32.totalorder %s296, 1
      %s302 = scalar_select %p301, %s296, 1
      %s303 = smul.addr %s300, 2
      %s304 = sadd.s32 %s302, %s303
      %s305 = smul.addr %s298, 8
      %s306 = sadd.s32 %s304, %s305
      %s307 = smul.addr %s306, 4
      %s308 = scalar_lea.vmem %s1, %s307
      %s309 = smul.u32 2, %s31
      %p310 = scmp.lt.s32.totalorder %s29, 1
      %s311 = scalar_select %p310, %s29, 1
      %p312 = scmp.lt.s32.totalorder %s30, 7
      %s313 = scalar_select %p312, %s30, 7
      %p314 = scmp.lt.s32.totalorder %s32, 0
      %s315 = scalar_select %p314, %s32, 0
      %s316 = sadd.s32 %s315, %s313
      %s317 = smul.addr %s311, 8
      %s318 = sadd.s32 %s316, %s317
      %s319 = smul.addr %s318, 4
      %s320 = scalar_lea.vmem %s2, %s319
      %s321 = sadd.s32 %s30, 4
      %p322 = scmp.lt.s32.totalorder %s29, 1
      %s323 = scalar_select %p322, %s29, 1
      %p324 = scmp.lt.s32.totalorder %s321, 7
      %s325 = scalar_select %p324, %s321, 7
      %p326 = scmp.lt.s32.totalorder %s32, 0
      %s327 = scalar_select %p326, %s32, 0
      %s328 = sadd.s32 %s327, %s325
      %s329 = smul.addr %s323, 8
      %s330 = sadd.s32 %s328, %s329
      %s331 = smul.addr %s330, 4
      %s332 = scalar_lea.vmem %s3, %s331
      %s333 = sadd.s32 %s30, 4
      %s334 = smul.u32 2, %s31
      %p335 = scmp.lt.s32.totalorder %s29, 1
      %s336 = scalar_select %p335, %s29, 1
      %p337 = scmp.lt.s32.totalorder %s30, 3
      %s338 = scalar_select %p337, %s30, 3
      %p339 = scmp.lt.s32.totalorder %s334, 1
      %s340 = scalar_select %p339, %s334, 1
      %s341 = smul.addr %s338, 2
      %s342 = sadd.s32 %s340, %s341
      %s343 = smul.addr %s336, 8
      %s344 = sadd.s32 %s342, %s343
      %s345 = smul.addr %s344, 4
      %s346 = scalar_lea.vmem %s4, %s345
      %s347 = smul.u32 2, %s31
      %p349 = scmp.eq.s32.totalorder %s32, 0
      // Predicated region
      $region33: #{_gpt_forward_jit.23} parent=31 // pred_check
        %p350 = pneg %p349
      $region34: #{_gpt_forward_jit.23} parent=31 // pred_check_branch
        %352 = sbr.rel (%p350) target = $region36
      $region35: #{_gpt_forward_jit.23} parent=31 // pred_region
        %vm353 = vcmask 7168
        %354 = vst.msk [vmem:[#allocation2] sm:$0xff] %vm353, -1e+30
        %vm355 = vcmask 3072
        %356 = vst.msk [vmem:[#allocation2 + $0x8] sm:$0xf] %vm355, -1e+30
        %357 = vst.msk [vmem:[#allocation3] sm:$0xff] %vm353, 0.0
        %358 = vst.msk [vmem:[#allocation3 + $0x8] sm:$0xf] %vm355, 0.0
        %vm359 = vcmask 64512
        %360 = vst.msk [vmem:[#allocation4] sm:$0xff] %vm359, 0.0
        %vm361 = vcmask 60416
        %362 = vst.msk [vmem:[#allocation4 + $0x8] sm:$0xf] %vm361, 0.0
      $region36: #{_gpt_forward_jit.23} parent=31 // pred_fallthru
        _
      %s363 = sld [smem:[#allocation6 + %s29]]
      %s364 = smul.u32 %s32, 6
      %p365 = scmp.lt.s32.totalorder %s364, %s363
      // Predicated region
      $region37: #{_gpt_forward_jit.23} parent=31 // pred_check
        %p366 = pneg %p365
      $region38: #{_gpt_forward_jit.23} parent=31 // pred_check_branch
        %368 = sbr.rel (%p366) target = $region40
      $region39: #{_gpt_forward_jit.23} parent=31 // pred_region
        %v369 = vld [vmem:[%s308] sm:$0xf]
        %v370 = vld [vmem:[%s308 + $0x4] sm:$0x3]
        %v371 = vld [vmem:[%s320] sm:$0x7]
        %v374 = vunpack.c.l.b16 %v369
        %v375 = vunpack.c.l.b16 %v370
        %v376 = vpack.c.b16 %v375, %v374
        %vm377 = vcmask 64512
        %v379 = vsel %vm377, %v376, 0
        %v382 = vsel %vm377, %v371, 0
        %384 = vmatpush.bf16.xpose.msra.mxu0 0
        %385 = vmatpush.bf16.xpose.msra.mxu0 0
        %386 = vmatpush.bf16.xpose.msra.mxu0 0
        %387 = vmatpush.bf16.xpose.msra.mxu0 0
        %388 = vmatpush.bf16.xpose.msra.mxu0 0
        %389 = vmatpush.bf16.xpose.msra.mxu0 0
        %390 = vmatpush.bf16.xpose.msra.mxu0 0
        %391 = vmatpush.bf16.xpose.msra.mxu0 %v382
        %392 = vmatmul.bf16.gmra.mxu0 %v379
        %v393 = vpop.f32.mrf.mxu0
        %v394 = vadd.f32 0.0, %v393
        %v395 = vpop.f32.mrf.mxu0
        %v396 = vadd.f32 0.0, %v395
        %397 = vdwg.mxu0
        %v398 = vmul.f32 %v394, 0.35355338
        %v399 = vmul.f32 %v396, 0.35355338
        %v400 = vlaneseq
        %v401 = vand.u32 %v400, 127
        %v402 = vstv %s364
        %v403 = vadd.s32 %v402, %v401
        %v404 = vstv %s363
        %vm405 = vcmp.lt.s32.totalorder %v403, %v404
        %v406 = vsel %vm405, %v398, -1e+30
        %v407 = vsel %vm405, %v399, -1e+30
        %v408 = vld [vmem:[#allocation2] sm:$0xff]
        %v409 = vld [vmem:[#allocation2 + $0x8] sm:$0xf]
        %vm410 = vcmask 48128
        %v411 = vsel %vm410, %v406, -inf
        %412 = vmax.xlane.f32.xlu0 %v411
        %v413 = vpop.xlane.xlu0 %412
        %vm414 = vcmask 44032
        %v415 = vsel %vm414, %v407, -inf
        %416 = vmax.xlane.f32.xlu0 %v415
        %v417 = vpop.xlane.xlu0 %416
        %v418 = vmax.f32 %v408, %v413
        %v419 = vmax.f32 %v409, %v417
        %v420 = vsub.f32 %v408, %v418
        %v421 = vsub.f32 %v409, %v419
        %v422 = vmul.f32 %v420, 1.442695
        %v423 = vpow.pop %v422
        %v424 = vmul.f32 %v421, 1.442695
        %v425 = vpow.pop %v424
        %427 = vset.pattern.permute.xlu0 0
        %428 = vperm.xlu0 %427, %v418
        %v429 = vpop.permute.xlu0 %428
        %432 = vset.pattern.permute.xlu0 0
        %433 = vperm.xlu0 %432, %v419
        %v434 = vpop.permute.xlu0 %433
        %v436 = vsub.f32 %v406, %v429
        %v437 = vsub.f32 %v407, %v434
        %v438 = vmul.f32 %v436, 1.442695
        %v439 = vpow.pop %v438
        %v440 = vmul.f32 %v437, 1.442695
        %v441 = vpow.pop %v440
        %v442 = vsel %vm405, %v439, 0.0
        %v443 = vsel %vm405, %v441, 0.0
        %v444 = vld [vmem:[#allocation3] sm:$0xff]
        %v445 = vld [vmem:[#allocation3 + $0x8] sm:$0xf]
        %v446 = vmul.f32 %v423, %v444
        %v447 = vmul.f32 %v425, %v445
        %v448 = vsel %vm410, %v442, 0.0
        %449 = vadd.xlane.f32.xlu0 %v448
        %v450 = vpop.xlane.xlu0 %449
        %v451 = vsel %vm414, %v443, 0.0
        %452 = vadd.xlane.f32.xlu0 %v451
        %v453 = vpop.xlane.xlu0 %452
        %v454 = vadd.f32 %v446, %v450
        %v455 = vadd.f32 %v447, %v453
        %vm456 = vcmask 7168
        %457 = vst.msk [vmem:[#allocation3] sm:$0xff] %vm456, %v454
        %vm458 = vcmask 3072
        %459 = vst.msk [vmem:[#allocation3 + $0x8] sm:$0xf] %vm458, %v455
        %v460 = vld [vmem:[#allocation4] sm:$0xff]
        %v461 = vld [vmem:[#allocation4 + $0x8] sm:$0xf]
        %463 = vset.pattern.permute.xlu0 0
        %464 = vperm.xlu0 %463, %v423
        %v465 = vpop.permute.xlu0 %464
        %468 = vset.pattern.permute.xlu0 0
        %469 = vperm.xlu0 %468, %v425
        %v470 = vpop.permute.xlu0 %469
        %v472 = vmul.f32 %v465, %v460
        %v473 = vmul.f32 %v470, %v461
        %v474 = vpack.c.bf16 %v443, %v442
        %v475 = vld [vmem:[%s332] sm:$0x7]
        %v477 = vsel %vm410, %v474, 0
        %vm479 = vcmask 1042432
        %v481 = vsel %vm479, %v475, 0
        %483 = vmatpush.bf16.msra.mxu0 0
        %484 = vmatpush.bf16.msra.mxu0 0
        %485 = vmatpush.bf16.msra.mxu0 0
        %486 = vmatpush.bf16.msra.mxu0 0
        %487 = vmatpush.bf16.msra.mxu0 0
        %488 = vmatpush.bf16.msra.mxu0 0
        %489 = vmatpush.bf16.msra.mxu0 0
        %490 = vmatpush.bf16.msra.mxu0 %v481
        %491 = vmatmul.bf16.gmra.mxu0 %v477
        %v492 = vpop.f32.mrf.mxu0
        %v493 = vadd.f32 0.0, %v492
        %v494 = vpop.f32.mrf.mxu0
        %v495 = vadd.f32 0.0, %v494
        %496 = vdwg.mxu0
        %v497 = vadd.f32 %v472, %v493
        %v498 = vadd.f32 %v473, %v495
        %499 = vst.msk [vmem:[#allocation4] sm:$0xff] %vm377, %v497
        %vm500 = vcmask 60416
        %501 = vst.msk [vmem:[#allocation4 + $0x8] sm:$0xf] %vm500, %v498
        %502 = vst.msk [vmem:[#allocation2] sm:$0xff] %vm456, %v418
        %503 = vst.msk [vmem:[#allocation2 + $0x8] sm:$0xf] %vm458, %v419
      $region40: #{_gpt_forward_jit.23} parent=31 // pred_fallthru
        _
      // Predicated region
      $region41: #{_gpt_forward_jit.23} parent=31 // pred_check
        %p504 = pneg %p349
      $region42: #{_gpt_forward_jit.23} parent=31 // pred_check_branch
        %506 = sbr.rel (%p504) target = $region44
      $region43: #{_gpt_forward_jit.23} parent=31 // pred_region
        %v507 = vld [vmem:[#allocation3] sm:$0xff]
        %v508 = vld [vmem:[#allocation3 + $0x8] sm:$0xf]
        %v509 = vmax.f32 %v507, 1e-30
        %v510 = vmax.f32 %v508, 1e-30
        %v511 = vld [vmem:[#allocation4] sm:$0xff]
        %v512 = vld [vmem:[#allocation4 + $0x8] sm:$0xf]
        %v513 = vrcp.pop %v509
        %v514 = vrcp.pop %v510
        %516 = vset.pattern.permute.xlu0 0
        %517 = vperm.xlu0 %516, %v513
        %v518 = vpop.permute.xlu0 %517
        %521 = vset.pattern.permute.xlu0 0
        %522 = vperm.xlu0 %521, %v514
        %v523 = vpop.permute.xlu0 %522
        %v525 = vmul.f32 %v511, %v518
        %v526 = vmul.f32 %v512, %v523
        %v527 = vpack.c.bf16 %v525, %v525
        %v528 = vpack.c.bf16 %v526, %v526
        %vm529 = vcmask 60416
        %530 = vst.msk [vmem:[%s346] sm:$0xf] %vm529, %v527
        %vm531 = vcmask 58368
        %532 = vst.msk [vmem:[%s346 + $0x4] sm:$0x3] %vm531, %v528
      $region44: #{_gpt_forward_jit.23} parent=31 // pred_fallthru
        _
      %s533 = smul.u32 2, %s31
      %p534 = scmp.lt.s32.totalorder %s29, 1
      %s535 = scalar_select %p534, %s29, 1
      %p536 = scmp.lt.s32.totalorder %s30, 3
      %s537 = scalar_select %p536, %s30, 3
      %p538 = scmp.lt.s32.totalorder %s533, 1
      %s539 = scalar_select %p538, %s533, 1
      %s540 = smul.addr %s537, 2
      %s541 = sadd.s32 %s539, %s540
      %s542 = smul.addr %s535, 8
      %s543 = sadd.s32 %s541, %s542
      %s544 = smul.addr %s543, 4
      %s545 = scalar_lea.vmem %s4, %s544
      // Predicated region
      $region45: #{_gpt_forward_jit.23} parent=31 // pred_check
        %p546 = pneg %p163
      $region46: #{_gpt_forward_jit.23} parent=31 // pred_check_branch
        %548 = sbr.rel (%p546) target = $region48
      $region47: #{_gpt_forward_jit.23} parent=31 // pred_region
        %s549 = smul.u32 2, %s31
      $region48: #{_gpt_forward_jit.23} parent=31 // pred_fallthru
        _
    $region32: #{_gpt_forward_jit.23} parent=5 // pred_fallthru
      _
    %p550 = scmp.le.s32.totalorder 2, %s18
    // Predicated region
    $region49: #{_gpt_forward_jit.23} parent=5 // pred_check
      %p551 = pneg %p550
    $region50: #{_gpt_forward_jit.23} parent=5 // pred_check_branch
      %553 = sbr.rel (%p551) target = $region52
    $region51: #{_gpt_forward_jit.23} parent=5 // pred_region
      %s554 = ssub.s32 %s18, 2
      // Predicated region
      $region53: #{_gpt_forward_jit.23} parent=51 // pred_check
        %p555 = pneg %p169
      $region54: #{_gpt_forward_jit.23} parent=51 // pred_check_branch
        %557 = sbr.rel (%p555) target = $region56
      $region55: #{_gpt_forward_jit.23} parent=51 // pred_region
        %s558 = smul.u32 2, %s35
        %p559 = scmp.lt.s32.totalorder %s33, 1
        %s560 = scalar_select %p559, %s33, 1
        %p561 = scmp.lt.s32.totalorder %s34, 3
        %s562 = scalar_select %p561, %s34, 3
        %p563 = scmp.lt.s32.totalorder %s558, 1
        %s564 = scalar_select %p563, %s558, 1
        %s565 = smul.addr %s562, 2
        %s566 = sadd.s32 %s564, %s565
        %s567 = smul.addr %s560, 8
        %s568 = sadd.s32 %s566, %s567
        %s569 = smul.addr %s568, 4
        %s570 = scalar_lea.vmem %s4, %s569
      $region56: #{_gpt_forward_jit.23} parent=51 // pred_fallthru
        _
    $region52: #{_gpt_forward_jit.23} parent=5 // pred_fallthru
      _
  $region6: #{_gpt_forward_jit.23} parent=0 // loop_footer
    %s22 = sadd.s32 1, %s18
  $region7: #{_gpt_forward_jit.23} parent=0 // loop_footer_branch
    %17 = sbr.rel target = $region3
  $region8: #{_gpt_forward_jit.23} parent=0 // loop_exit
    _

// kernel: _gpt_forward_jit.21
$region0: #{_gpt_forward_jit.21}
  #allocation0 [shape = 'u32[]', space=smem, size = 0x4, offset = 0x4, fixed_abs, tag = 'smem constant byte address 0x4 - core index']
  #allocation1 [shape = 'u32[72,128]{1,0:T(1,128)}', space=vmem, size = 0x9000, scoped, tag = 'internal scratch']
  #allocation2 [shape = 'f32[24,32]{1,0:T(8,128)}', space=vmem, size = 0x3000, scoped, tag = 'scratch operand']
  %s0 = inlined_call_operand.vmem [shape: bf16[24,32], index: 0, kind: input, shape index: {}]
  %s1 = inlined_call_operand.vmem [shape: bf16[32,32], index: 1, kind: input, shape index: {}]
  %s2 = inlined_call_operand.vmem [shape: f32[1,32], index: 2, kind: input, shape index: {}]
  %s3 = inlined_call_operand.vmem [shape: f32[1,32], index: 3, kind: input, shape index: {}]
  %s4 = inlined_call_operand.vmem [shape: f32[1,32], index: 4, kind: input, shape index: {}]
  %s5 = inlined_call_operand.vmem [shape: bf16[24,32], index: 5, kind: output, shape index: {}]
  %s6 = sld [smem:[#allocation0]]
  $region38: #{_gpt_forward_jit.21} parent=0
    _
  %s8 = ssub.s32 1, %s6
  %s9 = scalar_select 0, %s8, %s6
  // Predicated region
  $region2: #{_gpt_forward_jit.21} parent=0 // pred_check
    _
  $region3: #{_gpt_forward_jit.21} parent=0 // pred_check_branch
    %11 = sbr.rel (0) target = $region5
  $region4: #{_gpt_forward_jit.21} parent=0 // pred_region
    _
  $region5: #{_gpt_forward_jit.21} parent=0 // pred_fallthru
    _
  // Predicated region
  $region6: #{_gpt_forward_jit.21} parent=0 // pred_check
    _
  $region7: #{_gpt_forward_jit.21} parent=0 // pred_check_branch
    %13 = sbr.rel (0) target = $region9
  $region8: #{_gpt_forward_jit.21} parent=0 // pred_region
    _
  $region9: #{_gpt_forward_jit.21} parent=0 // pred_fallthru
    _
  // Predicated region
  $region10: #{_gpt_forward_jit.21} parent=0 // pred_check
    _
  $region11: #{_gpt_forward_jit.21} parent=0 // pred_check_branch
    %15 = sbr.rel (0) target = $region13
  $region12: #{_gpt_forward_jit.21} parent=0 // pred_region
    _
  $region13: #{_gpt_forward_jit.21} parent=0 // pred_fallthru
    _
  // Predicated region
  $region14: #{_gpt_forward_jit.21} parent=0 // pred_check
    _
  $region15: #{_gpt_forward_jit.21} parent=0 // pred_check_branch
    %17 = sbr.rel (0) target = $region17
  $region16: #{_gpt_forward_jit.21} parent=0 // pred_region
    _
  $region17: #{_gpt_forward_jit.21} parent=0 // pred_fallthru
    _
  // Predicated region
  $region18: #{_gpt_forward_jit.21} parent=0 // pred_check
    _
  $region19: #{_gpt_forward_jit.21} parent=0 // pred_check_branch
    %19 = sbr.rel (0) target = $region21
  $region20: #{_gpt_forward_jit.21} parent=0 // pred_region
    _
  $region21: #{_gpt_forward_jit.21} parent=0 // pred_fallthru
    _
  %p21 = scmp.eq.s32.totalorder 0, 0
  // Predicated region
  $region22: #{_gpt_forward_jit.21} parent=0 // pred_check
    %p22 = pneg %p21
  $region23: #{_gpt_forward_jit.21} parent=0 // pred_check_branch
    %24 = sbr.rel (%p22) target = $region25
  $region24: #{_gpt_forward_jit.21} parent=0 // pred_region
    %vm25 = vcmask 261120
    %26 = vst.msk [vmem:[#allocation2] sm:$0xff] %vm25, 0.0
    %27 = vst.msk [vmem:[#allocation2 + $0x8] sm:$0xff] %vm25, 0.0
    %28 = vst.msk [vmem:[#allocation2 + $0x10] sm:$0xff] %vm25, 0.0
  $region25: #{_gpt_forward_jit.21} parent=0 // pred_fallthru
    _
  %v29 = vld [vmem:[%s0] sm:$0xf]
  %v30 = vld [vmem:[%s0 + $0x4] sm:$0xf]
  %v31 = vld [vmem:[%s0 + $0x8] sm:$0xf]
  %v32 = vunpack.c.l.bf16 %v29
  %v33 = vunpack.c.l.bf16 %v30
  %v34 = vunpack.c.l.bf16 %v31
  %vm35 = vcmask 261120
  %v36 = vsel %vm35, %v32, 0.0
  %37 = vadd.xlane.f32.xlu0 %v36
  %v38 = vpop.xlane.xlu0 %37
  %v39 = vsel %vm35, %v33, 0.0
  %40 = vadd.xlane.f32.xlu0 %v39
  %v41 = vpop.xlane.xlu0 %40
  %v42 = vsel %vm35, %v34, 0.0
  %43 = vadd.xlane.f32.xlu0 %v42
  %v44 = vpop.xlane.xlu0 %43
  %v45 = vrcp.pop 32.0
  %v46 = vmul.f32 32.0, %v45
  %v47 = vsub.f32 1.0, %v46
  %v48 = vmul.f32 %v45, %v47
  %v49 = vadd.f32 %v45, %v48
  %vm50 = vweird.f32 %v45
  %v51 = vsel %vm50, %v45, %v49
  %v52 = vmul.f32 %v38, %v51
  %v53 = vmul.f32 %v41, %v51
  %v54 = vmul.f32 %v44, %v51
  %v55 = vsub.f32 %v32, %v52
  %v56 = vsub.f32 %v33, %v53
  %v57 = vsub.f32 %v34, %v54
  %v58 = vmul.f32 %v55, %v55
  %v59 = vmul.f32 %v56, %v56
  %v60 = vmul.f32 %v57, %v57
  %v61 = vsel %vm35, %v58, 0.0
  %62 = vadd.xlane.f32.xlu0 %v61
  %v63 = vpop.xlane.xlu0 %62
  %v64 = vsel %vm35, %v59, 0.0
  %65 = vadd.xlane.f32.xlu0 %v64
  %v66 = vpop.xlane.xlu0 %65
  %v67 = vsel %vm35, %v60, 0.0
  %68 = vadd.xlane.f32.xlu0 %v67
  %v69 = vpop.xlane.xlu0 %68
  %v70 = vmul.f32 %v63, %v51
  %v71 = vmul.f32 %v66, %v51
  %v72 = vmul.f32 %v69, %v51
  %v73 = vadd.f32 %v70, 1e-05
  %v74 = vadd.f32 %v71, 1e-05
  %v75 = vadd.f32 %v72, 1e-05
  %v76 = vrsqrt.pop %v73
  %v77 = vmul.f32 %v76, %v73
  %v78 = vmul.f32 %v77, %v76
  %v79 = vmul.f32 0.5, %v78
  %v80 = vsub.f32 1.5, %v79
  %v81 = vmul.f32 %v76, %v80
  %vm82 = vweird.f32 %v73
  %vm83 = vweird.f32 %v76
  %vm84 = vmor %vm82, %vm83
  %v85 = vsel %vm84, %v76, %v81
  %v86 = vrsqrt.pop %v74
  %v87 = vmul.f32 %v86, %v74
  %v88 = vmul.f32 %v87, %v86
  %v89 = vmul.f32 0.5, %v88
  %v90 = vsub.f32 1.5, %v89
  %v91 = vmul.f32 %v86, %v90
  %vm92 = vweird.f32 %v74
  %vm93 = vweird.f32 %v86
  %vm94 = vmor %vm92, %vm93
  %v95 = vsel %vm94, %v86, %v91
  %v96 = vrsqrt.pop %v75
  %v97 = vmul.f32 %v96, %v75
  %v98 = vmul.f32 %v97, %v96
  %v99 = vmul.f32 0.5, %v98
  %v100 = vsub.f32 1.5, %v99
  %v101 = vmul.f32 %v96, %v100
  %vm102 = vweird.f32 %v75
  %vm103 = vweird.f32 %v96
  %vm104 = vmor %vm102, %vm103
  %v105 = vsel %vm104, %v96, %v101
  %v106 = vmul.f32 %v55, %v85
  %v107 = vmul.f32 %v56, %v95
  %v108 = vmul.f32 %v57, %v105
  %v109 = vld [vmem:[%s3] sm:$0x1]
  %v111 = vperm.slane %v109, 0
  %v113 = vmul.f32 %v106, %v111
  %v114 = vmul.f32 %v107, %v111
  %v115 = vmul.f32 %v108, %v111
  %v116 = vld [vmem:[%s4] sm:$0x1]
  %v118 = vperm.slane %v116, 0
  %v120 = vadd.f32 %v113, %v118
  %v121 = vadd.f32 %v114, %v118
  %v122 = vadd.f32 %v115, %v118
  %v123 = vpack.c.bf16 %v121, %v120
  %v124 = vpack.c.bf16 %v122, %v122
  %v125 = vld [vmem:[#allocation2] sm:$0xff]
  %v126 = vld [vmem:[#allocation2 + $0x8] sm:$0xff]
  %v127 = vld [vmem:[#allocation2 + $0x10] sm:$0xff]
  %v128 = vld [vmem:[%s1] sm:$0xf]
  %v129 = vld [vmem:[%s1 + $0x4] sm:$0xf]
  %v130 = vld [vmem:[%s1 + $0x8] sm:$0xf]
  %v131 = vld [vmem:[%s1 + $0xc] sm:$0xf]
  %v136 = vunpack.c.l.b16 %v128
  %v137 = vunpack.c.l.b16 %v129
  %v138 = vunpack.c.l.b16 %v130
  %v139 = vunpack.c.l.b16 %v131
  %v140 = vpack.c.b16 %v137, %v136
  %v141 = vpack.c.b16 %v139, %v138
  %v145 = vsel %vm35, %v123, 0
  %v148 = vsel %vm35, %v124, 0
  %150 = vmatpush.bf16.msra.mxu0 0
  %151 = vmatpush.bf16.msra.mxu0 0
  %152 = vmatpush.bf16.msra.mxu0 0
  %153 = vmatpush.bf16.msra.mxu0 0
  %154 = vmatpush.bf16.msra.mxu0 0
  %155 = vmatpush.bf16.msra.mxu0 0
  %156 = vmatpush.bf16.msra.mxu0 %v141
  %157 = vmatpush.bf16.msra.mxu0 %v140
  %158 = vmatmul.bf16.gmra.mxu0 %v145
  %v159 = vpop.f32.mrf.mxu0
  %v160 = vadd.f32 0.0, %v159
  %v161 = vpop.f32.mrf.mxu0
  %v162 = vadd.f32 0.0, %v161
  %163 = vmatmul.bf16.gmra.mxu0 %v148
  %v164 = vpop.f32.mrf.mxu0
  %v165 = vadd.f32 0.0, %v164
  %v166 = vpop.f32.mrf.mxu0
  %167 = vdwg.mxu0
  %v168 = vadd.f32 %v125, %v160
  %v169 = vadd.f32 %v126, %v162
  %v170 = vadd.f32 %v127, %v165
  %171 = vst.msk [vmem:[#allocation2] sm:$0xff] %vm35, %v168
  %172 = vst.msk [vmem:[#allocation2 + $0x8] sm:$0xff] %vm35, %v169
  %173 = vst.msk [vmem:[#allocation2 + $0x10] sm:$0xff] %vm35, %v170
  // Predicated region
  $region26: #{_gpt_forward_jit.21} parent=0 // pred_check
    %p174 = pneg %p21
  $region27: #{_gpt_forward_jit.21} parent=0 // pred_check_branch
    %176 = sbr.rel (%p174) target = $region29
  $region28: #{_gpt_forward_jit.21} parent=0 // pred_region
    %v177 = vld [vmem:[#allocation2] sm:$0xff]
    %v178 = vld [vmem:[#allocation2 + $0x8] sm:$0xff]
    %v179 = vld [vmem:[#allocation2 + $0x10] sm:$0xff]
    %v180 = vld [vmem:[%s2] sm:$0x1]
    %v182 = vperm.slane %v180, 0
    %v184 = vadd.f32 %v177, %v182
    %v185 = vadd.f32 %v178, %v182
    %v186 = vadd.f32 %v179, %v182
    %v187 = vpack.c.bf16 %v184, %v184
    %v188 = vpack.c.bf16 %v185, %v185
    %v189 = vpack.c.bf16 %v186, %v186
    %vm190 = vcmask 257024
    %191 = vst.msk [vmem:[%s5] sm:$0xf] %vm190, %v187
    %192 = vst.msk [vmem:[%s5 + $0x4] sm:$0xf] %vm190, %v188
    %193 = vst.msk [vmem:[%s5 + $0x8] sm:$0xf] %vm190, %v189
  $region29: #{_gpt_forward_jit.21} parent=0 // pred_fallthru
    _
  // Predicated region
  $region30: #{_gpt_forward_jit.21} parent=0 // pred_check
    _
  $region31: #{_gpt_forward_jit.21} parent=0 // pred_check_branch
    %195 = sbr.rel (0) target = $region33
  $region32: #{_gpt_forward_jit.21} parent=0 // pred_region
    _
  $region33: #{_gpt_forward_jit.21} parent=0 // pred_fallthru
    _
  // Predicated region
  $region34: #{_gpt_forward_jit.21} parent=0 // pred_check
    _
  $region35: #{_gpt_forward_jit.21} parent=0 // pred_check_branch
    %197 = sbr.rel (0) target = $region37
  $region36: #{_gpt_forward_jit.21} parent=0 // pred_region
    _
  $region37: #{_gpt_forward_jit.21} parent=0 // pred_fallthru
    _

// kernel: _gpt_forward_jit.25
$region0: #{_gpt_forward_jit.25}
  #allocation0 [shape = 'u32[]', space=smem, size = 0x4, offset = 0x4, fixed_abs, tag = 'smem constant byte address 0x4 - core index']
  #allocation1 [shape = 'u32[72,128]{1,0:T(1,128)}', space=vmem, size = 0x9000, scoped, tag = 'internal scratch']
  #allocation2 [shape = 'f32[24,128]{1,0:T(8,128)}', space=vmem, size = 0x3000, scoped, tag = 'scratch operand']
  %s0 = inlined_call_operand.vmem [shape: bf16[24,32], index: 0, kind: input, shape index: {}]
  %s1 = inlined_call_operand.vmem [shape: bf16[32,128], index: 1, kind: input, shape index: {}]
  %s2 = inlined_call_operand.vmem [shape: f32[1,128], index: 2, kind: input, shape index: {}]
  %s3 = inlined_call_operand.vmem [shape: f32[1,32], index: 3, kind: input, shape index: {}]
  %s4 = inlined_call_operand.vmem [shape: f32[1,32], index: 4, kind: input, shape index: {}]
  %s5 = inlined_call_operand.vmem [shape: bf16[24,128], index: 5, kind: output, shape index: {}]
  %s6 = sld [smem:[#allocation0]]
  $region38: #{_gpt_forward_jit.25} parent=0
    _
  %s8 = ssub.s32 1, %s6
  %s9 = scalar_select 0, %s8, %s6
  // Predicated region
  $region2: #{_gpt_forward_jit.25} parent=0 // pred_check
    _
  $region3: #{_gpt_forward_jit.25} parent=0 // pred_check_branch
    %11 = sbr.rel (0) target = $region5
  $region4: #{_gpt_forward_jit.25} parent=0 // pred_region
    _
  $region5: #{_gpt_forward_jit.25} parent=0 // pred_fallthru
    _
  // Predicated region
  $region6: #{_gpt_forward_jit.25} parent=0 // pred_check
    _
  $region7: #{_gpt_forward_jit.25} parent=0 // pred_check_branch
    %13 = sbr.rel (0) target = $region9
  $region8: #{_gpt_forward_jit.25} parent=0 // pred_region
    _
  $region9: #{_gpt_forward_jit.25} parent=0 // pred_fallthru
    _
  // Predicated region
  $region10: #{_gpt_forward_jit.25} parent=0 // pred_check
    _
  $region11: #{_gpt_forward_jit.25} parent=0 // pred_check_branch
    %15 = sbr.rel (0) target = $region13
  $region12: #{_gpt_forward_jit.25} parent=0 // pred_region
    _
  $region13: #{_gpt_forward_jit.25} parent=0 // pred_fallthru
    _
  // Predicated region
  $region14: #{_gpt_forward_jit.25} parent=0 // pred_check
    _
  $region15: #{_gpt_forward_jit.25} parent=0 // pred_check_branch
    %17 = sbr.rel (0) target = $region17
  $region16: #{_gpt_forward_jit.25} parent=0 // pred_region
    _
  $region17: #{_gpt_forward_jit.25} parent=0 // pred_fallthru
    _
  // Predicated region
  $region18: #{_gpt_forward_jit.25} parent=0 // pred_check
    _
  $region19: #{_gpt_forward_jit.25} parent=0 // pred_check_branch
    %19 = sbr.rel (0) target = $region21
  $region20: #{_gpt_forward_jit.25} parent=0 // pred_region
    _
  $region21: #{_gpt_forward_jit.25} parent=0 // pred_fallthru
    _
  %p21 = scmp.eq.s32.totalorder 0, 0
  // Predicated region
  $region22: #{_gpt_forward_jit.25} parent=0 // pred_check
    %p22 = pneg %p21
  $region23: #{_gpt_forward_jit.25} parent=0 // pred_check_branch
    %24 = sbr.rel (%p22) target = $region25
  $region24: #{_gpt_forward_jit.25} parent=0 // pred_region
    %25 = vst [vmem:[#allocation2] sm:$0xff] 0.0
    %26 = vst [vmem:[#allocation2 + $0x8] sm:$0xff] 0.0
    %27 = vst [vmem:[#allocation2 + $0x10] sm:$0xff] 0.0
  $region25: #{_gpt_forward_jit.25} parent=0 // pred_fallthru
    _
  %v28 = vld [vmem:[%s0] sm:$0xf]
  %v29 = vld [vmem:[%s0 + $0x4] sm:$0xf]
  %v30 = vld [vmem:[%s0 + $0x8] sm:$0xf]
  %v31 = vunpack.c.l.bf16 %v28
  %v32 = vunpack.c.l.bf16 %v29
  %v33 = vunpack.c.l.bf16 %v30
  %vm34 = vcmask 261120
  %v35 = vsel %vm34, %v31, 0.0
  %36 = vadd.xlane.f32.xlu0 %v35
  %v37 = vpop.xlane.xlu0 %36
  %v38 = vsel %vm34, %v32, 0.0
  %39 = vadd.xlane.f32.xlu0 %v38
  %v40 = vpop.xlane.xlu0 %39
  %v41 = vsel %vm34, %v33, 0.0
  %42 = vadd.xlane.f32.xlu0 %v41
  %v43 = vpop.xlane.xlu0 %42
  %v44 = vrcp.pop 32.0
  %v45 = vmul.f32 32.0, %v44
  %v46 = vsub.f32 1.0, %v45
  %v47 = vmul.f32 %v44, %v46
  %v48 = vadd.f32 %v44, %v47
  %vm49 = vweird.f32 %v44
  %v50 = vsel %vm49, %v44, %v48
  %v51 = vmul.f32 %v37, %v50
  %v52 = vmul.f32 %v40, %v50
  %v53 = vmul.f32 %v43, %v50
  %v54 = vsub.f32 %v31, %v51
  %v55 = vsub.f32 %v32, %v52
  %v56 = vsub.f32 %v33, %v53
  %v57 = vmul.f32 %v54, %v54
  %v58 = vmul.f32 %v55, %v55
  %v59 = vmul.f32 %v56, %v56
  %v60 = vsel %vm34, %v57, 0.0
  %61 = vadd.xlane.f32.xlu0 %v60
  %v62 = vpop.xlane.xlu0 %61
  %v63 = vsel %vm34, %v58, 0.0
  %64 = vadd.xlane.f32.xlu0 %v63
  %v65 = vpop.xlane.xlu0 %64
  %v66 = vsel %vm34, %v59, 0.0
  %67 = vadd.xlane.f32.xlu0 %v66
  %v68 = vpop.xlane.xlu0 %67
  %v69 = vmul.f32 %v62, %v50
  %v70 = vmul.f32 %v65, %v50
  %v71 = vmul.f32 %v68, %v50
  %v72 = vadd.f32 %v69, 1e-05
  %v73 = vadd.f32 %v70, 1e-05
  %v74 = vadd.f32 %v71, 1e-05
  %v75 = vrsqrt.pop %v72
  %v76 = vmul.f32 %v75, %v72
  %v77 = vmul.f32 %v76, %v75
  %v78 = vmul.f32 0.5, %v77
  %v79 = vsub.f32 1.5, %v78
  %v80 = vmul.f32 %v75, %v79
  %vm81 = vweird.f32 %v72
  %vm82 = vweird.f32 %v75
  %vm83 = vmor %vm81, %vm82
  %v84 = vsel %vm83, %v75, %v80
  %v85 = vrsqrt.pop %v73
  %v86 = vmul.f32 %v85, %v73
  %v87 = vmul.f32 %v86, %v85
  %v88 = vmul.f32 0.5, %v87
  %v89 = vsub.f32 1.5, %v88
  %v90 = vmul.f32 %v85, %v89
  %vm91 = vweird.f32 %v73
  %vm92 = vweird.f32 %v85
  %vm93 = vmor %vm91, %vm92
  %v94 = vsel %vm93, %v85, %v90
  %v95 = vrsqrt.pop %v74
  %v96 = vmul.f32 %v95, %v74
  %v97 = vmul.f32 %v96, %v95
  %v98 = vmul.f32 0.5, %v97
  %v99 = vsub.f32 1.5, %v98
  %v100 = vmul.f32 %v95, %v99
  %vm101 = vweird.f32 %v74
  %vm102 = vweird.f32 %v95
  %vm103 = vmor %vm101, %vm102
  %v104 = vsel %vm103, %v95, %v100
  %v105 = vmul.f32 %v54, %v84
  %v106 = vmul.f32 %v55, %v94
  %v107 = vmul.f32 %v56, %v104
  %v108 = vld [vmem:[%s3] sm:$0x1]
  %v110 = vperm.slane %v108, 0
  %v112 = vmul.f32 %v105, %v110
  %v113 = vmul.f32 %v106, %v110
  %v114 = vmul.f32 %v107, %v110
  %v115 = vld [vmem:[%s4] sm:$0x1]
  %v117 = vperm.slane %v115, 0
  %v119 = vadd.f32 %v112, %v117
  %v120 = vadd.f32 %v113, %v117
  %v121 = vadd.f32 %v114, %v117
  %v122 = vpack.c.bf16 %v120, %v119
  %v123 = vpack.c.bf16 %v121, %v121
  %v124 = vld [vmem:[#allocation2] sm:$0xff]
  %v125 = vld [vmem:[#allocation2 + $0x8] sm:$0xff]
  %v126 = vld [vmem:[#allocation2 + $0x10] sm:$0xff]
  %v127 = vld [vmem:[%s1] sm:$0xf]
  %v128 = vld [vmem:[%s1 + $0x4] sm:$0xf]
  %v129 = vld [vmem:[%s1 + $0x8] sm:$0xf]
  %v130 = vld [vmem:[%s1 + $0xc] sm:$0xf]
  %v135 = vunpack.c.l.b16 %v127
  %v136 = vunpack.c.l.b16 %v128
  %v137 = vunpack.c.l.b16 %v129
  %v138 = vunpack.c.l.b16 %v130
  %v139 = vpack.c.b16 %v136, %v135
  %v140 = vpack.c.b16 %v138, %v137
  %v144 = vsel %vm34, %v122, 0
  %v147 = vsel %vm34, %v123, 0
  %149 = vmatpush.bf16.msra.mxu0 0
  %150 = vmatpush.bf16.msra.mxu0 0
  %151 = vmatpush.bf16.msra.mxu0 0
  %152 = vmatpush.bf16.msra.mxu0 0
  %153 = vmatpush.bf16.msra.mxu0 0
  %154 = vmatpush.bf16.msra.mxu0 0
  %155 = vmatpush.bf16.msra.mxu0 %v140
  %156 = vmatpush.bf16.msra.mxu0 %v139
  %157 = vmatmul.bf16.gmra.mxu0 %v144
  %v158 = vpop.f32.mrf.mxu0
  %v159 = vadd.f32 0.0, %v158
  %v160 = vpop.f32.mrf.mxu0
  %v161 = vadd.f32 0.0, %v160
  %162 = vmatmul.bf16.gmra.mxu0 %v147
  %v163 = vpop.f32.mrf.mxu0
  %v164 = vadd.f32 0.0, %v163
  %v165 = vpop.f32.mrf.mxu0
  %166 = vdwg.mxu0
  %v167 = vadd.f32 %v124, %v159
  %v168 = vadd.f32 %v125, %v161
  %v169 = vadd.f32 %v126, %v164
  %170 = vst [vmem:[#allocation2] sm:$0xff] %v167
  %171 = vst [vmem:[#allocation2 + $0x8] sm:$0xff] %v168
  %172 = vst [vmem:[#allocation2 + $0x10] sm:$0xff] %v169
  // Predicated region
  $region26: #{_gpt_forward_jit.25} parent=0 // pred_check
    %p173 = pneg %p21
  $region27: #{_gpt_forward_jit.25} parent=0 // pred_check_branch
    %175 = sbr.rel (%p173) target = $region29
  $region28: #{_gpt_forward_jit.25} parent=0 // pred_region
    %v176 = vld [vmem:[#allocation2] sm:$0xff]
    %v177 = vld [vmem:[#allocation2 + $0x8] sm:$0xff]
    %v178 = vld [vmem:[#allocation2 + $0x10] sm:$0xff]
    %v179 = vld [vmem:[%s2] sm:$0x1]
    %v181 = vperm.slane %v179, 0
    %v183 = vadd.f32 %v176, %v181
    %v184 = vadd.f32 %v177, %v181
    %v185 = vadd.f32 %v178, %v181
    %v186 = vmul.f32 %v183, 0.5
    %v187 = vmul.f32 %v184, 0.5
    %v188 = vmul.f32 %v185, 0.5
    %v189 = vmul.f32 %v183, 0.044715
    %v190 = vmul.f32 %v184, 0.044715
    %v191 = vmul.f32 %v185, 0.044715
    %v192 = vmul.f32 %v189, %v183
    %v193 = vmul.f32 %v190, %v184
    %v194 = vmul.f32 %v191, %v185
    %v195 = vmul.f32 %v192, %v183
    %v196 = vmul.f32 %v193, %v184
    %v197 = vmul.f32 %v194, %v185
    %v198 = vadd.f32 %v183, %v195
    %v199 = vadd.f32 %v184, %v196
    %v200 = vadd.f32 %v185, %v197
    %v201 = vmul.f32 %v198, 0.7978846
    %v202 = vmul.f32 %v199, 0.7978846
    %v203 = vmul.f32 %v200, 0.7978846
    %v204 = vtanh.pop %v201
    %v205 = vtanh.pop %v202
    %v206 = vtanh.pop %v203
    %v207 = vadd.f32 %v204, 1.0
    %v208 = vadd.f32 %v205, 1.0
    %v209 = vadd.f32 %v206, 1.0
    %v210 = vmul.f32 %v186, %v207
    %v211 = vmul.f32 %v187, %v208
    %v212 = vmul.f32 %v188, %v209
    %v213 = vpack.c.bf16 %v210, %v210
    %v214 = vpack.c.bf16 %v211, %v211
    %v215 = vpack.c.bf16 %v212, %v212
    %216 = vst [vmem:[%s5] sm:$0xf] %v213
    %217 = vst [vmem:[%s5 + $0x4] sm:$0xf] %v214
    %218 = vst [vmem:[%s5 + $0x8] sm:$0xf] %v215
  $region29: #{_gpt_forward_jit.25} parent=0 // pred_fallthru
    _
  // Predicated region
  $region30: #{_gpt_forward_jit.25} parent=0 // pred_check
    _
  $region31: #{_gpt_forward_jit.25} parent=0 // pred_check_branch
    %220 = sbr.rel (0) target = $region33
  $region32: #{_gpt_forward_jit.25} parent=0 // pred_region
    _
  $region33: #{_gpt_forward_jit.25} parent=0 // pred_fallthru
    _
  // Predicated region
  $region34: #{_gpt_forward_jit.25} parent=0 // pred_check
    _
  $region35: #{_gpt_forward_jit.25} parent=0 // pred_check_branch
    %222 = sbr.rel (0) target = $region37
  $region36: #{_gpt_forward_jit.25} parent=0 // pred_region
    _
  $region37: #{_gpt_forward_jit.25} parent=0 // pred_fallthru
    _

// kernel: _gpt_forward_jit.26
$region0: #{_gpt_forward_jit.26}
  #allocation0 [shape = 'u32[]', space=smem, size = 0x4, offset = 0x4, fixed_abs, tag = 'smem constant byte address 0x4 - core index']
  #allocation1 [shape = 'u32[72,128]{1,0:T(1,128)}', space=vmem, size = 0x9000, scoped, tag = 'internal scratch']
  #allocation2 [shape = 'f32[24,32]{1,0:T(8,128)}', space=vmem, size = 0x3000, scoped, tag = 'scratch operand']
  %s0 = inlined_call_operand.vmem [shape: bf16[24,128], index: 0, kind: input, shape index: {}]
  %s1 = inlined_call_operand.vmem [shape: bf16[128,32], index: 1, kind: input, shape index: {}]
  %s2 = inlined_call_operand.vmem [shape: f32[1,32], index: 2, kind: input, shape index: {}]
  %s3 = inlined_call_operand.vmem [shape: bf16[24,32], index: 3, kind: input, shape index: {}]
  %s4 = inlined_call_operand.vmem [shape: bf16[24,32], index: 4, kind: output, shape index: {}]
  %s5 = sld [smem:[#allocation0]]
  $region34: #{_gpt_forward_jit.26} parent=0
    _
  %s7 = ssub.s32 1, %s5
  %s8 = scalar_select 0, %s7, %s5
  // Predicated region
  $region2: #{_gpt_forward_jit.26} parent=0 // pred_check
    _
  $region3: #{_gpt_forward_jit.26} parent=0 // pred_check_branch
    %10 = sbr.rel (0) target = $region5
  $region4: #{_gpt_forward_jit.26} parent=0 // pred_region
    _
  $region5: #{_gpt_forward_jit.26} parent=0 // pred_fallthru
    _
  // Predicated region
  $region6: #{_gpt_forward_jit.26} parent=0 // pred_check
    _
  $region7: #{_gpt_forward_jit.26} parent=0 // pred_check_branch
    %12 = sbr.rel (0) target = $region9
  $region8: #{_gpt_forward_jit.26} parent=0 // pred_region
    _
  $region9: #{_gpt_forward_jit.26} parent=0 // pred_fallthru
    _
  // Predicated region
  $region10: #{_gpt_forward_jit.26} parent=0 // pred_check
    _
  $region11: #{_gpt_forward_jit.26} parent=0 // pred_check_branch
    %14 = sbr.rel (0) target = $region13
  $region12: #{_gpt_forward_jit.26} parent=0 // pred_region
    _
  $region13: #{_gpt_forward_jit.26} parent=0 // pred_fallthru
    _
  // Predicated region
  $region14: #{_gpt_forward_jit.26} parent=0 // pred_check
    _
  $region15: #{_gpt_forward_jit.26} parent=0 // pred_check_branch
    %16 = sbr.rel (0) target = $region17
  $region16: #{_gpt_forward_jit.26} parent=0 // pred_region
    _
  $region17: #{_gpt_forward_jit.26} parent=0 // pred_fallthru
    _
  %p17 = scmp.eq.s32.totalorder 0, 0
  // Predicated region
  $region18: #{_gpt_forward_jit.26} parent=0 // pred_check
    %p18 = pneg %p17
  $region19: #{_gpt_forward_jit.26} parent=0 // pred_check_branch
    %20 = sbr.rel (%p18) target = $region21
  $region20: #{_gpt_forward_jit.26} parent=0 // pred_region
    %vm21 = vcmask 261120
    %22 = vst.msk [vmem:[#allocation2] sm:$0xff] %vm21, 0.0
    %23 = vst.msk [vmem:[#allocation2 + $0x8] sm:$0xff] %vm21, 0.0
    %24 = vst.msk [vmem:[#allocation2 + $0x10] sm:$0xff] %vm21, 0.0
  $region21: #{_gpt_forward_jit.26} parent=0 // pred_fallthru
    _
  %v25 = vld [vmem:[%s0] sm:$0xf]
  %v26 = vld [vmem:[%s0 + $0x4] sm:$0xf]
  %v27 = vld [vmem:[%s0 + $0x8] sm:$0xf]
  %v28 = vld [vmem:[#allocation2] sm:$0xff]
  %v29 = vld [vmem:[#allocation2 + $0x8] sm:$0xff]
  %v30 = vld [vmem:[#allocation2 + $0x10] sm:$0xff]
  %v31 = vld [vmem:[%s1] sm:$0xf]
  %v32 = vld [vmem:[%s1 + $0x4] sm:$0xf]
  %v33 = vld [vmem:[%s1 + $0x8] sm:$0xf]
  %v34 = vld [vmem:[%s1 + $0xc] sm:$0xf]
  %v35 = vld [vmem:[%s1 + $0x10] sm:$0xf]
  %v36 = vld [vmem:[%s1 + $0x14] sm:$0xf]
  %v37 = vld [vmem:[%s1 + $0x18] sm:$0xf]
  %v38 = vld [vmem:[%s1 + $0x1c] sm:$0xf]
  %v39 = vld [vmem:[%s1 + $0x20] sm:$0xf]
  %v40 = vld [vmem:[%s1 + $0x24] sm:$0xf]
  %v41 = vld [vmem:[%s1 + $0x28] sm:$0xf]
  %v42 = vld [vmem:[%s1 + $0x2c] sm:$0xf]
  %v43 = vld [vmem:[%s1 + $0x30] sm:$0xf]
  %v44 = vld [vmem:[%s1 + $0x34] sm:$0xf]
  %v45 = vld [vmem:[%s1 + $0x38] sm:$0xf]
  %v46 = vld [vmem:[%s1 + $0x3c] sm:$0xf]
  %v50 = vunpack.c.l.b16 %v25
  %v51 = vunpack.c.l.b16 %v26
  %v52 = vunpack.c.l.b16 %v27
  %v53 = vpack.c.b16 %v51, %v50
  %v54 = vpack.c.b16 %v52, %v52
  %v73 = vunpack.c.l.b16 %v31
  %v74 = vunpack.c.l.b16 %v32
  %v75 = vunpack.c.l.b16 %v33
  %v76 = vunpack.c.l.b16 %v34
  %v77 = vunpack.c.l.b16 %v35
  %v78 = vunpack.c.l.b16 %v36
  %v79 = vunpack.c.l.b16 %v37
  %v80 = vunpack.c.l.b16 %v38
  %v81 = vunpack.c.l.b16 %v39
  %v82 = vunpack.c.l.b16 %v40
  %v83 = vunpack.c.l.b16 %v41
  %v84 = vunpack.c.l.b16 %v42
  %v85 = vunpack.c.l.b16 %v43
  %v86 = vunpack.c.l.b16 %v44
  %v87 = vunpack.c.l.b16 %v45
  %v88 = vunpack.c.l.b16 %v46
  %v89 = vpack.c.b16 %v74, %v73
  %v90 = vpack.c.b16 %v76, %v75
  %v91 = vpack.c.b16 %v78, %v77
  %v92 = vpack.c.b16 %v80, %v79
  %v93 = vpack.c.b16 %v82, %v81
  %v94 = vpack.c.b16 %v84, %v83
  %v95 = vpack.c.b16 %v86, %v85
  %v96 = vpack.c.b16 %v88, %v87
  %105 = vmatpush.bf16.msra.mxu0 %v96
  %106 = vmatpush.bf16.msra.mxu0 %v95
  %107 = vmatpush.bf16.msra.mxu0 %v94
  %108 = vmatpush.bf16.msra.mxu0 %v93
  %109 = vmatpush.bf16.msra.mxu0 %v92
  %110 = vmatpush.bf16.msra.mxu0 %v91
  %111 = vmatpush.bf16.msra.mxu0 %v90
  %112 = vmatpush.bf16.msra.mxu0 %v89
  %113 = vmatmul.bf16.gmra.mxu0 %v53
  %v114 = vpop.f32.mrf.mxu0
  %v115 = vadd.f32 0.0, %v114
  %v116 = vpop.f32.mrf.mxu0
  %v117 = vadd.f32 0.0, %v116
  %118 = vmatmul.bf16.gmra.mxu0 %v54
  %v119 = vpop.f32.mrf.mxu0
  %v120 = vadd.f32 0.0, %v119
  %v121 = vpop.f32.mrf.mxu0
  %122 = vdwg.mxu0
  %v123 = vadd.f32 %v28, %v115
  %v124 = vadd.f32 %v29, %v117
  %v125 = vadd.f32 %v30, %v120
  %vm126 = vcmask 261120
  %127 = vst.msk [vmem:[#allocation2] sm:$0xff] %vm126, %v123
  %128 = vst.msk [vmem:[#allocation2 + $0x8] sm:$0xff] %vm126, %v124
  %129 = vst.msk [vmem:[#allocation2 + $0x10] sm:$0xff] %vm126, %v125
  // Predicated region
  $region22: #{_gpt_forward_jit.26} parent=0 // pred_check
    %p130 = pneg %p17
  $region23: #{_gpt_forward_jit.26} parent=0 // pred_check_branch
    %132 = sbr.rel (%p130) target = $region25
  $region24: #{_gpt_forward_jit.26} parent=0 // pred_region
    %v133 = vld [vmem:[#allocation2] sm:$0xff]
    %v134 = vld [vmem:[#allocation2 + $0x8] sm:$0xff]
    %v135 = vld [vmem:[#allocation2 + $0x10] sm:$0xff]
    %v136 = vld [vmem:[%s2] sm:$0x1]
    %v138 = vperm.slane %v136, 0
    %v140 = vadd.f32 %v133, %v138
    %v141 = vadd.f32 %v134, %v138
    %v142 = vadd.f32 %v135, %v138
    %v143 = vld [vmem:[%s3] sm:$0xf]
    %v144 = vld [vmem:[%s3 + $0x4] sm:$0xf]
    %v145 = vld [vmem:[%s3 + $0x8] sm:$0xf]
    %v146 = vunpack.c.l.bf16 %v143
    %v147 = vunpack.c.l.bf16 %v144
    %v148 = vunpack.c.l.bf16 %v145
    %v149 = vadd.f32 %v140, %v146
    %v150 = vadd.f32 %v141, %v147
    %v151 = vadd.f32 %v142, %v148
    %v152 = vpack.c.bf16 %v149, %v149
    %v153 = vpack.c.bf16 %v150, %v150
    %v154 = vpack.c.bf16 %v151, %v151
    %vm155 = vcmask 257024
    %156 = vst.msk [vmem:[%s4] sm:$0xf] %vm155, %v152
    %157 = vst.msk [vmem:[%s4 + $0x4] sm:$0xf] %vm155, %v153
    %158 = vst.msk [vmem:[%s4 + $0x8] sm:$0xf] %vm155, %v154
  $region25: #{_gpt_forward_jit.26} parent=0 // pred_fallthru
    _
  // Predicated region
  $region26: #{_gpt_forward_jit.26} parent=0 // pred_check
    _
  $region27: #{_gpt_forward_jit.26} parent=0 // pred_check_branch
    %160 = sbr.rel (0) target = $region29
  $region28: #{_gpt_forward_jit.26} parent=0 // pred_region
    _
  $region29: #{_gpt_forward_jit.26} parent=0 // pred_fallthru
    _
  // Predicated region
  $region30: #{_gpt_forward_jit.26} parent=0 // pred_check
    _
  $region31: #{_gpt_forward_jit.26} parent=0 // pred_check_branch
    %162 = sbr.rel (0) target = $region33
  $region32: #{_gpt_forward_jit.26} parent=0 // pred_region
    _
  $region33: #{_gpt_forward_jit.26} parent=0 // pred_fallthru
    _

</llo_original>
